<compile_context>
chip_gen: v7x
topology: tpu7x:2x2x1
jax: 0.10.0
libtpu: 0.0.40
codegen_flags: <defaults>
</compile_context>

<pallas_src>
import functools
import math

import jax
import jax.numpy as jnp
from jax.experimental import pallas as pl
from jax.experimental.pallas import tpu as pltpu

# ---------------- model config (matches OurModel defaults) ----------------
SIZES = (24, 24)                 # each >= k+1 = 21 so top-k neighbour selection is valid
EMB = 16                         # embedding_size
NKERNEL = 64
NLAYERS = 4
NHID = 32                        # transformer feed-forward dim
NHEAD = 2
KSIZE = 9
HIDDEN = 64                      # hidden_dim of outlier head
K_NEIGH = 20                     # self.k
TAU = 1.0
NUM_FEATS = EMB * len(SIZES) + NKERNEL   # 96
DH = NUM_FEATS // NHEAD                  # 48
LN_EPS = 1e-5

# lane-aligned (padded) dims — padding is zero-filled so results are unchanged
E_PAD = 128                      # features 96  -> 128
DH_PAD = 128                     # head dim 48  -> 128
NHID_PAD = 128                   # FFN dim  32  -> 128
HID_PAD = 128                    # outlier head hidden 64 -> 128
PATCH_PAD = 16                   # conv im2col K 9 -> 16
QKV_PAD = 3 * NHEAD * DH_PAD     # 768
NEG_INF = -1e30


# =========================== the fused Pallas kernel ===========================

def fused_forward_kernel(
        patches_ref, emb_pe_ref, conv_w_ref, conv_b_ref,
        w_in_ref, b_in_ref, w_out_ref, b_out_ref,
        g1_ref, be1_ref, w1_ref, b1_ref, w2_ref, b2_ref, g2_ref, be2_ref,
        wg0_ref, s0_ref, wg1_ref, s1_ref,
        w_o1t_ref, w_o1h_ref, b_o1_ref, w_mean_ref,
        y_ref, std_ref, mask_ref,
        mae_ref,
        x_ref, *, batch):
    f32 = jnp.float32
    bf16 = jnp.bfloat16
    TB = x_ref.shape[0]
    l = pl.program_id(0)
    last = pl.num_programs(0) - 1

    # ---- front end (first grid step only): Conv1d im2col matmul + emb + pos-enc ----
    @pl.when(l == 0)
    def _():
        x0 = jnp.dot(patches_ref[...].astype(bf16), conv_w_ref[...],
                     preferred_element_type=f32)
        x_ref[...] = x0 + conv_b_ref[...] + emb_pe_ref[...]      # lanes 96..127 stay 0

    # LayerNorm over the real 96 features only (padded lanes stay exactly zero).
    feat_mask = jax.lax.broadcasted_iota(jnp.int32, (1, E_PAD), 1) < NUM_FEATS
    inv_e = 1.0 / NUM_FEATS

    def layernorm(y, g, b):
        mu = jnp.sum(y, axis=-1, keepdims=True) * inv_e
        d = jnp.where(feat_mask, y - mu, 0.0)
        var = jnp.sum(d * d, axis=-1, keepdims=True) * inv_e
        return d * jax.lax.rsqrt(var + LN_EPS) * g + b

    # Block-diagonal attention structure generated in-kernel: rows are ordered
    # (t, b) and attention runs ACROSS the batch dim for each fixed t (because
    # the PyTorch module feeds a (B,T,E) tensor to a batch_first=False encoder).
    rows = jax.lax.broadcasted_iota(jnp.int32, (TB, TB), 0)
    cols = jax.lax.broadcasted_iota(jnp.int32, (TB, TB), 1)
    if (batch & (batch - 1)) == 0:                     # power-of-two batch -> shifts
        sh = batch.bit_length() - 1
        same_t = (rows >> sh) == (cols >> sh)
    else:
        same_t = (rows // batch) == (cols // batch)

    scale = 1.0 / math.sqrt(DH)
    nt_dims = (((1,), (1,)), ((), ()))                 # q @ k^T

    # ---- one post-norm encoder layer per grid step (weights pipelined by layer) ----
    x = x_ref[...]                                     # (TB, 128) f32, resident scratch
    xb = x.astype(bf16)
    hv_heads = []
    for h in range(NHEAD):                             # all slices are 128-lane aligned
        cq = h * DH_PAD
        ck = (NHEAD + h) * DH_PAD
        cv = (2 * NHEAD + h) * DH_PAD
        q = jnp.dot(xb, w_in_ref[:, cq:cq + DH_PAD],
                    preferred_element_type=f32) + b_in_ref[:, cq:cq + DH_PAD]
        k = jnp.dot(xb, w_in_ref[:, ck:ck + DH_PAD],
                    preferred_element_type=f32) + b_in_ref[:, ck:ck + DH_PAD]
        v = jnp.dot(xb, w_in_ref[:, cv:cv + DH_PAD],
                    preferred_element_type=f32) + b_in_ref[:, cv:cv + DH_PAD]
        s = jax.lax.dot_general(q.astype(bf16), k.astype(bf16), nt_dims,
                                preferred_element_type=f32)
        s = jnp.where(same_t, s * scale, NEG_INF)      # softmax path kept in f32
        s = s - jnp.max(s, axis=-1, keepdims=True)
        p = jnp.exp(s)
        p = p * pl.reciprocal(jnp.sum(p, axis=-1, keepdims=True), approx=True)
        hv_heads.append(jnp.dot(p.astype(bf16), v.astype(bf16),
                                preferred_element_type=f32))
    hv = jnp.concatenate(hv_heads, axis=-1)            # (TB, NHEAD*128)
    attn = jnp.dot(hv.astype(bf16), w_out_ref[...], preferred_element_type=f32)
    x = layernorm(x + attn + b_out_ref[...], g1_ref[...], be1_ref[...])
    ff = jnp.maximum(jnp.dot(x.astype(bf16), w1_ref[...],
                             preferred_element_type=f32) + b1_ref[...], 0.0)
    ff = jnp.dot(ff.astype(bf16), w2_ref[...], preferred_element_type=f32) + b2_ref[...]
    x = layernorm(x + ff, g2_ref[...], be2_ref[...])
    x_ref[...] = x

    # ---- epilogue (last grid step): compute_feats, outlier head, masked MAE ----
    @pl.when(l == last)
    def _():
        hidden = jnp.maximum(x, 0.0)                   # TransformerConvModel .clamp(min=0)

        def neighbor_feats(wg, s):
            w = jnp.where(s == 0.0, wg / 1000.0, wg)   # torch: w[s == 0] /= 1000
            wsum = jnp.sum(w, axis=-1, keepdims=True)
            wmean = jnp.sum(w * s, axis=-1, keepdims=True) / wsum
            mu = jnp.sum(s, axis=-1, keepdims=True) * (1.0 / K_NEIGH)
            var = jnp.sum((s - mu) ** 2, axis=-1, keepdims=True) * (1.0 / (K_NEIGH - 1))
            return wsum, wmean, jnp.sqrt(var)          # each (TB, 1)

        f1_0, f2_0, f3_0 = neighbor_feats(wg0_ref[...], s0_ref[...])
        f1_1, f2_1, f3_1 = neighbor_feats(wg1_ref[...], s1_ref[...])

        # Pack the 6 temp features into a (TB, 8) tile so the whole outlier layer
        # is two MXU matmuls instead of 6 broadcast-FMA passes over (TB, 128).
        lane8 = jax.lax.broadcasted_iota(jnp.int32, (TB, 8), 1)
        tf = jnp.zeros((TB, 8), f32)
        for j, f in enumerate((f1_0, f1_1, f2_0, f2_1, f3_0, f3_1)):
            tf = jnp.where(lane8 == j, f, tf)

        h1 = jnp.dot(hidden.astype(jnp.bfloat16), w_o1h_ref[...],
                     preferred_element_type=f32)
        h1 = h1 + jnp.dot(tf, w_o1t_ref[...], preferred_element_type=f32) + b_o1_ref[...]
        h1 = jnp.maximum(h1, 0.0)
        # mean_outlier_layer; its bias is folded into y_ref on the host side.
        # The std head is never used by forward(), so it is dropped here.
        mean = jnp.sum(h1 * w_mean_ref[...], axis=-1, keepdims=True)   # (TB, 1)

        d = jnp.abs((mean - y_ref[...]) * std_ref[...])
        m = mask_ref[...]
        # NOTE: all-False mask yields NaN, matching torch .mean() over an empty selection.
        mae_ref[...] = jnp.reshape(jnp.sum(d * m) / jnp.sum(m), (1, 1))


# ================= one-time weight padding / stacking (NOT per call) =================

def _pad2(w, rows, cols):
    return jnp.pad(w, ((0, rows - w.shape[0]), (0, cols - w.shape[1])))


def positional_encoding(T, E):
    pos = jnp.arange(T, dtype=jnp.float32)[:, None]
    div = jnp.exp(jnp.arange(0, E, 2, dtype=jnp.float32) * (-math.log(10000.0) / E))
    pe = jnp.zeros((T, E), jnp.float32)
    pe = pe.at[:, 0::2].set(jnp.sin(pos * div))
    pe = pe.at[:, 1::2].set(jnp.cos(pos * div))
    return pe


def build_kernel_params(params):
    """Zero-pad weights to lane-aligned shapes, stack per-layer transformer
    weights along a leading 'layer' axis, and cast matmul weights to bf16."""
    E = NUM_FEATS
    bf16 = jnp.bfloat16

    def per_head_cols(mat):  # (r, 96) -> (r, NHEAD*128); head h's 48 cols land at lane h*128
        return jnp.concatenate(
            [jnp.pad(mat[:, h * DH:(h + 1) * DH], ((0, 0), (0, DH_PAD - DH)))
             for h in range(NHEAD)], axis=1)

    acc = {name: [] for name in ("w_in", "b_in", "w_out", "b_out", "g1", "be1",
                                 "w1", "b1", "w2", "b2", "g2", "be2")}
    for lp in params["layers"]:
        w_in_p = jnp.concatenate([per_head_cols(lp["w_in"][:, i * E:(i + 1) * E])
                                  for i in range(3)], axis=1)                  # (96, 768)
        acc["w_in"].append(jnp.pad(w_in_p, ((0, E_PAD - E), (0, 0))))          # (128, 768)
        acc["b_in"].append(jnp.concatenate(
            [per_head_cols(lp["b_in"][:, i * E:(i + 1) * E]) for i in range(3)], axis=1))
        acc["w_out"].append(jnp.concatenate(                                   # (256, 128)
            [_pad2(lp["w_out"][h * DH:(h + 1) * DH, :], DH_PAD, E_PAD)
             for h in range(NHEAD)], axis=0))
        acc["b_out"].append(_pad2(lp["b_out"], 1, E_PAD))
        acc["g1"].append(_pad2(lp["g1"], 1, E_PAD))
        acc["be1"].append(_pad2(lp["be1"], 1, E_PAD))
        acc["w1"].append(_pad2(lp["w1"], E_PAD, NHID_PAD))
        acc["b1"].append(_pad2(lp["b1"], 1, NHID_PAD))
        acc["w2"].append(_pad2(lp["w2"], NHID_PAD, E_PAD))
        acc["b2"].append(_pad2(lp["b2"], 1, E_PAD))
        acc["g2"].append(_pad2(lp["g2"], 1, E_PAD))
        acc["be2"].append(_pad2(lp["be2"], 1, E_PAD))

    kp = {k: jnp.stack(v) for k, v in acc.items()}
    for name in ("w_in", "w_out", "w1", "w2"):                                 # bf16 weights
        kp[name] = kp[name].astype(bf16)

    kp["conv_w"] = _pad2(params["conv_w"], PATCH_PAD, E_PAD).astype(bf16)      # (16, 128)
    kp["conv_b"] = _pad2(params["conv_b"], 1, E_PAD)
    n_temp = 3 * len(SIZES)
    kp["w_o1t"] = _pad2(params["w_o1"][:n_temp], 8, HID_PAD)                   # (8, 128) f32
    kp["w_o1h"] = _pad2(params["w_o1"][n_temp:], E_PAD, HID_PAD).astype(bf16)  # (128, 128)
    kp["b_o1"] = _pad2(params["b_o1"], 1, HID_PAD)
    kp["w_mean"] = _pad2(params["w_head"][:, 0:1].T, 1, HID_PAD)               # (1, 128)
    kp["b_mean"] = params["b_head"][0, 0]
    return kp


def prepare_model(params, T):
    """Run ONCE per model/T: padded+stacked (bf16) kernel weights + constants."""
    prep = build_kernel_params(params)
    prep["pe_pad"] = jnp.pad(positional_encoding(T, NUM_FEATS),
                             ((0, 0), (0, E_PAD - NUM_FEATS)))                 # (T, 128)
    prep["emb0"] = params["embeddings"][0]
    prep["emb1"] = params["embeddings"][1]
    prep["residuals"] = params["residuals"]
    return prep


# =========================== per-call glue (plain JAX) ===========================

def our_model_forward(prep, in_series, out_series, mask, context_info):
    ctx_idx, _ctx_mean, ctx_std = context_info
    B, T = in_series.shape
    TB = T * B

    # conv front end: im2col patches, rows ordered (t, b), lane dim padded 9 -> 16
    pad = (KSIZE - 1) // 2
    xp = jnp.pad(in_series, ((0, 0), (pad, pad)))
    patches = jnp.stack([xp[:, k:k + T] for k in range(KSIZE)], axis=-1)       # (B, T, 9)
    patches = jnp.transpose(patches, (1, 0, 2)).reshape(TB, KSIZE)
    patches = jnp.pad(patches, ((0, 0), (0, PATCH_PAD - KSIZE)))               # (TB, 16)

    # per-sample embedding features + positional encoding, pre-laid-out (t, b)
    e0 = prep["emb0"][ctx_idx[:, 0]]                                           # (B, 16)
    e1 = prep["emb1"][ctx_idx[:, 1]]
    emb = jnp.concatenate([jnp.zeros((B, NKERNEL), jnp.float32), e0, e1], axis=-1)
    emb = jnp.pad(emb, ((0, 0), (0, E_PAD - NUM_FEATS)))                       # (B, 128)
    emb_pe = (prep["pe_pad"][:, None, :] + emb[None, :, :]).reshape(TB, E_PAD)

    # residual-neighbour gathers
    residuals = prep["residuals"]                                              # (T, S0, S1)
    y_ctx = [jnp.transpose(residuals[:, :, ctx_idx[:, 1]], (2, 0, 1)),         # (B, T, S0)
             jnp.transpose(residuals[:, ctx_idx[:, 0], :], (1, 0, 2))]         # (B, T, S1)
    emb_tables = (prep["emb0"], prep["emb1"])
    b2 = jnp.arange(B)[:, None]
    wg_in, s_in = [], []
    for i in range(len(SIZES)):
        W = emb_tables[i]
        idx = ctx_idx[:, i]
        d = jnp.sqrt(jnp.sum((W[idx][:, None, :] - W[None, :, :]) ** 2, axis=-1)) + 0.001
        d = d.at[jnp.arange(B), idx].set(0.0)
        w = jnp.exp(-d / TAU)                                                  # (B, S_i)
        # TODO(synk): top-k neighbour selection needs a sort; no Pallas TPU sort, stays in JAX.
        nb = jnp.argsort(w, axis=-1)[:, -(K_NEIGH + 1):-1]                     # (B, k)
        s = y_ctx[i][b2, :, nb]                                                # (B, k, T)
        wg = w[b2, nb]                                                         # (B, k)
        s_in.append(jnp.transpose(s, (2, 0, 1)).reshape(TB, K_NEIGH))
        wg_in.append(jnp.broadcast_to(wg[None], (T, B, K_NEIGH)).reshape(TB, K_NEIGH))

    # MAE targets in (t, b) row order; mean-head bias folded into the target
    y_col = jnp.transpose(out_series).reshape(TB, 1) - prep["b_mean"]
    std_col = jnp.broadcast_to(ctx_std[None, :], (T, B)).reshape(TB, 1)
    mask_col = jnp.transpose(mask).astype(jnp.float32).reshape(TB, 1)

    const2 = lambda l: (0, 0)          # noqa: E731  (fetched once: block idx constant)
    layer3 = lambda l: (l, 0, 0)       # noqa: E731  (per-layer weight slabs, pipelined)

    grid_spec = pltpu.PrefetchScalarGridSpec(
        num_scalar_prefetch=0,
        grid=(NLAYERS,),
        in_specs=[
            pl.BlockSpec((TB, PATCH_PAD), const2),            # patches
            pl.BlockSpec((TB, E_PAD), const2),                # emb_pe
            pl.BlockSpec((PATCH_PAD, E_PAD), const2),         # conv_w
            pl.BlockSpec((1, E_PAD), const2),                 # conv_b
            pl.BlockSpec((None, E_PAD, QKV_PAD), layer3),     # w_in
            pl.BlockSpec((None, 1, QKV_PAD), layer3),         # b_in
            pl.BlockSpec((None, NHEAD * DH_PAD, E_PAD), layer3),  # w_out
            pl.BlockSpec((None, 1, E_PAD), layer3),           # b_out
            pl.BlockSpec((None, 1, E_PAD), layer3),           # g1
            pl.BlockSpec((None, 1, E_PAD), layer3),           # be1
            pl.BlockSpec((None, E_PAD, NHID_PAD), layer3),    # w1
            pl.BlockSpec((None, 1, NHID_PAD), layer3),        # b1
            pl.BlockSpec((None, NHID_PAD, E_PAD), layer3),    # w2
            pl.BlockSpec((None, 1, E_PAD), layer3),           # b2
            pl.BlockSpec((None, 1, E_PAD), layer3),           # g2
            pl.BlockSpec((None, 1, E_PAD), layer3),           # be2
            pl.BlockSpec((TB, K_NEIGH), const2),              # wg0
            pl.BlockSpec((TB, K_NEIGH), const2),              # s0
            pl.BlockSpec((TB, K_NEIGH), const2),              # wg1
            pl.BlockSpec((TB, K_NEIGH), const2),              # s1
            pl.BlockSpec((8, HID_PAD), const2),               # w_o1t
            pl.BlockSpec((E_PAD, HID_PAD), const2),           # w_o1h
            pl.BlockSpec((1, HID_PAD), const2),               # b_o1
            pl.BlockSpec((1, HID_PAD), const2),               # w_mean
            pl.BlockSpec((TB, 1), const2),                    # y
            pl.BlockSpec((TB, 1), const2),                    # std
            pl.BlockSpec((TB, 1), const2),                    # mask
        ],
        out_specs=pl.BlockSpec((1, 1), const2),
        scratch_shapes=[pltpu.VMEM((TB, E_PAD), jnp.float32)],   # resident activations x
    )

    mae = pl.pallas_call(
        functools.partial(fused_forward_kernel, batch=B),
        out_shape=jax.ShapeDtypeStruct((1, 1), jnp.float32),
        grid_spec=grid_spec,
        compiler_params=pltpu.CompilerParams(
            dimension_semantics=("arbitrary",),               # sequential layer dependence
            vmem_limit_bytes=32 * 1024 * 1024),
    )(patches, emb_pe, prep["conv_w"], prep["conv_b"],
      prep["w_in"], prep["b_in"], prep["w_out"], prep["b_out"],
      prep["g1"], prep["be1"], prep["w1"], prep["b1"], prep["w2"], prep["b2"],
      prep["g2"], prep["be2"],
      wg_in[0], s_in[0], wg_in[1], s_in[1],
      prep["w_o1t"], prep["w_o1h"], prep["b_o1"], prep["w_mean"],
      y_col, std_col, mask_col)
    return {"mae": mae[0, 0]}


# =========================== deterministic init ===========================

def init_params(key, T):
    keys = iter(jax.random.split(key, 64))

    def nrm(shape, scale=0.1):
        return scale * jax.random.normal(next(keys), shape, jnp.float32)

    params = {}
    params["embeddings"] = [nrm((s, EMB), 1.0) for s in SIZES]
    params["conv_w"] = nrm((KSIZE, NKERNEL))          # conv weight, (K, out_ch) layout
    params["conv_b"] = nrm((1, NKERNEL))

    E = NUM_FEATS
    layers = []
    for _ in range(NLAYERS):
        layers.append(dict(
            w_in=nrm((E, 3 * E)), b_in=nrm((1, 3 * E)),
            w_out=nrm((E, E)), b_out=nrm((1, E)),
            g1=jnp.ones((1, E), jnp.float32), be1=jnp.zeros((1, E), jnp.float32),
            w1=nrm((E, NHID)), b1=nrm((1, NHID)),
            w2=nrm((NHID, E)), b2=nrm((1, E)),
            g2=jnp.ones((1, E), jnp.float32), be2=jnp.zeros((1, E), jnp.float32),
        ))
    params["layers"] = layers

    F = 3 * len(SIZES) + NUM_FEATS                    # 102
    params["w_o1"] = nrm((F, HIDDEN))
    params["b_o1"] = nrm((1, HIDDEN))
    params["w_head"] = nrm((HIDDEN, 2))               # cols: [mean head, std head]
    params["b_head"] = nrm((1, 2))

    res = nrm((T, SIZES[0], SIZES[1]), 1.0)
    keep = (jax.random.uniform(next(keys), res.shape) > 0.1).astype(jnp.float32)
    params["residuals"] = res * keep                  # some exact zeros to exercise the w/1000 path
    return params


if __name__ == "__main__":
    B, T = 4, 16
    key = jax.random.PRNGKey(0)
    kparam, kdata = jax.random.split(key)
    params = init_params(kparam, T)

    # one-time prep (weight padding/stacking/bf16 cast, pos-enc) — NOT per call
    prep = prepare_model(params, T)
    prep = jax.tree_util.tree_map(jnp.asarray, prep)

    k1, k2, k3, k4, k5, k6, k7 = jax.random.split(kdata, 7)
    in_series = jax.random.normal(k1, (B, T), jnp.float32)
    out_series = jax.random.normal(k2, (B, T), jnp.float32)
    mask = jax.random.uniform(k3, (B, T)) > 0.3
    ctx_idx = jnp.stack([jax.random.randint(k4, (B,), 0, SIZES[0]),
                         jax.random.randint(k5, (B,), 0, SIZES[1])], axis=1).astype(jnp.int32)
    ctx_mean = jax.random.normal(k6, (B,), jnp.float32)
    ctx_std = jnp.abs(jax.random.normal(k7, (B,), jnp.float32)) + 0.5

    fwd = jax.jit(our_model_forward)
    out = fwd(prep, in_series, out_series, mask, [ctx_idx, ctx_mean, ctx_std])
    jax.block_until_ready(out["mae"])
    print("KERNEL_OK")
</pallas_src>

<mosaic_0001>
module attributes {stable_mosaic.version = 11 : i64} {
  func.func @fused_forward_kernel(%arg0: i32, %arg1: memref<64x16xf32, #tpu.memory_space<vmem>>, %arg2: memref<64x128xf32, #tpu.memory_space<vmem>>, %arg3: memref<16x128xbf16, #tpu.memory_space<vmem>>, %arg4: memref<1x128xf32, #tpu.memory_space<vmem>>, %arg5: memref<1x128x768xbf16, #tpu.memory_space<vmem>>, %arg6: memref<1x1x768xf32, #tpu.memory_space<vmem>>, %arg7: memref<1x256x128xbf16, #tpu.memory_space<vmem>>, %arg8: memref<1x1x128xf32, #tpu.memory_space<vmem>>, %arg9: memref<1x1x128xf32, #tpu.memory_space<vmem>>, %arg10: memref<1x1x128xf32, #tpu.memory_space<vmem>>, %arg11: memref<1x128x128xbf16, #tpu.memory_space<vmem>>, %arg12: memref<1x1x128xf32, #tpu.memory_space<vmem>>, %arg13: memref<1x128x128xbf16, #tpu.memory_space<vmem>>, %arg14: memref<1x1x128xf32, #tpu.memory_space<vmem>>, %arg15: memref<1x1x128xf32, #tpu.memory_space<vmem>>, %arg16: memref<1x1x128xf32, #tpu.memory_space<vmem>>, %arg17: memref<64x20xf32, #tpu.memory_space<vmem>>, %arg18: memref<64x20xf32, #tpu.memory_space<vmem>>, %arg19: memref<64x20xf32, #tpu.memory_space<vmem>>, %arg20: memref<64x20xf32, #tpu.memory_space<vmem>>, %arg21: memref<8x128xf32, #tpu.memory_space<vmem>>, %arg22: memref<128x128xbf16, #tpu.memory_space<vmem>>, %arg23: memref<1x128xf32, #tpu.memory_space<vmem>>, %arg24: memref<1x128xf32, #tpu.memory_space<vmem>>, %arg25: memref<64x1xf32, #tpu.memory_space<vmem>>, %arg26: memref<64x1xf32, #tpu.memory_space<vmem>>, %arg27: memref<64x1xf32, #tpu.memory_space<vmem>>, %arg28: memref<1x1xf32, #tpu.memory_space<vmem>>, %arg29: memref<64x128xf32, #tpu.memory_space<vmem>>) attributes {dimension_semantics = [#tpu.dimension_semantics<arbitrary>], iteration_bounds = array<i64: 4>, scalar_prefetch = 0 : i64, scratch_operands = 1 : i64, tpu.core_type = #tpu.core_type<tc>, window_params = [{pipeline_mode = #tpu.pipeline_mode<synchronous>, transform_indices = @transform_0, window_bounds = array<i64: 64, 16>}, {pipeline_mode = #tpu.pipeline_mode<synchronous>, transform_indices = @transform_1, window_bounds = array<i64: 64, 128>}, {pipeline_mode = #tpu.pipeline_mode<synchronous>, transform_indices = @transform_2, window_bounds = array<i64: 16, 128>}, {pipeline_mode = #tpu.pipeline_mode<synchronous>, transform_indices = @transform_3, window_bounds = array<i64: 1, 128>}, {transform_indices = @transform_4, window_bounds = array<i64: 1, 128, 768>}, {transform_indices = @transform_5, window_bounds = array<i64: 1, 1, 768>}, {transform_indices = @transform_6, window_bounds = array<i64: 1, 256, 128>}, {transform_indices = @transform_7, window_bounds = array<i64: 1, 1, 128>}, {transform_indices = @transform_8, window_bounds = array<i64: 1, 1, 128>}, {transform_indices = @transform_9, window_bounds = array<i64: 1, 1, 128>}, {transform_indices = @transform_10, window_bounds = array<i64: 1, 128, 128>}, {transform_indices = @transform_11, window_bounds = array<i64: 1, 1, 128>}, {transform_indices = @transform_12, window_bounds = array<i64: 1, 128, 128>}, {transform_indices = @transform_13, window_bounds = array<i64: 1, 1, 128>}, {transform_indices = @transform_14, window_bounds = array<i64: 1, 1, 128>}, {transform_indices = @transform_15, window_bounds = array<i64: 1, 1, 128>}, {pipeline_mode = #tpu.pipeline_mode<synchronous>, transform_indices = @transform_16, window_bounds = array<i64: 64, 20>}, {pipeline_mode = #tpu.pipeline_mode<synchronous>, transform_indices = @transform_17, window_bounds = array<i64: 64, 20>}, {pipeline_mode = #tpu.pipeline_mode<synchronous>, transform_indices = @transform_18, window_bounds = array<i64: 64, 20>}, {pipeline_mode = #tpu.pipeline_mode<synchronous>, transform_indices = @transform_19, window_bounds = array<i64: 64, 20>}, {pipeline_mode = #tpu.pipeline_mode<synchronous>, transform_indices = @transform_20, window_bounds = array<i64: 8, 128>}, {pipeline_mode = #tpu.pipeline_mode<synchronous>, transform_indices = @transform_21, window_bounds = array<i64: 128, 128>}, {pipeline_mode = #tpu.pipeline_mode<synchronous>, transform_indices = @transform_22, window_bounds = array<i64: 1, 128>}, {pipeline_mode = #tpu.pipeline_mode<synchronous>, transform_indices = @transform_23, window_bounds = array<i64: 1, 128>}, {pipeline_mode = #tpu.pipeline_mode<synchronous>, transform_indices = @transform_24, window_bounds = array<i64: 64, 1>}, {pipeline_mode = #tpu.pipeline_mode<synchronous>, transform_indices = @transform_25, window_bounds = array<i64: 64, 1>}, {pipeline_mode = #tpu.pipeline_mode<synchronous>, transform_indices = @transform_26, window_bounds = array<i64: 64, 1>}, {pipeline_mode = #tpu.pipeline_mode<synchronous>, transform_indices = @transform_27, window_bounds = array<i64: 1, 1>}]} {
    %c0_i32 = arith.constant 0 : i32
    %0 = arith.cmpi eq, %arg0, %c0_i32 : i32
    %1 = arith.extui %0 : i1 to i32
    %c0_i32_0 = arith.constant 0 : i32
    %2 = arith.cmpi ne, %1, %c0_i32_0 : i32
    scf.if %2 {
      %c0_100 = arith.constant 0 : index
      %c0_101 = arith.constant 0 : index
      %186 = vector.load %arg1[%c0_100, %c0_101] : memref<64x16xf32, #tpu.memory_space<vmem>>, vector<64x16xf32>
      %187 = arith.truncf %186 : vector<64x16xf32> to vector<64x16xbf16>
      %c0_102 = arith.constant 0 : index
      %c0_103 = arith.constant 0 : index
      %188 = vector.load %arg3[%c0_102, %c0_103] : memref<16x128xbf16, #tpu.memory_space<vmem>>, vector<16x128xbf16>
      %cst_104 = arith.constant dense<0.000000e+00> : vector<64x128xf32>
      %189 = tpu.matmul %187, %188, %cst_104 {dimension_numbers = #tpu.dot_dimension_numbers<[1], [0], [0], [1], [0, 0, 1, 1], [], []>} : vector<64x16xbf16>, vector<16x128xbf16>, vector<64x128xf32> -> vector<64x128xf32>
      %c0_105 = arith.constant 0 : index
      %c0_106 = arith.constant 0 : index
      %190 = vector.load %arg4[%c0_105, %c0_106] : memref<1x128xf32, #tpu.memory_space<vmem>>, vector<1x128xf32>
      %191 = vector.broadcast %190 : vector<1x128xf32> to vector<64x128xf32>
      %192 = arith.addf %189, %191 : vector<64x128xf32>
      %c0_107 = arith.constant 0 : index
      %c0_108 = arith.constant 0 : index
      %193 = vector.load %arg2[%c0_107, %c0_108] : memref<64x128xf32, #tpu.memory_space<vmem>>, vector<64x128xf32>
      %194 = arith.addf %192, %193 : vector<64x128xf32>
      %c0_109 = arith.constant 0 : index
      %c0_110 = arith.constant 0 : index
      %195 = vector.load %arg29[%c0_109, %c0_110] : memref<64x128xf32, #tpu.memory_space<vmem>>, vector<64x128xf32>
      tpu.vector_store %arg29[%c0_109, %c0_110], %194 {strides = array<i32>} : memref<64x128xf32, #tpu.memory_space<vmem>>, vector<64x128xf32>,
    } else {
    }
    %3 = tpu.iota {dimensions = array<i32: 1>} : vector<1x128xi32>
    %c96_i32 = arith.constant 96 : i32
    %4 = vector.broadcast %c96_i32 : i32 to vector<1x128xi32>
    %5 = arith.cmpi slt, %3, %4 : vector<1x128xi32>
    %6 = tpu.iota {dimensions = array<i32: 0>} : vector<64x64xi32>
    %7 = tpu.iota {dimensions = array<i32: 1>} : vector<64x64xi32>
    %c2_i32 = arith.constant 2 : i32
    %8 = vector.broadcast %c2_i32 : i32 to vector<64x64xi32>
    %9 = arith.shrsi %6, %8 : vector<64x64xi32>
    %c2_i32_1 = arith.constant 2 : i32
    %10 = vector.broadcast %c2_i32_1 : i32 to vector<64x64xi32>
    %11 = arith.shrsi %7, %10 : vector<64x64xi32>
    %12 = arith.cmpi eq, %9, %11 : vector<64x64xi32>
    %c0 = arith.constant 0 : index
    %c0_2 = arith.constant 0 : index
    %13 = vector.load %arg29[%c0, %c0_2] : memref<64x128xf32, #tpu.memory_space<vmem>>, vector<64x128xf32>
    %14 = arith.truncf %13 : vector<64x128xf32> to vector<64x128xbf16>
    %c0_3 = arith.constant 0 : index
    %c0_4 = arith.constant 0 : index
    %c0_5 = arith.constant 0 : index
    %15 = vector.load %arg5[%c0_3, %c0_4, %c0_5] : memref<1x128x768xbf16, #tpu.memory_space<vmem>>, vector<1x128x128xbf16>
    %16 = vector.shape_cast %15 : vector<1x128x128xbf16> to vector<128x128xbf16>
    %cst = arith.constant dense<0.000000e+00> : vector<64x128xf32>
    %17 = tpu.matmul %14, %16, %cst {dimension_numbers = #tpu.dot_dimension_numbers<[1], [0], [0], [1], [0, 0, 1, 1], [], []>} : vector<64x128xbf16>, vector<128x128xbf16>, vector<64x128xf32> -> vector<64x128xf32>
    %c0_6 = arith.constant 0 : index
    %c0_7 = arith.constant 0 : index
    %c0_8 = arith.constant 0 : index
    %18 = vector.load %arg6[%c0_6, %c0_7, %c0_8] : memref<1x1x768xf32, #tpu.memory_space<vmem>>, vector<1x1x128xf32>
    %19 = vector.shape_cast %18 : vector<1x1x128xf32> to vector<1x128xf32>
    %20 = vector.broadcast %19 : vector<1x128xf32> to vector<64x128xf32>
    %21 = arith.addf %17, %20 : vector<64x128xf32>
    %c0_9 = arith.constant 0 : index
    %c0_10 = arith.constant 0 : index
    %c256 = arith.constant 256 : index
    %22 = vector.load %arg5[%c0_9, %c0_10, %c256] : memref<1x128x768xbf16, #tpu.memory_space<vmem>>, vector<1x128x128xbf16>
    %23 = vector.shape_cast %22 : vector<1x128x128xbf16> to vector<128x128xbf16>
    %cst_11 = arith.constant dense<0.000000e+00> : vector<64x128xf32>
    %24 = tpu.matmul %14, %23, %cst_11 {dimension_numbers = #tpu.dot_dimension_numbers<[1], [0], [0], [1], [0, 0, 1, 1], [], []>} : vector<64x128xbf16>, vector<128x128xbf16>, vector<64x128xf32> -> vector<64x128xf32>
    %c0_12 = arith.constant 0 : index
    %c0_13 = arith.constant 0 : index
    %c256_14 = arith.constant 256 : index
    %25 = vector.load %arg6[%c0_12, %c0_13, %c256_14] : memref<1x1x768xf32, #tpu.memory_space<vmem>>, vector<1x1x128xf32>
    %26 = vector.shape_cast %25 : vector<1x1x128xf32> to vector<1x128xf32>
    %27 = vector.broadcast %26 : vector<1x128xf32> to vector<64x128xf32>
    %28 = arith.addf %24, %27 : vector<64x128xf32>
    %c0_15 = arith.constant 0 : index
    %c0_16 = arith.constant 0 : index
    %c512 = arith.constant 512 : index
    %29 = vector.load %arg5[%c0_15, %c0_16, %c512] : memref<1x128x768xbf16, #tpu.memory_space<vmem>>, vector<1x128x128xbf16>
    %30 = vector.shape_cast %29 : vector<1x128x128xbf16> to vector<128x128xbf16>
    %cst_17 = arith.constant dense<0.000000e+00> : vector<64x128xf32>
    %31 = tpu.matmul %14, %30, %cst_17 {dimension_numbers = #tpu.dot_dimension_numbers<[1], [0], [0], [1], [0, 0, 1, 1], [], []>} : vector<64x128xbf16>, vector<128x128xbf16>, vector<64x128xf32> -> vector<64x128xf32>
    %c0_18 = arith.constant 0 : index
    %c0_19 = arith.constant 0 : index
    %c512_20 = arith.constant 512 : index
    %32 = vector.load %arg6[%c0_18, %c0_19, %c512_20] : memref<1x1x768xf32, #tpu.memory_space<vmem>>, vector<1x1x128xf32>
    %33 = vector.shape_cast %32 : vector<1x1x128xf32> to vector<1x128xf32>
    %34 = vector.broadcast %33 : vector<1x128xf32> to vector<64x128xf32>
    %35 = arith.addf %31, %34 : vector<64x128xf32>
    %36 = arith.truncf %21 : vector<64x128xf32> to vector<64x128xbf16>
    %37 = arith.truncf %28 : vector<64x128xf32> to vector<64x128xbf16>
    %cst_21 = arith.constant dense<0.000000e+00> : vector<64x64xf32>
    %38 = tpu.matmul %36, %37, %cst_21 {dimension_numbers = #tpu.dot_dimension_numbers<[1], [1], [0], [0], [0, 0, 1, 0], [], []>} : vector<64x128xbf16>, vector<64x128xbf16>, vector<64x64xf32> -> vector<64x64xf32>
    %cst_22 = arith.constant 0.144337565 : f32
    %39 = vector.broadcast %cst_22 : f32 to vector<64x64xf32>
    %40 = arith.mulf %38, %39 : vector<64x64xf32>
    %cst_23 = arith.constant -1.000000e+30 : f32
    %41 = vector.broadcast %cst_23 : f32 to vector<64x64xf32>
    %42 = arith.select %12, %40, %41 : vector<64x64xi1>, vector<64x64xf32>
    %cst_24 = arith.constant dense<0xFF800000> : vector<64xf32>
    %43 = vector.multi_reduction <maximumf>, %42, %cst_24 [1] : vector<64x64xf32> to vector<64xf32>
    %44 = vector.shape_cast %43 : vector<64xf32> to vector<64x1xf32>
    %45 = vector.broadcast %44 : vector<64x1xf32> to vector<64x64xf32>
    %46 = arith.subf %42, %45 : vector<64x64xf32>
    %47 = math.exp %46 : vector<64x64xf32>
    %cst_25 = arith.constant dense<0.000000e+00> : vector<64xf32>
    %48 = vector.multi_reduction <add>, %47, %cst_25 [1] : vector<64x64xf32> to vector<64xf32>
    %49 = vector.shape_cast %48 : vector<64xf32> to vector<64x1xf32>
    %50 = tpu.reciprocal %49 {approx = true} : vector<64x1xf32> -> vector<64x1xf32>
    %51 = vector.broadcast %50 : vector<64x1xf32> to vector<64x64xf32>
    %52 = arith.mulf %47, %51 : vector<64x64xf32>
    %53 = arith.truncf %52 : vector<64x64xf32> to vector<64x64xbf16>
    %54 = arith.truncf %35 : vector<64x128xf32> to vector<64x128xbf16>
    %cst_26 = arith.constant dense<0.000000e+00> : vector<64x128xf32>
    %55 = tpu.matmul %53, %54, %cst_26 {dimension_numbers = #tpu.dot_dimension_numbers<[1], [0], [0], [1], [0, 0, 1, 1], [], []>} : vector<64x64xbf16>, vector<64x128xbf16>, vector<64x128xf32> -> vector<64x128xf32>
    %c0_27 = arith.constant 0 : index
    %c0_28 = arith.constant 0 : index
    %c128 = arith.constant 128 : index
    %56 = vector.load %arg5[%c0_27, %c0_28, %c128] : memref<1x128x768xbf16, #tpu.memory_space<vmem>>, vector<1x128x128xbf16>
    %57 = vector.shape_cast %56 : vector<1x128x128xbf16> to vector<128x128xbf16>
    %cst_29 = arith.constant dense<0.000000e+00> : vector<64x128xf32>
    %58 = tpu.matmul %14, %57, %cst_29 {dimension_numbers = #tpu.dot_dimension_numbers<[1], [0], [0], [1], [0, 0, 1, 1], [], []>} : vector<64x128xbf16>, vector<128x128xbf16>, vector<64x128xf32> -> vector<64x128xf32>
    %c0_30 = arith.constant 0 : index
    %c0_31 = arith.constant 0 : index
    %c128_32 = arith.constant 128 : index
    %59 = vector.load %arg6[%c0_30, %c0_31, %c128_32] : memref<1x1x768xf32, #tpu.memory_space<vmem>>, vector<1x1x128xf32>
    %60 = vector.shape_cast %59 : vector<1x1x128xf32> to vector<1x128xf32>
    %61 = vector.broadcast %60 : vector<1x128xf32> to vector<64x128xf32>
    %62 = arith.addf %58, %61 : vector<64x128xf32>
    %c0_33 = arith.constant 0 : index
    %c0_34 = arith.constant 0 : index
    %c384 = arith.constant 384 : index
    %63 = vector.load %arg5[%c0_33, %c0_34, %c384] : memref<1x128x768xbf16, #tpu.memory_space<vmem>>, vector<1x128x128xbf16>
    %64 = vector.shape_cast %63 : vector<1x128x128xbf16> to vector<128x128xbf16>
    %cst_35 = arith.constant dense<0.000000e+00> : vector<64x128xf32>
    %65 = tpu.matmul %14, %64, %cst_35 {dimension_numbers = #tpu.dot_dimension_numbers<[1], [0], [0], [1], [0, 0, 1, 1], [], []>} : vector<64x128xbf16>, vector<128x128xbf16>, vector<64x128xf32> -> vector<64x128xf32>
    %c0_36 = arith.constant 0 : index
    %c0_37 = arith.constant 0 : index
    %c384_38 = arith.constant 384 : index
    %66 = vector.load %arg6[%c0_36, %c0_37, %c384_38] : memref<1x1x768xf32, #tpu.memory_space<vmem>>, vector<1x1x128xf32>
    %67 = vector.shape_cast %66 : vector<1x1x128xf32> to vector<1x128xf32>
    %68 = vector.broadcast %67 : vector<1x128xf32> to vector<64x128xf32>
    %69 = arith.addf %65, %68 : vector<64x128xf32>
    %c0_39 = arith.constant 0 : index
    %c0_40 = arith.constant 0 : index
    %c640 = arith.constant 640 : index
    %70 = vector.load %arg5[%c0_39, %c0_40, %c640] : memref<1x128x768xbf16, #tpu.memory_space<vmem>>, vector<1x128x128xbf16>
    %71 = vector.shape_cast %70 : vector<1x128x128xbf16> to vector<128x128xbf16>
    %cst_41 = arith.constant dense<0.000000e+00> : vector<64x128xf32>
    %72 = tpu.matmul %14, %71, %cst_41 {dimension_numbers = #tpu.dot_dimension_numbers<[1], [0], [0], [1], [0, 0, 1, 1], [], []>} : vector<64x128xbf16>, vector<128x128xbf16>, vector<64x128xf32> -> vector<64x128xf32>
    %c0_42 = arith.constant 0 : index
    %c0_43 = arith.constant 0 : index
    %c640_44 = arith.constant 640 : index
    %73 = vector.load %arg6[%c0_42, %c0_43, %c640_44] : memref<1x1x768xf32, #tpu.memory_space<vmem>>, vector<1x1x128xf32>
    %74 = vector.shape_cast %73 : vector<1x1x128xf32> to vector<1x128xf32>
    %75 = vector.broadcast %74 : vector<1x128xf32> to vector<64x128xf32>
    %76 = arith.addf %72, %75 : vector<64x128xf32>
    %77 = arith.truncf %62 : vector<64x128xf32> to vector<64x128xbf16>
    %78 = arith.truncf %69 : vector<64x128xf32> to vector<64x128xbf16>
    %cst_45 = arith.constant dense<0.000000e+00> : vector<64x64xf32>
    %79 = tpu.matmul %77, %78, %cst_45 {dimension_numbers = #tpu.dot_dimension_numbers<[1], [1], [0], [0], [0, 0, 1, 0], [], []>} : vector<64x128xbf16>, vector<64x128xbf16>, vector<64x64xf32> -> vector<64x64xf32>
    %cst_46 = arith.constant 0.144337565 : f32
    %80 = vector.broadcast %cst_46 : f32 to vector<64x64xf32>
    %81 = arith.mulf %79, %80 : vector<64x64xf32>
    %cst_47 = arith.constant -1.000000e+30 : f32
    %82 = vector.broadcast %cst_47 : f32 to vector<64x64xf32>
    %83 = arith.select %12, %81, %82 : vector<64x64xi1>, vector<64x64xf32>
    %cst_48 = arith.constant dense<0xFF800000> : vector<64xf32>
    %84 = vector.multi_reduction <maximumf>, %83, %cst_48 [1] : vector<64x64xf32> to vector<64xf32>
    %85 = vector.shape_cast %84 : vector<64xf32> to vector<64x1xf32>
    %86 = vector.broadcast %85 : vector<64x1xf32> to vector<64x64xf32>
    %87 = arith.subf %83, %86 : vector<64x64xf32>
    %88 = math.exp %87 : vector<64x64xf32>
    %cst_49 = arith.constant dense<0.000000e+00> : vector<64xf32>
    %89 = vector.multi_reduction <add>, %88, %cst_49 [1] : vector<64x64xf32> to vector<64xf32>
    %90 = vector.shape_cast %89 : vector<64xf32> to vector<64x1xf32>
    %91 = tpu.reciprocal %90 {approx = true} : vector<64x1xf32> -> vector<64x1xf32>
    %92 = vector.broadcast %91 : vector<64x1xf32> to vector<64x64xf32>
    %93 = arith.mulf %88, %92 : vector<64x64xf32>
    %94 = arith.truncf %93 : vector<64x64xf32> to vector<64x64xbf16>
    %95 = arith.truncf %76 : vector<64x128xf32> to vector<64x128xbf16>
    %cst_50 = arith.constant dense<0.000000e+00> : vector<64x128xf32>
    %96 = tpu.matmul %94, %95, %cst_50 {dimension_numbers = #tpu.dot_dimension_numbers<[1], [0], [0], [1], [0, 0, 1, 1], [], []>} : vector<64x64xbf16>, vector<64x128xbf16>, vector<64x128xf32> -> vector<64x128xf32>
    %97 = tpu.concatenate %55, %96 in 1 : vector<64x128xf32>, vector<64x128xf32> -> vector<64x256xf32>
    %98 = arith.truncf %97 : vector<64x256xf32> to vector<64x256xbf16>
    %c0_51 = arith.constant 0 : index
    %c0_52 = arith.constant 0 : index
    %c0_53 = arith.constant 0 : index
    %99 = vector.load %arg7[%c0_51, %c0_52, %c0_53] : memref<1x256x128xbf16, #tpu.memory_space<vmem>>, vector<1x256x128xbf16>
    %100 = vector.shape_cast %99 : vector<1x256x128xbf16> to vector<256x128xbf16>
    %cst_54 = arith.constant dense<0.000000e+00> : vector<64x128xf32>
    %101 = tpu.matmul %98, %100, %cst_54 {dimension_numbers = #tpu.dot_dimension_numbers<[1], [0], [0], [1], [0, 0, 1, 1], [], []>} : vector<64x256xbf16>, vector<256x128xbf16>, vector<64x128xf32> -> vector<64x128xf32>
    %102 = arith.addf %13, %101 : vector<64x128xf32>
    %c0_55 = arith.constant 0 : index
    %c0_56 = arith.constant 0 : index
    %c0_57 = arith.constant 0 : index
    %103 = vector.load %arg8[%c0_55, %c0_56, %c0_57] : memref<1x1x128xf32, #tpu.memory_space<vmem>>, vector<1x1x128xf32>
    %104 = vector.shape_cast %103 : vector<1x1x128xf32> to vector<1x128xf32>
    %105 = vector.broadcast %104 : vector<1x128xf32> to vector<64x128xf32>
    %106 = arith.addf %102, %105 : vector<64x128xf32>
    %c0_58 = arith.constant 0 : index
    %c0_59 = arith.constant 0 : index
    %c0_60 = arith.constant 0 : index
    %107 = vector.load %arg9[%c0_58, %c0_59, %c0_60] : memref<1x1x128xf32, #tpu.memory_space<vmem>>, vector<1x1x128xf32>
    %108 = vector.shape_cast %107 : vector<1x1x128xf32> to vector<1x128xf32>
    %c0_61 = arith.constant 0 : index
    %c0_62 = arith.constant 0 : index
    %c0_63 = arith.constant 0 : index
    %109 = vector.load %arg10[%c0_61, %c0_62, %c0_63] : memref<1x1x128xf32, #tpu.memory_space<vmem>>, vector<1x1x128xf32>
    %110 = vector.shape_cast %109 : vector<1x1x128xf32> to vector<1x128xf32>
    %cst_64 = arith.constant dense<0.000000e+00> : vector<64xf32>
    %111 = vector.multi_reduction <add>, %106, %cst_64 [1] : vector<64x128xf32> to vector<64xf32>
    %112 = vector.shape_cast %111 : vector<64xf32> to vector<64x1xf32>
    %cst_65 = arith.constant 0.010416667 : f32
    %113 = vector.broadcast %cst_65 : f32 to vector<64x1xf32>
    %114 = arith.mulf %112, %113 : vector<64x1xf32>
    %115 = vector.broadcast %114 : vector<64x1xf32> to vector<64x128xf32>
    %116 = arith.subf %106, %115 : vector<64x128xf32>
    %cst_66 = arith.constant 0.000000e+00 : f32
    %117 = vector.shape_cast %5 : vector<1x128xi1> to vector<1x128xi1>
    %118 = vector.broadcast %117 : vector<1x128xi1> to vector<64x128xi1>
    %119 = vector.broadcast %cst_66 : f32 to vector<64x128xf32>
    %120 = arith.select %118, %116, %119 : vector<64x128xi1>, vector<64x128xf32>
    %121 = arith.mulf %120, %120 : vector<64x128xf32>
    %cst_67 = arith.constant dense<0.000000e+00> : vector<64xf32>
    %122 = vector.multi_reduction <add>, %121, %cst_67 [1] : vector<64x128xf32> to vector<64xf32>
    %123 = vector.shape_cast %122 : vector<64xf32> to vector<64x1xf32>
    %cst_68 = arith.constant 0.010416667 : f32
    %124 = vector.broadcast %cst_68 : f32 to vector<64x1xf32>
    %125 = arith.mulf %123, %124 : vector<64x1xf32>
    %cst_69 = arith.constant 9.99999974E-6 : f32
    %126 = vector.broadcast %cst_69 : f32 to vector<64x1xf32>
    %127 = arith.addf %125, %126 : vector<64x1xf32>
    %128 = math.rsqrt %127 : vector<64x1xf32>
    %129 = vector.broadcast %128 : vector<64x1xf32> to vector<64x128xf32>
    %130 = arith.mulf %120, %129 : vector<64x128xf32>
    %131 = vector.broadcast %108 : vector<1x128xf32> to vector<64x128xf32>
    %132 = arith.mulf %130, %131 : vector<64x128xf32>
    %133 = vector.broadcast %110 : vector<1x128xf32> to vector<64x128xf32>
    %134 = arith.addf %132, %133 : vector<64x128xf32>
    %135 = arith.truncf %134 : vector<64x128xf32> to vector<64x128xbf16>
    %c0_70 = arith.constant 0 : index
    %c0_71 = arith.constant 0 : index
    %c0_72 = arith.constant 0 : index
    %136 = vector.load %arg11[%c0_70, %c0_71, %c0_72] : memref<1x128x128xbf16, #tpu.memory_space<vmem>>, vector<1x128x128xbf16>
    %137 = vector.shape_cast %136 : vector<1x128x128xbf16> to vector<128x128xbf16>
    %cst_73 = arith.constant dense<0.000000e+00> : vector<64x128xf32>
    %138 = tpu.matmul %135, %137, %cst_73 {dimension_numbers = #tpu.dot_dimension_numbers<[1], [0], [0], [1], [0, 0, 1, 1], [], []>} : vector<64x128xbf16>, vector<128x128xbf16>, vector<64x128xf32> -> vector<64x128xf32>
    %c0_74 = arith.constant 0 : index
    %c0_75 = arith.constant 0 : index
    %c0_76 = arith.constant 0 : index
    %139 = vector.load %arg12[%c0_74, %c0_75, %c0_76] : memref<1x1x128xf32, #tpu.memory_space<vmem>>, vector<1x1x128xf32>
    %140 = vector.shape_cast %139 : vector<1x1x128xf32> to vector<1x128xf32>
    %141 = vector.broadcast %140 : vector<1x128xf32> to vector<64x128xf32>
    %142 = arith.addf %138, %141 : vector<64x128xf32>
    %cst_77 = arith.constant 0.000000e+00 : f32
    %143 = vector.broadcast %cst_77 : f32 to vector<64x128xf32>
    %144 = arith.maximumf %142, %143 : vector<64x128xf32>
    %145 = arith.truncf %144 : vector<64x128xf32> to vector<64x128xbf16>
    %c0_78 = arith.constant 0 : index
    %c0_79 = arith.constant 0 : index
    %c0_80 = arith.constant 0 : index
    %146 = vector.load %arg13[%c0_78, %c0_79, %c0_80] : memref<1x128x128xbf16, #tpu.memory_space<vmem>>, vector<1x128x128xbf16>
    %147 = vector.shape_cast %146 : vector<1x128x128xbf16> to vector<128x128xbf16>
    %cst_81 = arith.constant dense<0.000000e+00> : vector<64x128xf32>
    %148 = tpu.matmul %145, %147, %cst_81 {dimension_numbers = #tpu.dot_dimension_numbers<[1], [0], [0], [1], [0, 0, 1, 1], [], []>} : vector<64x128xbf16>, vector<128x128xbf16>, vector<64x128xf32> -> vector<64x128xf32>
    %c0_82 = arith.constant 0 : index
    %c0_83 = arith.constant 0 : index
    %c0_84 = arith.constant 0 : index
    %149 = vector.load %arg14[%c0_82, %c0_83, %c0_84] : memref<1x1x128xf32, #tpu.memory_space<vmem>>, vector<1x1x128xf32>
    %150 = vector.shape_cast %149 : vector<1x1x128xf32> to vector<1x128xf32>
    %151 = vector.broadcast %150 : vector<1x128xf32> to vector<64x128xf32>
    %152 = arith.addf %148, %151 : vector<64x128xf32>
    %153 = arith.addf %134, %152 : vector<64x128xf32>
    %c0_85 = arith.constant 0 : index
    %c0_86 = arith.constant 0 : index
    %c0_87 = arith.constant 0 : index
    %154 = vector.load %arg15[%c0_85, %c0_86, %c0_87] : memref<1x1x128xf32, #tpu.memory_space<vmem>>, vector<1x1x128xf32>
    %155 = vector.shape_cast %154 : vector<1x1x128xf32> to vector<1x128xf32>
    %c0_88 = arith.constant 0 : index
    %c0_89 = arith.constant 0 : index
    %c0_90 = arith.constant 0 : index
    %156 = vector.load %arg16[%c0_88, %c0_89, %c0_90] : memref<1x1x128xf32, #tpu.memory_space<vmem>>, vector<1x1x128xf32>
    %157 = vector.shape_cast %156 : vector<1x1x128xf32> to vector<1x128xf32>
    %cst_91 = arith.constant dense<0.000000e+00> : vector<64xf32>
    %158 = vector.multi_reduction <add>, %153, %cst_91 [1] : vector<64x128xf32> to vector<64xf32>
    %159 = vector.shape_cast %158 : vector<64xf32> to vector<64x1xf32>
    %cst_92 = arith.constant 0.010416667 : f32
    %160 = vector.broadcast %cst_92 : f32 to vector<64x1xf32>
    %161 = arith.mulf %159, %160 : vector<64x1xf32>
    %162 = vector.broadcast %161 : vector<64x1xf32> to vector<64x128xf32>
    %163 = arith.subf %153, %162 : vector<64x128xf32>
    %cst_93 = arith.constant 0.000000e+00 : f32
    %164 = vector.shape_cast %5 : vector<1x128xi1> to vector<1x128xi1>
    %165 = vector.broadcast %164 : vector<1x128xi1> to vector<64x128xi1>
    %166 = vector.broadcast %cst_93 : f32 to vector<64x128xf32>
    %167 = arith.select %165, %163, %166 : vector<64x128xi1>, vector<64x128xf32>
    %168 = arith.mulf %167, %167 : vector<64x128xf32>
    %cst_94 = arith.constant dense<0.000000e+00> : vector<64xf32>
    %169 = vector.multi_reduction <add>, %168, %cst_94 [1] : vector<64x128xf32> to vector<64xf32>
    %170 = vector.shape_cast %169 : vector<64xf32> to vector<64x1xf32>
    %cst_95 = arith.constant 0.010416667 : f32
    %171 = vector.broadcast %cst_95 : f32 to vector<64x1xf32>
    %172 = arith.mulf %170, %171 : vector<64x1xf32>
    %cst_96 = arith.constant 9.99999974E-6 : f32
    %173 = vector.broadcast %cst_96 : f32 to vector<64x1xf32>
    %174 = arith.addf %172, %173 : vector<64x1xf32>
    %175 = math.rsqrt %174 : vector<64x1xf32>
    %176 = vector.broadcast %175 : vector<64x1xf32> to vector<64x128xf32>
    %177 = arith.mulf %167, %176 : vector<64x128xf32>
    %178 = vector.broadcast %155 : vector<1x128xf32> to vector<64x128xf32>
    %179 = arith.mulf %177, %178 : vector<64x128xf32>
    %180 = vector.broadcast %157 : vector<1x128xf32> to vector<64x128xf32>
    %181 = arith.addf %179, %180 : vector<64x128xf32>
    %c0_97 = arith.constant 0 : index
    %c0_98 = arith.constant 0 : index
    %182 = vector.load %arg29[%c0_97, %c0_98] : memref<64x128xf32, #tpu.memory_space<vmem>>, vector<64x128xf32>
    tpu.vector_store %arg29[%c0_97, %c0_98], %181 {strides = array<i32>} : memref<64x128xf32, #tpu.memory_space<vmem>>, vector<64x128xf32>,
    %c3_i32 = arith.constant 3 : i32
    %183 = arith.cmpi eq, %arg0, %c3_i32 : i32
    %184 = arith.extui %183 : i1 to i32
    %c0_i32_99 = arith.constant 0 : i32
    %185 = arith.cmpi ne, %184, %c0_i32_99 : i32
    scf.if %185 {
      %cst_100 = arith.constant 0.000000e+00 : f32
      %186 = vector.broadcast %cst_100 : f32 to vector<64x128xf32>
      %187 = arith.maximumf %181, %186 : vector<64x128xf32>
      %c0_101 = arith.constant 0 : index
      %c0_102 = arith.constant 0 : index
      %188 = vector.load %arg17[%c0_101, %c0_102] : memref<64x20xf32, #tpu.memory_space<vmem>>, vector<64x20xf32>
      %c0_103 = arith.constant 0 : index
      %c0_104 = arith.constant 0 : index
      %189 = vector.load %arg18[%c0_103, %c0_104] : memref<64x20xf32, #tpu.memory_space<vmem>>, vector<64x20xf32>
      %cst_105 = arith.constant 0.000000e+00 : f32
      %190 = vector.broadcast %cst_105 : f32 to vector<64x20xf32>
      %191 = arith.cmpf oeq, %189, %190 : vector<64x20xf32>
      %cst_106 = arith.constant 1.000000e+03 : f32
      %192 = vector.broadcast %cst_106 : f32 to vector<64x20xf32>
      %193 = arith.divf %188, %192 : vector<64x20xf32>
      %194 = arith.select %191, %193, %188 : vector<64x20xi1>, vector<64x20xf32>
      %cst_107 = arith.constant dense<0.000000e+00> : vector<64xf32>
      %195 = vector.multi_reduction <add>, %194, %cst_107 [1] : vector<64x20xf32> to vector<64xf32>
      %196 = vector.shape_cast %195 : vector<64xf32> to vector<64x1xf32>
      %197 = arith.mulf %194, %189 : vector<64x20xf32>
      %cst_108 = arith.constant dense<0.000000e+00> : vector<64xf32>
      %198 = vector.multi_reduction <add>, %197, %cst_108 [1] : vector<64x20xf32> to vector<64xf32>
      %199 = vector.shape_cast %198 : vector<64xf32> to vector<64x1xf32>
      %200 = arith.divf %199, %196 : vector<64x1xf32>
      %cst_109 = arith.constant dense<0.000000e+00> : vector<64xf32>
      %201 = vector.multi_reduction <add>, %189, %cst_109 [1] : vector<64x20xf32> to vector<64xf32>
      %202 = vector.shape_cast %201 : vector<64xf32> to vector<64x1xf32>
      %cst_110 = arith.constant 5.000000e-02 : f32
      %203 = vector.broadcast %cst_110 : f32 to vector<64x1xf32>
      %204 = arith.mulf %202, %203 : vector<64x1xf32>
      %205 = vector.broadcast %204 : vector<64x1xf32> to vector<64x20xf32>
      %206 = arith.subf %189, %205 : vector<64x20xf32>
      %207 = arith.mulf %206, %206 : vector<64x20xf32>
      %cst_111 = arith.constant dense<0.000000e+00> : vector<64xf32>
      %208 = vector.multi_reduction <add>, %207, %cst_111 [1] : vector<64x20xf32> to vector<64xf32>
      %209 = vector.shape_cast %208 : vector<64xf32> to vector<64x1xf32>
      %cst_112 = arith.constant 0.0526315793 : f32
      %210 = vector.broadcast %cst_112 : f32 to vector<64x1xf32>
      %211 = arith.mulf %209, %210 : vector<64x1xf32>
      %212 = math.sqrt %211 : vector<64x1xf32>
      %c0_113 = arith.constant 0 : index
      %c0_114 = arith.constant 0 : index
      %213 = vector.load %arg19[%c0_113, %c0_114] : memref<64x20xf32, #tpu.memory_space<vmem>>, vector<64x20xf32>
      %c0_115 = arith.constant 0 : index
      %c0_116 = arith.constant 0 : index
      %214 = vector.load %arg20[%c0_115, %c0_116] : memref<64x20xf32, #tpu.memory_space<vmem>>, vector<64x20xf32>
      %cst_117 = arith.constant 0.000000e+00 : f32
      %215 = vector.broadcast %cst_117 : f32 to vector<64x20xf32>
      %216 = arith.cmpf oeq, %214, %215 : vector<64x20xf32>
      %cst_118 = arith.constant 1.000000e+03 : f32
      %217 = vector.broadcast %cst_118 : f32 to vector<64x20xf32>
      %218 = arith.divf %213, %217 : vector<64x20xf32>
      %219 = arith.select %216, %218, %213 : vector<64x20xi1>, vector<64x20xf32>
      %cst_119 = arith.constant dense<0.000000e+00> : vector<64xf32>
      %220 = vector.multi_reduction <add>, %219, %cst_119 [1] : vector<64x20xf32> to vector<64xf32>
      %221 = vector.shape_cast %220 : vector<64xf32> to vector<64x1xf32>
      %222 = arith.mulf %219, %214 : vector<64x20xf32>
      %cst_120 = arith.constant dense<0.000000e+00> : vector<64xf32>
      %223 = vector.multi_reduction <add>, %222, %cst_120 [1] : vector<64x20xf32> to vector<64xf32>
      %224 = vector.shape_cast %223 : vector<64xf32> to vector<64x1xf32>
      %225 = arith.divf %224, %221 : vector<64x1xf32>
      %cst_121 = arith.constant dense<0.000000e+00> : vector<64xf32>
      %226 = vector.multi_reduction <add>, %214, %cst_121 [1] : vector<64x20xf32> to vector<64xf32>
      %227 = vector.shape_cast %226 : vector<64xf32> to vector<64x1xf32>
      %cst_122 = arith.constant 5.000000e-02 : f32
      %228 = vector.broadcast %cst_122 : f32 to vector<64x1xf32>
      %229 = arith.mulf %227, %228 : vector<64x1xf32>
      %230 = vector.broadcast %229 : vector<64x1xf32> to vector<64x20xf32>
      %231 = arith.subf %214, %230 : vector<64x20xf32>
      %232 = arith.mulf %231, %231 : vector<64x20xf32>
      %cst_123 = arith.constant dense<0.000000e+00> : vector<64xf32>
      %233 = vector.multi_reduction <add>, %232, %cst_123 [1] : vector<64x20xf32> to vector<64xf32>
      %234 = vector.shape_cast %233 : vector<64xf32> to vector<64x1xf32>
      %cst_124 = arith.constant 0.0526315793 : f32
      %235 = vector.broadcast %cst_124 : f32 to vector<64x1xf32>
      %236 = arith.mulf %234, %235 : vector<64x1xf32>
      %237 = math.sqrt %236 : vector<64x1xf32>
      %238 = tpu.iota {dimensions = array<i32: 1>} : vector<64x8xi32>
      %cst_125 = arith.constant 0.000000e+00 : f32
      %239 = vector.broadcast %cst_125 : f32 to vector<64x8xf32>
      %c0_i32_126 = arith.constant 0 : i32
      %240 = vector.broadcast %c0_i32_126 : i32 to vector<64x8xi32>
      %241 = arith.cmpi eq, %238, %240 : vector<64x8xi32>
      %242 = vector.shape_cast %196 : vector<64x1xf32> to vector<64x1xf32>
      %243 = vector.broadcast %242 : vector<64x1xf32> to vector<64x8xf32>
      %244 = arith.select %241, %243, %239 : vector<64x8xi1>, vector<64x8xf32>
      %c1_i32 = arith.constant 1 : i32
      %245 = vector.broadcast %c1_i32 : i32 to vector<64x8xi32>
      %246 = arith.cmpi eq, %238, %245 : vector<64x8xi32>
      %247 = vector.shape_cast %221 : vector<64x1xf32> to vector<64x1xf32>
      %248 = vector.broadcast %247 : vector<64x1xf32> to vector<64x8xf32>
      %249 = arith.select %246, %248, %244 : vector<64x8xi1>, vector<64x8xf32>
      %c2_i32_127 = arith.constant 2 : i32
      %250 = vector.broadcast %c2_i32_127 : i32 to vector<64x8xi32>
      %251 = arith.cmpi eq, %238, %250 : vector<64x8xi32>
      %252 = vector.shape_cast %200 : vector<64x1xf32> to vector<64x1xf32>
      %253 = vector.broadcast %252 : vector<64x1xf32> to vector<64x8xf32>
      %254 = arith.select %251, %253, %249 : vector<64x8xi1>, vector<64x8xf32>
      %c3_i32_128 = arith.constant 3 : i32
      %255 = vector.broadcast %c3_i32_128 : i32 to vector<64x8xi32>
      %256 = arith.cmpi eq, %238, %255 : vector<64x8xi32>
      %257 = vector.shape_cast %225 : vector<64x1xf32> to vector<64x1xf32>
      %258 = vector.broadcast %257 : vector<64x1xf32> to vector<64x8xf32>
      %259 = arith.select %256, %258, %254 : vector<64x8xi1>, vector<64x8xf32>
      %c4_i32 = arith.constant 4 : i32
      %260 = vector.broadcast %c4_i32 : i32 to vector<64x8xi32>
      %261 = arith.cmpi eq, %238, %260 : vector<64x8xi32>
      %262 = vector.shape_cast %212 : vector<64x1xf32> to vector<64x1xf32>
      %263 = vector.broadcast %262 : vector<64x1xf32> to vector<64x8xf32>
      %264 = arith.select %261, %263, %259 : vector<64x8xi1>, vector<64x8xf32>
      %c5_i32 = arith.constant 5 : i32
      %265 = vector.broadcast %c5_i32 : i32 to vector<64x8xi32>
      %266 = arith.cmpi eq, %238, %265 : vector<64x8xi32>
      %267 = vector.shape_cast %237 : vector<64x1xf32> to vector<64x1xf32>
      %268 = vector.broadcast %267 : vector<64x1xf32> to vector<64x8xf32>
      %269 = arith.select %266, %268, %264 : vector<64x8xi1>, vector<64x8xf32>
      %270 = arith.truncf %187 : vector<64x128xf32> to vector<64x128xbf16>
      %c0_129 = arith.constant 0 : index
      %c0_130 = arith.constant 0 : index
      %271 = vector.load %arg22[%c0_129, %c0_130] : memref<128x128xbf16, #tpu.memory_space<vmem>>, vector<128x128xbf16>
      %cst_131 = arith.constant dense<0.000000e+00> : vector<64x128xf32>
      %272 = tpu.matmul %270, %271, %cst_131 {dimension_numbers = #tpu.dot_dimension_numbers<[1], [0], [0], [1], [0, 0, 1, 1], [], []>} : vector<64x128xbf16>, vector<128x128xbf16>, vector<64x128xf32> -> vector<64x128xf32>
      %c0_132 = arith.constant 0 : index
      %c0_133 = arith.constant 0 : index
      %273 = vector.load %arg21[%c0_132, %c0_133] : memref<8x128xf32, #tpu.memory_space<vmem>>, vector<8x128xf32>
      %cst_134 = arith.constant dense<0.000000e+00> : vector<64x128xf32>
      %274 = tpu.matmul %269, %273, %cst_134 {dimension_numbers = #tpu.dot_dimension_numbers<[1], [0], [0], [1], [0, 0, 1, 1], [], []>} : vector<64x8xf32>, vector<8x128xf32>, vector<64x128xf32> -> vector<64x128xf32>
      %275 = arith.addf %272, %274 : vector<64x128xf32>
      %c0_135 = arith.constant 0 : index
      %c0_136 = arith.constant 0 : index
      %276 = vector.load %arg23[%c0_135, %c0_136] : memref<1x128xf32, #tpu.memory_space<vmem>>, vector<1x128xf32>
      %277 = vector.broadcast %276 : vector<1x128xf32> to vector<64x128xf32>
      %278 = arith.addf %275, %277 : vector<64x128xf32>
      %cst_137 = arith.constant 0.000000e+00 : f32
      %279 = vector.broadcast %cst_137 : f32 to vector<64x128xf32>
      %280 = arith.maximumf %278, %279 : vector<64x128xf32>
      %c0_138 = arith.constant 0 : index
      %c0_139 = arith.constant 0 : index
      %281 = vector.load %arg24[%c0_138, %c0_139] : memref<1x128xf32, #tpu.memory_space<vmem>>, vector<1x128xf32>
      %282 = vector.broadcast %281 : vector<1x128xf32> to vector<64x128xf32>
      %283 = arith.mulf %280, %282 : vector<64x128xf32>
      %cst_140 = arith.constant dense<0.000000e+00> : vector<64xf32>
      %284 = vector.multi_reduction <add>, %283, %cst_140 [1] : vector<64x128xf32> to vector<64xf32>
      %285 = vector.shape_cast %284 : vector<64xf32> to vector<64x1xf32>
      %c0_141 = arith.constant 0 : index
      %c0_142 = arith.constant 0 : index
      %286 = vector.load %arg25[%c0_141, %c0_142] : memref<64x1xf32, #tpu.memory_space<vmem>>, vector<64x1xf32>
      %287 = arith.subf %285, %286 : vector<64x1xf32>
      %c0_143 = arith.constant 0 : index
      %c0_144 = arith.constant 0 : index
      %288 = vector.load %arg26[%c0_143, %c0_144] : memref<64x1xf32, #tpu.memory_space<vmem>>, vector<64x1xf32>
      %289 = arith.mulf %287, %288 : vector<64x1xf32>
      %290 = math.absf %289 : vector<64x1xf32>
      %c0_145 = arith.constant 0 : index
      %c0_146 = arith.constant 0 : index
      %291 = vector.load %arg27[%c0_145, %c0_146] : memref<64x1xf32, #tpu.memory_space<vmem>>, vector<64x1xf32>
      %292 = arith.mulf %290, %291 : vector<64x1xf32>
      %293 = vector.shape_cast %292 : vector<64x1xf32> to vector<1x64x1xf32>
      %cst_147 = arith.constant dense<0.000000e+00> : vector<1xf32>
      %294 = vector.multi_reduction <add>, %293, %cst_147 [1, 2] : vector<1x64x1xf32> to vector<1xf32>
      %295 = vector.shape_cast %294 : vector<1xf32> to vector<1x1x1xf32>
      %296 = vector.extract %295[0, 0, 0] : f32 from vector<1x1x1xf32>
      %297 = vector.shape_cast %291 : vector<64x1xf32> to vector<1x64x1xf32>
      %cst_148 = arith.constant dense<0.000000e+00> : vector<1xf32>
      %298 = vector.multi_reduction <add>, %297, %cst_148 [1, 2] : vector<1x64x1xf32> to vector<1xf32>
      %299 = vector.shape_cast %298 : vector<1xf32> to vector<1x1x1xf32>
      %300 = vector.extract %299[0, 0, 0] : f32 from vector<1x1x1xf32>
      %301 = arith.divf %296, %300 : f32
      %302 = vector.broadcast %301 : f32 to vector<1x1xf32>
      %c0_149 = arith.constant 0 : index
      %c0_150 = arith.constant 0 : index
      %303 = vector.load %arg28[%c0_149, %c0_150] : memref<1x1xf32, #tpu.memory_space<vmem>>, vector<1x1xf32>
      tpu.vector_store %arg28[%c0_149, %c0_150], %302 {strides = array<i32>} : memref<1x1xf32, #tpu.memory_space<vmem>>, vector<1x1xf32>,
    } else {
    }
    return
  }
  func.func @transform_0(%arg0: i32) -> (i32, i32) {
    %c0_i32 = arith.constant 0 : i32
    %c0_i32_0 = arith.constant 0 : i32
    %c0_i32_1 = arith.constant 0 : i32
    return %c0_i32, %c0_i32_0 : i32, i32
  }
  func.func @transform_1(%arg0: i32) -> (i32, i32) {
    %c0_i32 = arith.constant 0 : i32
    %c0_i32_0 = arith.constant 0 : i32
    %c0_i32_1 = arith.constant 0 : i32
    return %c0_i32, %c0_i32_0 : i32, i32
  }
  func.func @transform_2(%arg0: i32) -> (i32, i32) {
    %c0_i32 = arith.constant 0 : i32
    %c0_i32_0 = arith.constant 0 : i32
    %c0_i32_1 = arith.constant 0 : i32
    return %c0_i32, %c0_i32_0 : i32, i32
  }
  func.func @transform_3(%arg0: i32) -> (i32, i32) {
    %c0_i32 = arith.constant 0 : i32
    %c0_i32_0 = arith.constant 0 : i32
    %c0_i32_1 = arith.constant 0 : i32
    return %c0_i32, %c0_i32_0 : i32, i32
  }
  func.func @transform_4(%arg0: i32) -> (i32, i32, i32) {
    %c0_i32 = arith.constant 0 : i32
    %c0_i32_0 = arith.constant 0 : i32
    %c0_i32_1 = arith.constant 0 : i32
    return %arg0, %c0_i32, %c0_i32_0 : i32, i32, i32
  }
  func.func @transform_5(%arg0: i32) -> (i32, i32, i32) {
    %c0_i32 = arith.constant 0 : i32
    %c0_i32_0 = arith.constant 0 : i32
    %c0_i32_1 = arith.constant 0 : i32
    return %arg0, %c0_i32, %c0_i32_0 : i32, i32, i32
  }
  func.func @transform_6(%arg0: i32) -> (i32, i32, i32) {
    %c0_i32 = arith.constant 0 : i32
    %c0_i32_0 = arith.constant 0 : i32
    %c0_i32_1 = arith.constant 0 : i32
    return %arg0, %c0_i32, %c0_i32_0 : i32, i32, i32
  }
  func.func @transform_7(%arg0: i32) -> (i32, i32, i32) {
    %c0_i32 = arith.constant 0 : i32
    %c0_i32_0 = arith.constant 0 : i32
    %c0_i32_1 = arith.constant 0 : i32
    return %arg0, %c0_i32, %c0_i32_0 : i32, i32, i32
  }
  func.func @transform_8(%arg0: i32) -> (i32, i32, i32) {
    %c0_i32 = arith.constant 0 : i32
    %c0_i32_0 = arith.constant 0 : i32
    %c0_i32_1 = arith.constant 0 : i32
    return %arg0, %c0_i32, %c0_i32_0 : i32, i32, i32
  }
  func.func @transform_9(%arg0: i32) -> (i32, i32, i32) {
    %c0_i32 = arith.constant 0 : i32
    %c0_i32_0 = arith.constant 0 : i32
    %c0_i32_1 = arith.constant 0 : i32
    return %arg0, %c0_i32, %c0_i32_0 : i32, i32, i32
  }
  func.func @transform_10(%arg0: i32) -> (i32, i32, i32) {
    %c0_i32 = arith.constant 0 : i32
    %c0_i32_0 = arith.constant 0 : i32
    %c0_i32_1 = arith.constant 0 : i32
    return %arg0, %c0_i32, %c0_i32_0 : i32, i32, i32
  }
  func.func @transform_11(%arg0: i32) -> (i32, i32, i32) {
    %c0_i32 = arith.constant 0 : i32
    %c0_i32_0 = arith.constant 0 : i32
    %c0_i32_1 = arith.constant 0 : i32
    return %arg0, %c0_i32, %c0_i32_0 : i32, i32, i32
  }
  func.func @transform_12(%arg0: i32) -> (i32, i32, i32) {
    %c0_i32 = arith.constant 0 : i32
    %c0_i32_0 = arith.constant 0 : i32
    %c0_i32_1 = arith.constant 0 : i32
    return %arg0, %c0_i32, %c0_i32_0 : i32, i32, i32
  }
  func.func @transform_13(%arg0: i32) -> (i32, i32, i32) {
    %c0_i32 = arith.constant 0 : i32
    %c0_i32_0 = arith.constant 0 : i32
    %c0_i32_1 = arith.constant 0 : i32
    return %arg0, %c0_i32, %c0_i32_0 : i32, i32, i32
  }
  func.func @transform_14(%arg0: i32) -> (i32, i32, i32) {
    %c0_i32 = arith.constant 0 : i32
    %c0_i32_0 = arith.constant 0 : i32
    %c0_i32_1 = arith.constant 0 : i32
    return %arg0, %c0_i32, %c0_i32_0 : i32, i32, i32
  }
  func.func @transform_15(%arg0: i32) -> (i32, i32, i32) {
    %c0_i32 = arith.constant 0 : i32
    %c0_i32_0 = arith.constant 0 : i32
    %c0_i32_1 = arith.constant 0 : i32
    return %arg0, %c0_i32, %c0_i32_0 : i32, i32, i32
  }
  func.func @transform_16(%arg0: i32) -> (i32, i32) {
    %c0_i32 = arith.constant 0 : i32
    %c0_i32_0 = arith.constant 0 : i32
    %c0_i32_1 = arith.constant 0 : i32
    return %c0_i32, %c0_i32_0 : i32, i32
  }
  func.func @transform_17(%arg0: i32) -> (i32, i32) {
    %c0_i32 = arith.constant 0 : i32
    %c0_i32_0 = arith.constant 0 : i32
    %c0_i32_1 = arith.constant 0 : i32
    return %c0_i32, %c0_i32_0 : i32, i32
  }
  func.func @transform_18(%arg0: i32) -> (i32, i32) {
    %c0_i32 = arith.constant 0 : i32
    %c0_i32_0 = arith.constant 0 : i32
    %c0_i32_1 = arith.constant 0 : i32
    return %c0_i32, %c0_i32_0 : i32, i32
  }
  func.func @transform_19(%arg0: i32) -> (i32, i32) {
    %c0_i32 = arith.constant 0 : i32
    %c0_i32_0 = arith.constant 0 : i32
    %c0_i32_1 = arith.constant 0 : i32
    return %c0_i32, %c0_i32_0 : i32, i32
  }
  func.func @transform_20(%arg0: i32) -> (i32, i32) {
    %c0_i32 = arith.constant 0 : i32
    %c0_i32_0 = arith.constant 0 : i32
    %c0_i32_1 = arith.constant 0 : i32
    return %c0_i32, %c0_i32_0 : i32, i32
  }
  func.func @transform_21(%arg0: i32) -> (i32, i32) {
    %c0_i32 = arith.constant 0 : i32
    %c0_i32_0 = arith.constant 0 : i32
    %c0_i32_1 = arith.constant 0 : i32
    return %c0_i32, %c0_i32_0 : i32, i32
  }
  func.func @transform_22(%arg0: i32) -> (i32, i32) {
    %c0_i32 = arith.constant 0 : i32
    %c0_i32_0 = arith.constant 0 : i32
    %c0_i32_1 = arith.constant 0 : i32
    return %c0_i32, %c0_i32_0 : i32, i32
  }
  func.func @transform_23(%arg0: i32) -> (i32, i32) {
    %c0_i32 = arith.constant 0 : i32
    %c0_i32_0 = arith.constant 0 : i32
    %c0_i32_1 = arith.constant 0 : i32
    return %c0_i32, %c0_i32_0 : i32, i32
  }
  func.func @transform_24(%arg0: i32) -> (i32, i32) {
    %c0_i32 = arith.constant 0 : i32
    %c0_i32_0 = arith.constant 0 : i32
    %c0_i32_1 = arith.constant 0 : i32
    return %c0_i32, %c0_i32_0 : i32, i32
  }
  func.func @transform_25(%arg0: i32) -> (i32, i32) {
    %c0_i32 = arith.constant 0 : i32
    %c0_i32_0 = arith.constant 0 : i32
    %c0_i32_1 = arith.constant 0 : i32
    return %c0_i32, %c0_i32_0 : i32, i32
  }
  func.func @transform_26(%arg0: i32) -> (i32, i32) {
    %c0_i32 = arith.constant 0 : i32
    %c0_i32_0 = arith.constant 0 : i32
    %c0_i32_1 = arith.constant 0 : i32
    return %c0_i32, %c0_i32_0 : i32, i32
  }
  func.func @transform_27(%arg0: i32) -> (i32, i32) {
    %c0_i32 = arith.constant 0 : i32
    %c0_i32_0 = arith.constant 0 : i32
    %c0_i32_1 = arith.constant 0 : i32
    return %c0_i32, %c0_i32_0 : i32, i32
  }
}

</mosaic_0001>

<llo_original>
// kernel: our_model_forward.1
$region0: #{our_model_forward.1}
  #allocation0 [shape = 'u32[]', space=smem, size = 0x4, offset = 0x4, fixed_abs, tag = 'smem constant byte address 0x4 - core index']
  #allocation1 [shape = 'u32[144,128]{1,0:T(1,128)}', space=vmem, size = 0x12000, scoped, tag = 'internal scratch']
  #allocation2 [shape = 'f32[64,128]{1,0:T(8,128)}', space=vmem, size = 0x8000, scoped, tag = 'scratch operand']
  %s0 = inlined_call_operand.vmem [shape: f32[64,16], index: 0, kind: input, shape index: {}]
  %s1 = inlined_call_operand.vmem [shape: f32[64,128], index: 1, kind: input, shape index: {}]
  %s2 = inlined_call_operand.vmem [shape: bf16[16,128], index: 2, kind: input, shape index: {}]
  %s3 = inlined_call_operand.vmem [shape: f32[1,128], index: 3, kind: input, shape index: {}]
  %s4 = inlined_call_operand.vmem [shape: bf16[4,128,768], index: 4, kind: input, shape index: {}]
  %s5 = inlined_call_operand.vmem [shape: f32[4,1,768], index: 5, kind: input, shape index: {}]
  %s6 = inlined_call_operand.vmem [shape: bf16[4,256,128], index: 6, kind: input, shape index: {}]
  %s7 = inlined_call_operand.vmem [shape: f32[4,1,128], index: 7, kind: input, shape index: {}]
  %s8 = inlined_call_operand.vmem [shape: f32[4,1,128], index: 8, kind: input, shape index: {}]
  %s9 = inlined_call_operand.vmem [shape: f32[4,1,128], index: 9, kind: input, shape index: {}]
  %s10 = inlined_call_operand.vmem [shape: bf16[4,128,128], index: 10, kind: input, shape index: {}]
  %s11 = inlined_call_operand.vmem [shape: f32[4,1,128], index: 11, kind: input, shape index: {}]
  %s12 = inlined_call_operand.vmem [shape: bf16[4,128,128], index: 12, kind: input, shape index: {}]
  %s13 = inlined_call_operand.vmem [shape: f32[4,1,128], index: 13, kind: input, shape index: {}]
  %s14 = inlined_call_operand.vmem [shape: f32[4,1,128], index: 14, kind: input, shape index: {}]
  %s15 = inlined_call_operand.vmem [shape: f32[4,1,128], index: 15, kind: input, shape index: {}]
  %s16 = inlined_call_operand.vmem [shape: f32[64,20], index: 16, kind: input, shape index: {}]
  %s17 = inlined_call_operand.vmem [shape: f32[64,20], index: 17, kind: input, shape index: {}]
  %s18 = inlined_call_operand.vmem [shape: f32[64,20], index: 18, kind: input, shape index: {}]
  %s19 = inlined_call_operand.vmem [shape: f32[64,20], index: 19, kind: input, shape index: {}]
  %s20 = inlined_call_operand.vmem [shape: f32[8,128], index: 20, kind: input, shape index: {}]
  %s21 = inlined_call_operand.vmem [shape: bf16[128,128], index: 21, kind: input, shape index: {}]
  %s22 = inlined_call_operand.vmem [shape: f32[1,128], index: 22, kind: input, shape index: {}]
  %s23 = inlined_call_operand.vmem [shape: f32[1,128], index: 23, kind: input, shape index: {}]
  %s24 = inlined_call_operand.vmem [shape: f32[64,1], index: 24, kind: input, shape index: {}]
  %s25 = inlined_call_operand.vmem [shape: f32[64,1], index: 25, kind: input, shape index: {}]
  %s26 = inlined_call_operand.vmem [shape: f32[64,1], index: 26, kind: input, shape index: {}]
  %s27 = inlined_call_operand.hbm [shape: f32[1,1], index: 27, kind: output, shape index: {}]
  %s28 = sld [smem:[#allocation0]]
  $region149: #{our_model_forward.1} parent=0
    _
  %s30 = ssub.s32 1, %s28
  %s31 = scalar_select 0, %s30, %s28
  $region1: #{our_model_forward.1} parent=0
    #allocation3 [shape = 'u8[512]{0}', space=vmem, size = 0x400, scoped, tag = 'output window, operand 0, single buffered']
    #allocation4 [shape = 's32[2]{0}', space=sflag, size = 0x8, scoped, tag = 'scoped memory for our_model_forward.1']
    %32 = vsyncpa [#allocation4], 0
    loop: start=0, step=1, limit=6
    $region2: #{our_model_forward.1} parent=1 // loop_pre_header
      _
    $region3: #{our_model_forward.1} parent=1 // loop_header
      %s34 = sphi 0, %s38
      %p35 = scmp.ge.s32.totalorder %s34, 6
      %s42 = sphi 0, %s42
      %s44 = sphi 0, %s42
      %s45 = sphi 0, %s44
      %s59 = sphi 0, %s45
      %s63 = sphi 0, %s63
      %s65 = sphi 0, %s63
      %s66 = sphi 0, %s65
      %s80 = sphi 0, %s66
      %s84 = sphi 0, %s84
      %s86 = sphi 0, %s84
      %s87 = sphi 0, %s86
      %s101 = sphi 0, %s87
      %s105 = sphi 0, %s105
      %s107 = sphi 0, %s105
      %s108 = sphi 0, %s107
      %s122 = sphi 0, %s108
      %s128 = sphi 0, %s130
      %s131 = sphi 0, %s128
      %s132 = sphi 0, %s131
      %s148 = sphi 0, %s132
      %s154 = sphi 0, %s156
      %s157 = sphi 0, %s154
      %s158 = sphi 0, %s157
      %s174 = sphi 0, %s158
      %s180 = sphi 0, %s182
      %s183 = sphi 0, %s180
      %s184 = sphi 0, %s183
      %s200 = sphi 0, %s184
      %s206 = sphi 0, %s208
      %s209 = sphi 0, %s206
      %s210 = sphi 0, %s209
      %s226 = sphi 0, %s210
      %s232 = sphi 0, %s234
      %s235 = sphi 0, %s232
      %s236 = sphi 0, %s235
      %s252 = sphi 0, %s236
      %s258 = sphi 0, %s260
      %s261 = sphi 0, %s258
      %s262 = sphi 0, %s261
      %s278 = sphi 0, %s262
      %s284 = sphi 0, %s286
      %s287 = sphi 0, %s284
      %s288 = sphi 0, %s287
      %s304 = sphi 0, %s288
      %s310 = sphi 0, %s312
      %s313 = sphi 0, %s310
      %s314 = sphi 0, %s313
      %s330 = sphi 0, %s314
      %s336 = sphi 0, %s338
      %s339 = sphi 0, %s336
      %s340 = sphi 0, %s339
      %s356 = sphi 0, %s340
      %s362 = sphi 0, %s364
      %s365 = sphi 0, %s362
      %s366 = sphi 0, %s365
      %s382 = sphi 0, %s366
      %s388 = sphi 0, %s390
      %s391 = sphi 0, %s388
      %s392 = sphi 0, %s391
      %s408 = sphi 0, %s392
      %s414 = sphi 0, %s416
      %s417 = sphi 0, %s414
      %s418 = sphi 0, %s417
      %s434 = sphi 0, %s418
      %s438 = sphi 0, %s438
      %s440 = sphi 0, %s438
      %s441 = sphi 0, %s440
      %s455 = sphi 0, %s441
      %s459 = sphi 0, %s459
      %s461 = sphi 0, %s459
      %s462 = sphi 0, %s461
      %s476 = sphi 0, %s462
      %s480 = sphi 0, %s480
      %s482 = sphi 0, %s480
      %s483 = sphi 0, %s482
      %s497 = sphi 0, %s483
      %s501 = sphi 0, %s501
      %s503 = sphi 0, %s501
      %s504 = sphi 0, %s503
      %s518 = sphi 0, %s504
      %s522 = sphi 0, %s522
      %s524 = sphi 0, %s522
      %s525 = sphi 0, %s524
      %s539 = sphi 0, %s525
      %s543 = sphi 0, %s543
      %s545 = sphi 0, %s543
      %s546 = sphi 0, %s545
      %s560 = sphi 0, %s546
      %s564 = sphi 0, %s564
      %s566 = sphi 0, %s564
      %s567 = sphi 0, %s566
      %s581 = sphi 0, %s567
      %s585 = sphi 0, %s585
      %s587 = sphi 0, %s585
      %s588 = sphi 0, %s587
      %s602 = sphi 0, %s588
      %s606 = sphi 0, %s606
      %s608 = sphi 0, %s606
      %s609 = sphi 0, %s608
      %s623 = sphi 0, %s609
      %s627 = sphi 0, %s627
      %s629 = sphi 0, %s627
      %s630 = sphi 0, %s629
      %s644 = sphi 0, %s630
      %s648 = sphi 0, %s648
      %s650 = sphi 0, %s648
      %s651 = sphi 0, %s650
      %s665 = sphi 0, %s651
      %s669 = sphi 0, %s669
      %s671 = sphi 0, %s669
      %s672 = sphi 0, %s671
      %s686 = sphi 0, %s672
    $region4: #{our_model_forward.1} parent=1 // loop_header_branch
      %37 = sbr.rel (%p35) target = $region8
    $region5: #{our_model_forward.1} parent=1 // loop_body
      %s39 = ssub.s32 %s34, 1
      %s40 = ssub.s32 %s34, 2
      %s41 = sadd.s32 %s34, 1
      %s43 = sadd.s32 %s42, 1
      %p46 = scmp.eq.s32.totalorder %s34, 3
      %p47 = scmp.ne.s32.totalorder %s42, %s44
      %p48 = scmp.eq.s32.totalorder %s34, 0
      %p49 = por %p47, %p48
      %p50 = scmp.ne.s32.totalorder %s42, %s44
      %p51 = scmp.eq.s32.totalorder %s39, 3
      %p52 = por %p50, %p51
      %p53 = scmp.ne.s32.totalorder %s44, %s45
      %p54 = scmp.eq.s32.totalorder %s39, 0
      %p55 = por %p53, %p54
      %p56 = scmp.ne.s32.totalorder %s44, %s45
      %p57 = scmp.eq.s32.totalorder %s40, 3
      %p58 = por %p56, %p57
      %p60 = scmp.ne.s32.totalorder %s45, %s59
      %p61 = scmp.eq.s32.totalorder %s40, 0
      %p62 = por %p60, %p61
      %s64 = sadd.s32 %s63, 1
      %p67 = scmp.eq.s32.totalorder %s34, 3
      %p68 = scmp.ne.s32.totalorder %s63, %s65
      %p69 = scmp.eq.s32.totalorder %s34, 0
      %p70 = por %p68, %p69
      %p71 = scmp.ne.s32.totalorder %s63, %s65
      %p72 = scmp.eq.s32.totalorder %s39, 3
      %p73 = por %p71, %p72
      %p74 = scmp.ne.s32.totalorder %s65, %s66
      %p75 = scmp.eq.s32.totalorder %s39, 0
      %p76 = por %p74, %p75
      %p77 = scmp.ne.s32.totalorder %s65, %s66
      %p78 = scmp.eq.s32.totalorder %s40, 3
      %p79 = por %p77, %p78
      %p81 = scmp.ne.s32.totalorder %s66, %s80
      %p82 = scmp.eq.s32.totalorder %s40, 0
      %p83 = por %p81, %p82
      %s85 = sadd.s32 %s84, 1
      %p88 = scmp.eq.s32.totalorder %s34, 3
      %p89 = scmp.ne.s32.totalorder %s84, %s86
      %p90 = scmp.eq.s32.totalorder %s34, 0
      %p91 = por %p89, %p90
      %p92 = scmp.ne.s32.totalorder %s84, %s86
      %p93 = scmp.eq.s32.totalorder %s39, 3
      %p94 = por %p92, %p93
      %p95 = scmp.ne.s32.totalorder %s86, %s87
      %p96 = scmp.eq.s32.totalorder %s39, 0
      %p97 = por %p95, %p96
      %p98 = scmp.ne.s32.totalorder %s86, %s87
      %p99 = scmp.eq.s32.totalorder %s40, 3
      %p100 = por %p98, %p99
      %p102 = scmp.ne.s32.totalorder %s87, %s101
      %p103 = scmp.eq.s32.totalorder %s40, 0
      %p104 = por %p102, %p103
      %s106 = sadd.s32 %s105, 1
      %p109 = scmp.eq.s32.totalorder %s34, 3
      %p110 = scmp.ne.s32.totalorder %s105, %s107
      %p111 = scmp.eq.s32.totalorder %s34, 0
      %p112 = por %p110, %p111
      %p113 = scmp.ne.s32.totalorder %s105, %s107
      %p114 = scmp.eq.s32.totalorder %s39, 3
      %p115 = por %p113, %p114
      %p116 = scmp.ne.s32.totalorder %s107, %s108
      %p117 = scmp.eq.s32.totalorder %s39, 0
      %p118 = por %p116, %p117
      %p119 = scmp.ne.s32.totalorder %s107, %s108
      %p120 = scmp.eq.s32.totalorder %s40, 3
      %p121 = por %p119, %p120
      %p123 = scmp.ne.s32.totalorder %s108, %s122
      %p124 = scmp.eq.s32.totalorder %s40, 0
      %p125 = por %p123, %p124
      %s126 = ssub.s32 %s34, %s41
      %p127 = scmp.eq.s32.totalorder %s126, 0
      %s129 = sadd.s32 %s128, 1
      %s130 = scalar_select %p127, %s128, %s129
      %p133 = pneg %p127
      %p134 = scmp.eq.s32.totalorder %s34, 3
      %p135 = por %p133, %p134
      %p136 = scmp.ne.s32.totalorder %s128, %s131
      %p137 = scmp.eq.s32.totalorder %s34, 0
      %p138 = por %p136, %p137
      %p139 = scmp.ne.s32.totalorder %s128, %s131
      %p140 = scmp.eq.s32.totalorder %s39, 3
      %p141 = por %p139, %p140
      %p142 = scmp.ne.s32.totalorder %s131, %s132
      %p143 = scmp.eq.s32.totalorder %s39, 0
      %p144 = por %p142, %p143
      %p145 = scmp.ne.s32.totalorder %s131, %s132
      %p146 = scmp.eq.s32.totalorder %s40, 3
      %p147 = por %p145, %p146
      %p149 = scmp.ne.s32.totalorder %s132, %s148
      %p150 = scmp.eq.s32.totalorder %s40, 0
      %p151 = por %p149, %p150
      %s152 = ssub.s32 %s34, %s41
      %p153 = scmp.eq.s32.totalorder %s152, 0
      %s155 = sadd.s32 %s154, 1
      %s156 = scalar_select %p153, %s154, %s155
      %p159 = pneg %p153
      %p160 = scmp.eq.s32.totalorder %s34, 3
      %p161 = por %p159, %p160
      %p162 = scmp.ne.s32.totalorder %s154, %s157
      %p163 = scmp.eq.s32.totalorder %s34, 0
      %p164 = por %p162, %p163
      %p165 = scmp.ne.s32.totalorder %s154, %s157
      %p166 = scmp.eq.s32.totalorder %s39, 3
      %p167 = por %p165, %p166
      %p168 = scmp.ne.s32.totalorder %s157, %s158
      %p169 = scmp.eq.s32.totalorder %s39, 0
      %p170 = por %p168, %p169
      %p171 = scmp.ne.s32.totalorder %s157, %s158
      %p172 = scmp.eq.s32.totalorder %s40, 3
      %p173 = por %p171, %p172
      %p175 = scmp.ne.s32.totalorder %s158, %s174
      %p176 = scmp.eq.s32.totalorder %s40, 0
      %p177 = por %p175, %p176
      %s178 = ssub.s32 %s34, %s41
      %p179 = scmp.eq.s32.totalorder %s178, 0
      %s181 = sadd.s32 %s180, 1
      %s182 = scalar_select %p179, %s180, %s181
      %p185 = pneg %p179
      %p186 = scmp.eq.s32.totalorder %s34, 3
      %p187 = por %p185, %p186
      %p188 = scmp.ne.s32.totalorder %s180, %s183
      %p189 = scmp.eq.s32.totalorder %s34, 0
      %p190 = por %p188, %p189
      %p191 = scmp.ne.s32.totalorder %s180, %s183
      %p192 = scmp.eq.s32.totalorder %s39, 3
      %p193 = por %p191, %p192
      %p194 = scmp.ne.s32.totalorder %s183, %s184
      %p195 = scmp.eq.s32.totalorder %s39, 0
      %p196 = por %p194, %p195
      %p197 = scmp.ne.s32.totalorder %s183, %s184
      %p198 = scmp.eq.s32.totalorder %s40, 3
      %p199 = por %p197, %p198
      %p201 = scmp.ne.s32.totalorder %s184, %s200
      %p202 = scmp.eq.s32.totalorder %s40, 0
      %p203 = por %p201, %p202
      %s204 = ssub.s32 %s34, %s41
      %p205 = scmp.eq.s32.totalorder %s204, 0
      %s207 = sadd.s32 %s206, 1
      %s208 = scalar_select %p205, %s206, %s207
      %p211 = pneg %p205
      %p212 = scmp.eq.s32.totalorder %s34, 3
      %p213 = por %p211, %p212
      %p214 = scmp.ne.s32.totalorder %s206, %s209
      %p215 = scmp.eq.s32.totalorder %s34, 0
      %p216 = por %p214, %p215
      %p217 = scmp.ne.s32.totalorder %s206, %s209
      %p218 = scmp.eq.s32.totalorder %s39, 3
      %p219 = por %p217, %p218
      %p220 = scmp.ne.s32.totalorder %s209, %s210
      %p221 = scmp.eq.s32.totalorder %s39, 0
      %p222 = por %p220, %p221
      %p223 = scmp.ne.s32.totalorder %s209, %s210
      %p224 = scmp.eq.s32.totalorder %s40, 3
      %p225 = por %p223, %p224
      %p227 = scmp.ne.s32.totalorder %s210, %s226
      %p228 = scmp.eq.s32.totalorder %s40, 0
      %p229 = por %p227, %p228
      %s230 = ssub.s32 %s34, %s41
      %p231 = scmp.eq.s32.totalorder %s230, 0
      %s233 = sadd.s32 %s232, 1
      %s234 = scalar_select %p231, %s232, %s233
      %p237 = pneg %p231
      %p238 = scmp.eq.s32.totalorder %s34, 3
      %p239 = por %p237, %p238
      %p240 = scmp.ne.s32.totalorder %s232, %s235
      %p241 = scmp.eq.s32.totalorder %s34, 0
      %p242 = por %p240, %p241
      %p243 = scmp.ne.s32.totalorder %s232, %s235
      %p244 = scmp.eq.s32.totalorder %s39, 3
      %p245 = por %p243, %p244
      %p246 = scmp.ne.s32.totalorder %s235, %s236
      %p247 = scmp.eq.s32.totalorder %s39, 0
      %p248 = por %p246, %p247
      %p249 = scmp.ne.s32.totalorder %s235, %s236
      %p250 = scmp.eq.s32.totalorder %s40, 3
      %p251 = por %p249, %p250
      %p253 = scmp.ne.s32.totalorder %s236, %s252
      %p254 = scmp.eq.s32.totalorder %s40, 0
      %p255 = por %p253, %p254
      %s256 = ssub.s32 %s34, %s41
      %p257 = scmp.eq.s32.totalorder %s256, 0
      %s259 = sadd.s32 %s258, 1
      %s260 = scalar_select %p257, %s258, %s259
      %p263 = pneg %p257
      %p264 = scmp.eq.s32.totalorder %s34, 3
      %p265 = por %p263, %p264
      %p266 = scmp.ne.s32.totalorder %s258, %s261
      %p267 = scmp.eq.s32.totalorder %s34, 0
      %p268 = por %p266, %p267
      %p269 = scmp.ne.s32.totalorder %s258, %s261
      %p270 = scmp.eq.s32.totalorder %s39, 3
      %p271 = por %p269, %p270
      %p272 = scmp.ne.s32.totalorder %s261, %s262
      %p273 = scmp.eq.s32.totalorder %s39, 0
      %p274 = por %p272, %p273
      %p275 = scmp.ne.s32.totalorder %s261, %s262
      %p276 = scmp.eq.s32.totalorder %s40, 3
      %p277 = por %p275, %p276
      %p279 = scmp.ne.s32.totalorder %s262, %s278
      %p280 = scmp.eq.s32.totalorder %s40, 0
      %p281 = por %p279, %p280
      %s282 = ssub.s32 %s34, %s41
      %p283 = scmp.eq.s32.totalorder %s282, 0
      %s285 = sadd.s32 %s284, 1
      %s286 = scalar_select %p283, %s284, %s285
      %p289 = pneg %p283
      %p290 = scmp.eq.s32.totalorder %s34, 3
      %p291 = por %p289, %p290
      %p292 = scmp.ne.s32.totalorder %s284, %s287
      %p293 = scmp.eq.s32.totalorder %s34, 0
      %p294 = por %p292, %p293
      %p295 = scmp.ne.s32.totalorder %s284, %s287
      %p296 = scmp.eq.s32.totalorder %s39, 3
      %p297 = por %p295, %p296
      %p298 = scmp.ne.s32.totalorder %s287, %s288
      %p299 = scmp.eq.s32.totalorder %s39, 0
      %p300 = por %p298, %p299
      %p301 = scmp.ne.s32.totalorder %s287, %s288
      %p302 = scmp.eq.s32.totalorder %s40, 3
      %p303 = por %p301, %p302
      %p305 = scmp.ne.s32.totalorder %s288, %s304
      %p306 = scmp.eq.s32.totalorder %s40, 0
      %p307 = por %p305, %p306
      %s308 = ssub.s32 %s34, %s41
      %p309 = scmp.eq.s32.totalorder %s308, 0
      %s311 = sadd.s32 %s310, 1
      %s312 = scalar_select %p309, %s310, %s311
      %p315 = pneg %p309
      %p316 = scmp.eq.s32.totalorder %s34, 3
      %p317 = por %p315, %p316
      %p318 = scmp.ne.s32.totalorder %s310, %s313
      %p319 = scmp.eq.s32.totalorder %s34, 0
      %p320 = por %p318, %p319
      %p321 = scmp.ne.s32.totalorder %s310, %s313
      %p322 = scmp.eq.s32.totalorder %s39, 3
      %p323 = por %p321, %p322
      %p324 = scmp.ne.s32.totalorder %s313, %s314
      %p325 = scmp.eq.s32.totalorder %s39, 0
      %p326 = por %p324, %p325
      %p327 = scmp.ne.s32.totalorder %s313, %s314
      %p328 = scmp.eq.s32.totalorder %s40, 3
      %p329 = por %p327, %p328
      %p331 = scmp.ne.s32.totalorder %s314, %s330
      %p332 = scmp.eq.s32.totalorder %s40, 0
      %p333 = por %p331, %p332
      %s334 = ssub.s32 %s34, %s41
      %p335 = scmp.eq.s32.totalorder %s334, 0
      %s337 = sadd.s32 %s336, 1
      %s338 = scalar_select %p335, %s336, %s337
      %p341 = pneg %p335
      %p342 = scmp.eq.s32.totalorder %s34, 3
      %p343 = por %p341, %p342
      %p344 = scmp.ne.s32.totalorder %s336, %s339
      %p345 = scmp.eq.s32.totalorder %s34, 0
      %p346 = por %p344, %p345
      %p347 = scmp.ne.s32.totalorder %s336, %s339
      %p348 = scmp.eq.s32.totalorder %s39, 3
      %p349 = por %p347, %p348
      %p350 = scmp.ne.s32.totalorder %s339, %s340
      %p351 = scmp.eq.s32.totalorder %s39, 0
      %p352 = por %p350, %p351
      %p353 = scmp.ne.s32.totalorder %s339, %s340
      %p354 = scmp.eq.s32.totalorder %s40, 3
      %p355 = por %p353, %p354
      %p357 = scmp.ne.s32.totalorder %s340, %s356
      %p358 = scmp.eq.s32.totalorder %s40, 0
      %p359 = por %p357, %p358
      %s360 = ssub.s32 %s34, %s41
      %p361 = scmp.eq.s32.totalorder %s360, 0
      %s363 = sadd.s32 %s362, 1
      %s364 = scalar_select %p361, %s362, %s363
      %p367 = pneg %p361
      %p368 = scmp.eq.s32.totalorder %s34, 3
      %p369 = por %p367, %p368
      %p370 = scmp.ne.s32.totalorder %s362, %s365
      %p371 = scmp.eq.s32.totalorder %s34, 0
      %p372 = por %p370, %p371
      %p373 = scmp.ne.s32.totalorder %s362, %s365
      %p374 = scmp.eq.s32.totalorder %s39, 3
      %p375 = por %p373, %p374
      %p376 = scmp.ne.s32.totalorder %s365, %s366
      %p377 = scmp.eq.s32.totalorder %s39, 0
      %p378 = por %p376, %p377
      %p379 = scmp.ne.s32.totalorder %s365, %s366
      %p380 = scmp.eq.s32.totalorder %s40, 3
      %p381 = por %p379, %p380
      %p383 = scmp.ne.s32.totalorder %s366, %s382
      %p384 = scmp.eq.s32.totalorder %s40, 0
      %p385 = por %p383, %p384
      %s386 = ssub.s32 %s34, %s41
      %p387 = scmp.eq.s32.totalorder %s386, 0
      %s389 = sadd.s32 %s388, 1
      %s390 = scalar_select %p387, %s388, %s389
      %p393 = pneg %p387
      %p394 = scmp.eq.s32.totalorder %s34, 3
      %p395 = por %p393, %p394
      %p396 = scmp.ne.s32.totalorder %s388, %s391
      %p397 = scmp.eq.s32.totalorder %s34, 0
      %p398 = por %p396, %p397
      %p399 = scmp.ne.s32.totalorder %s388, %s391
      %p400 = scmp.eq.s32.totalorder %s39, 3
      %p401 = por %p399, %p400
      %p402 = scmp.ne.s32.totalorder %s391, %s392
      %p403 = scmp.eq.s32.totalorder %s39, 0
      %p404 = por %p402, %p403
      %p405 = scmp.ne.s32.totalorder %s391, %s392
      %p406 = scmp.eq.s32.totalorder %s40, 3
      %p407 = por %p405, %p406
      %p409 = scmp.ne.s32.totalorder %s392, %s408
      %p410 = scmp.eq.s32.totalorder %s40, 0
      %p411 = por %p409, %p410
      %s412 = ssub.s32 %s34, %s41
      %p413 = scmp.eq.s32.totalorder %s412, 0
      %s415 = sadd.s32 %s414, 1
      %s416 = scalar_select %p413, %s414, %s415
      %p419 = pneg %p413
      %p420 = scmp.eq.s32.totalorder %s34, 3
      %p421 = por %p419, %p420
      %p422 = scmp.ne.s32.totalorder %s414, %s417
      %p423 = scmp.eq.s32.totalorder %s34, 0
      %p424 = por %p422, %p423
      %p425 = scmp.ne.s32.totalorder %s414, %s417
      %p426 = scmp.eq.s32.totalorder %s39, 3
      %p427 = por %p425, %p426
      %p428 = scmp.ne.s32.totalorder %s417, %s418
      %p429 = scmp.eq.s32.totalorder %s39, 0
      %p430 = por %p428, %p429
      %p431 = scmp.ne.s32.totalorder %s417, %s418
      %p432 = scmp.eq.s32.totalorder %s40, 3
      %p433 = por %p431, %p432
      %p435 = scmp.ne.s32.totalorder %s418, %s434
      %p436 = scmp.eq.s32.totalorder %s40, 0
      %p437 = por %p435, %p436
      %s439 = sadd.s32 %s438, 1
      %p442 = scmp.eq.s32.totalorder %s34, 3
      %p443 = scmp.ne.s32.totalorder %s438, %s440
      %p444 = scmp.eq.s32.totalorder %s34, 0
      %p445 = por %p443, %p444
      %p446 = scmp.ne.s32.totalorder %s438, %s440
      %p447 = scmp.eq.s32.totalorder %s39, 3
      %p448 = por %p446, %p447
      %p449 = scmp.ne.s32.totalorder %s440, %s441
      %p450 = scmp.eq.s32.totalorder %s39, 0
      %p451 = por %p449, %p450
      %p452 = scmp.ne.s32.totalorder %s440, %s441
      %p453 = scmp.eq.s32.totalorder %s40, 3
      %p454 = por %p452, %p453
      %p456 = scmp.ne.s32.totalorder %s441, %s455
      %p457 = scmp.eq.s32.totalorder %s40, 0
      %p458 = por %p456, %p457
      %s460 = sadd.s32 %s459, 1
      %p463 = scmp.eq.s32.totalorder %s34, 3
      %p464 = scmp.ne.s32.totalorder %s459, %s461
      %p465 = scmp.eq.s32.totalorder %s34, 0
      %p466 = por %p464, %p465
      %p467 = scmp.ne.s32.totalorder %s459, %s461
      %p468 = scmp.eq.s32.totalorder %s39, 3
      %p469 = por %p467, %p468
      %p470 = scmp.ne.s32.totalorder %s461, %s462
      %p471 = scmp.eq.s32.totalorder %s39, 0
      %p472 = por %p470, %p471
      %p473 = scmp.ne.s32.totalorder %s461, %s462
      %p474 = scmp.eq.s32.totalorder %s40, 3
      %p475 = por %p473, %p474
      %p477 = scmp.ne.s32.totalorder %s462, %s476
      %p478 = scmp.eq.s32.totalorder %s40, 0
      %p479 = por %p477, %p478
      %s481 = sadd.s32 %s480, 1
      %p484 = scmp.eq.s32.totalorder %s34, 3
      %p485 = scmp.ne.s32.totalorder %s480, %s482
      %p486 = scmp.eq.s32.totalorder %s34, 0
      %p487 = por %p485, %p486
      %p488 = scmp.ne.s32.totalorder %s480, %s482
      %p489 = scmp.eq.s32.totalorder %s39, 3
      %p490 = por %p488, %p489
      %p491 = scmp.ne.s32.totalorder %s482, %s483
      %p492 = scmp.eq.s32.totalorder %s39, 0
      %p493 = por %p491, %p492
      %p494 = scmp.ne.s32.totalorder %s482, %s483
      %p495 = scmp.eq.s32.totalorder %s40, 3
      %p496 = por %p494, %p495
      %p498 = scmp.ne.s32.totalorder %s483, %s497
      %p499 = scmp.eq.s32.totalorder %s40, 0
      %p500 = por %p498, %p499
      %s502 = sadd.s32 %s501, 1
      %p505 = scmp.eq.s32.totalorder %s34, 3
      %p506 = scmp.ne.s32.totalorder %s501, %s503
      %p507 = scmp.eq.s32.totalorder %s34, 0
      %p508 = por %p506, %p507
      %p509 = scmp.ne.s32.totalorder %s501, %s503
      %p510 = scmp.eq.s32.totalorder %s39, 3
      %p511 = por %p509, %p510
      %p512 = scmp.ne.s32.totalorder %s503, %s504
      %p513 = scmp.eq.s32.totalorder %s39, 0
      %p514 = por %p512, %p513
      %p515 = scmp.ne.s32.totalorder %s503, %s504
      %p516 = scmp.eq.s32.totalorder %s40, 3
      %p517 = por %p515, %p516
      %p519 = scmp.ne.s32.totalorder %s504, %s518
      %p520 = scmp.eq.s32.totalorder %s40, 0
      %p521 = por %p519, %p520
      %s523 = sadd.s32 %s522, 1
      %p526 = scmp.eq.s32.totalorder %s34, 3
      %p527 = scmp.ne.s32.totalorder %s522, %s524
      %p528 = scmp.eq.s32.totalorder %s34, 0
      %p529 = por %p527, %p528
      %p530 = scmp.ne.s32.totalorder %s522, %s524
      %p531 = scmp.eq.s32.totalorder %s39, 3
      %p532 = por %p530, %p531
      %p533 = scmp.ne.s32.totalorder %s524, %s525
      %p534 = scmp.eq.s32.totalorder %s39, 0
      %p535 = por %p533, %p534
      %p536 = scmp.ne.s32.totalorder %s524, %s525
      %p537 = scmp.eq.s32.totalorder %s40, 3
      %p538 = por %p536, %p537
      %p540 = scmp.ne.s32.totalorder %s525, %s539
      %p541 = scmp.eq.s32.totalorder %s40, 0
      %p542 = por %p540, %p541
      %s544 = sadd.s32 %s543, 1
      %p547 = scmp.eq.s32.totalorder %s34, 3
      %p548 = scmp.ne.s32.totalorder %s543, %s545
      %p549 = scmp.eq.s32.totalorder %s34, 0
      %p550 = por %p548, %p549
      %p551 = scmp.ne.s32.totalorder %s543, %s545
      %p552 = scmp.eq.s32.totalorder %s39, 3
      %p553 = por %p551, %p552
      %p554 = scmp.ne.s32.totalorder %s545, %s546
      %p555 = scmp.eq.s32.totalorder %s39, 0
      %p556 = por %p554, %p555
      %p557 = scmp.ne.s32.totalorder %s545, %s546
      %p558 = scmp.eq.s32.totalorder %s40, 3
      %p559 = por %p557, %p558
      %p561 = scmp.ne.s32.totalorder %s546, %s560
      %p562 = scmp.eq.s32.totalorder %s40, 0
      %p563 = por %p561, %p562
      %s565 = sadd.s32 %s564, 1
      %p568 = scmp.eq.s32.totalorder %s34, 3
      %p569 = scmp.ne.s32.totalorder %s564, %s566
      %p570 = scmp.eq.s32.totalorder %s34, 0
      %p571 = por %p569, %p570
      %p572 = scmp.ne.s32.totalorder %s564, %s566
      %p573 = scmp.eq.s32.totalorder %s39, 3
      %p574 = por %p572, %p573
      %p575 = scmp.ne.s32.totalorder %s566, %s567
      %p576 = scmp.eq.s32.totalorder %s39, 0
      %p577 = por %p575, %p576
      %p578 = scmp.ne.s32.totalorder %s566, %s567
      %p579 = scmp.eq.s32.totalorder %s40, 3
      %p580 = por %p578, %p579
      %p582 = scmp.ne.s32.totalorder %s567, %s581
      %p583 = scmp.eq.s32.totalorder %s40, 0
      %p584 = por %p582, %p583
      %s586 = sadd.s32 %s585, 1
      %p589 = scmp.eq.s32.totalorder %s34, 3
      %p590 = scmp.ne.s32.totalorder %s585, %s587
      %p591 = scmp.eq.s32.totalorder %s34, 0
      %p592 = por %p590, %p591
      %p593 = scmp.ne.s32.totalorder %s585, %s587
      %p594 = scmp.eq.s32.totalorder %s39, 3
      %p595 = por %p593, %p594
      %p596 = scmp.ne.s32.totalorder %s587, %s588
      %p597 = scmp.eq.s32.totalorder %s39, 0
      %p598 = por %p596, %p597
      %p599 = scmp.ne.s32.totalorder %s587, %s588
      %p600 = scmp.eq.s32.totalorder %s40, 3
      %p601 = por %p599, %p600
      %p603 = scmp.ne.s32.totalorder %s588, %s602
      %p604 = scmp.eq.s32.totalorder %s40, 0
      %p605 = por %p603, %p604
      %s607 = sadd.s32 %s606, 1
      %p610 = scmp.eq.s32.totalorder %s34, 3
      %p611 = scmp.ne.s32.totalorder %s606, %s608
      %p612 = scmp.eq.s32.totalorder %s34, 0
      %p613 = por %p611, %p612
      %p614 = scmp.ne.s32.totalorder %s606, %s608
      %p615 = scmp.eq.s32.totalorder %s39, 3
      %p616 = por %p614, %p615
      %p617 = scmp.ne.s32.totalorder %s608, %s609
      %p618 = scmp.eq.s32.totalorder %s39, 0
      %p619 = por %p617, %p618
      %p620 = scmp.ne.s32.totalorder %s608, %s609
      %p621 = scmp.eq.s32.totalorder %s40, 3
      %p622 = por %p620, %p621
      %p624 = scmp.ne.s32.totalorder %s609, %s623
      %p625 = scmp.eq.s32.totalorder %s40, 0
      %p626 = por %p624, %p625
      %s628 = sadd.s32 %s627, 1
      %p631 = scmp.eq.s32.totalorder %s34, 3
      %p632 = scmp.ne.s32.totalorder %s627, %s629
      %p633 = scmp.eq.s32.totalorder %s34, 0
      %p634 = por %p632, %p633
      %p635 = scmp.ne.s32.totalorder %s627, %s629
      %p636 = scmp.eq.s32.totalorder %s39, 3
      %p637 = por %p635, %p636
      %p638 = scmp.ne.s32.totalorder %s629, %s630
      %p639 = scmp.eq.s32.totalorder %s39, 0
      %p640 = por %p638, %p639
      %p641 = scmp.ne.s32.totalorder %s629, %s630
      %p642 = scmp.eq.s32.totalorder %s40, 3
      %p643 = por %p641, %p642
      %p645 = scmp.ne.s32.totalorder %s630, %s644
      %p646 = scmp.eq.s32.totalorder %s40, 0
      %p647 = por %p645, %p646
      %s649 = sadd.s32 %s648, 1
      %p652 = scmp.eq.s32.totalorder %s34, 3
      %p653 = scmp.ne.s32.totalorder %s648, %s650
      %p654 = scmp.eq.s32.totalorder %s34, 0
      %p655 = por %p653, %p654
      %p656 = scmp.ne.s32.totalorder %s648, %s650
      %p657 = scmp.eq.s32.totalorder %s39, 3
      %p658 = por %p656, %p657
      %p659 = scmp.ne.s32.totalorder %s650, %s651
      %p660 = scmp.eq.s32.totalorder %s39, 0
      %p661 = por %p659, %p660
      %p662 = scmp.ne.s32.totalorder %s650, %s651
      %p663 = scmp.eq.s32.totalorder %s40, 3
      %p664 = por %p662, %p663
      %p666 = scmp.ne.s32.totalorder %s651, %s665
      %p667 = scmp.eq.s32.totalorder %s40, 0
      %p668 = por %p666, %p667
      %s670 = sadd.s32 %s669, 1
      %p673 = scmp.eq.s32.totalorder %s34, 3
      %p674 = scmp.ne.s32.totalorder %s669, %s671
      %p675 = scmp.eq.s32.totalorder %s34, 0
      %p676 = por %p674, %p675
      %p677 = scmp.ne.s32.totalorder %s669, %s671
      %p678 = scmp.eq.s32.totalorder %s39, 3
      %p679 = por %p677, %p678
      %p680 = scmp.ne.s32.totalorder %s671, %s672
      %p681 = scmp.eq.s32.totalorder %s39, 0
      %p682 = por %p680, %p681
      %p683 = scmp.ne.s32.totalorder %s671, %s672
      %p684 = scmp.eq.s32.totalorder %s40, 3
      %p685 = por %p683, %p684
      %p687 = scmp.ne.s32.totalorder %s672, %s686
      %p688 = scmp.eq.s32.totalorder %s40, 0
      %p689 = por %p687, %p688
      %p690 = scmp.le.s32.totalorder 1, %s34
      %p691 = scmp.lt.s32.totalorder %s34, 5
      %p692 = pnand %p690, %p691
      %p693 = pneg %p692
      // Predicated region
      $region9: #{our_model_forward.1} parent=5 // pred_check
        _
      $region10: #{our_model_forward.1} parent=5 // pred_check_branch
        %695 = sbr.rel (%p692) target = $region12
      $region11: #{our_model_forward.1} parent=5 // pred_region
        %s696 = ssub.s32 %s34, 1
        // Predicated region
        $region13: #{our_model_forward.1} parent=11 // pred_check
          %p697 = pneg %p55
        $region14: #{our_model_forward.1} parent=11 // pred_check_branch
          %699 = sbr.rel (%p697) target = $region16
        $region15: #{our_model_forward.1} parent=11 // pred_region
          _
        $region16: #{our_model_forward.1} parent=11 // pred_fallthru
          _
        // Predicated region
        $region17: #{our_model_forward.1} parent=11 // pred_check
          %p700 = pneg %p76
        $region18: #{our_model_forward.1} parent=11 // pred_check_branch
          %702 = sbr.rel (%p700) target = $region20
        $region19: #{our_model_forward.1} parent=11 // pred_region
          _
        $region20: #{our_model_forward.1} parent=11 // pred_fallthru
          _
        // Predicated region
        $region21: #{our_model_forward.1} parent=11 // pred_check
          %p703 = pneg %p97
        $region22: #{our_model_forward.1} parent=11 // pred_check_branch
          %705 = sbr.rel (%p703) target = $region24
        $region23: #{our_model_forward.1} parent=11 // pred_region
          _
        $region24: #{our_model_forward.1} parent=11 // pred_fallthru
          _
        // Predicated region
        $region25: #{our_model_forward.1} parent=11 // pred_check
          %p706 = pneg %p118
        $region26: #{our_model_forward.1} parent=11 // pred_check_branch
          %708 = sbr.rel (%p706) target = $region28
        $region27: #{our_model_forward.1} parent=11 // pred_region
          _
        $region28: #{our_model_forward.1} parent=11 // pred_fallthru
          _
        // Predicated region
        $region29: #{our_model_forward.1} parent=11 // pred_check
          %p709 = pneg %p451
        $region30: #{our_model_forward.1} parent=11 // pred_check_branch
          %711 = sbr.rel (%p709) target = $region32
        $region31: #{our_model_forward.1} parent=11 // pred_region
          _
        $region32: #{our_model_forward.1} parent=11 // pred_fallthru
          _
        // Predicated region
        $region33: #{our_model_forward.1} parent=11 // pred_check
          %p712 = pneg %p472
        $region34: #{our_model_forward.1} parent=11 // pred_check_branch
          %714 = sbr.rel (%p712) target = $region36
        $region35: #{our_model_forward.1} parent=11 // pred_region
          _
        $region36: #{our_model_forward.1} parent=11 // pred_fallthru
          _
        // Predicated region
        $region37: #{our_model_forward.1} parent=11 // pred_check
          %p715 = pneg %p493
        $region38: #{our_model_forward.1} parent=11 // pred_check_branch
          %717 = sbr.rel (%p715) target = $region40
        $region39: #{our_model_forward.1} parent=11 // pred_region
          _
        $region40: #{our_model_forward.1} parent=11 // pred_fallthru
          _
        // Predicated region
        $region41: #{our_model_forward.1} parent=11 // pred_check
          %p718 = pneg %p514
        $region42: #{our_model_forward.1} parent=11 // pred_check_branch
          %720 = sbr.rel (%p718) target = $region44
        $region43: #{our_model_forward.1} parent=11 // pred_region
          _
        $region44: #{our_model_forward.1} parent=11 // pred_fallthru
          _
        // Predicated region
        $region45: #{our_model_forward.1} parent=11 // pred_check
          %p721 = pneg %p535
        $region46: #{our_model_forward.1} parent=11 // pred_check_branch
          %723 = sbr.rel (%p721) target = $region48
        $region47: #{our_model_forward.1} parent=11 // pred_region
          _
        $region48: #{our_model_forward.1} parent=11 // pred_fallthru
          _
        // Predicated region
        $region49: #{our_model_forward.1} parent=11 // pred_check
          %p724 = pneg %p556
        $region50: #{our_model_forward.1} parent=11 // pred_check_branch
          %726 = sbr.rel (%p724) target = $region52
        $region51: #{our_model_forward.1} parent=11 // pred_region
          _
        $region52: #{our_model_forward.1} parent=11 // pred_fallthru
          _
        // Predicated region
        $region53: #{our_model_forward.1} parent=11 // pred_check
          %p727 = pneg %p577
        $region54: #{our_model_forward.1} parent=11 // pred_check_branch
          %729 = sbr.rel (%p727) target = $region56
        $region55: #{our_model_forward.1} parent=11 // pred_region
          _
        $region56: #{our_model_forward.1} parent=11 // pred_fallthru
          _
        // Predicated region
        $region57: #{our_model_forward.1} parent=11 // pred_check
          %p730 = pneg %p598
        $region58: #{our_model_forward.1} parent=11 // pred_check_branch
          %732 = sbr.rel (%p730) target = $region60
        $region59: #{our_model_forward.1} parent=11 // pred_region
          _
        $region60: #{our_model_forward.1} parent=11 // pred_fallthru
          _
        // Predicated region
        $region61: #{our_model_forward.1} parent=11 // pred_check
          %p733 = pneg %p619
        $region62: #{our_model_forward.1} parent=11 // pred_check_branch
          %735 = sbr.rel (%p733) target = $region64
        $region63: #{our_model_forward.1} parent=11 // pred_region
          _
        $region64: #{our_model_forward.1} parent=11 // pred_fallthru
          _
        // Predicated region
        $region65: #{our_model_forward.1} parent=11 // pred_check
          %p736 = pneg %p640
        $region66: #{our_model_forward.1} parent=11 // pred_check_branch
          %738 = sbr.rel (%p736) target = $region68
        $region67: #{our_model_forward.1} parent=11 // pred_region
          _
        $region68: #{our_model_forward.1} parent=11 // pred_fallthru
          _
        // Predicated region
        $region69: #{our_model_forward.1} parent=11 // pred_check
          %p739 = pneg %p661
        $region70: #{our_model_forward.1} parent=11 // pred_check_branch
          %741 = sbr.rel (%p739) target = $region72
        $region71: #{our_model_forward.1} parent=11 // pred_region
          _
        $region72: #{our_model_forward.1} parent=11 // pred_fallthru
          _
      $region12: #{our_model_forward.1} parent=5 // pred_fallthru
        _
      %p742 = scmp.lt.s32.totalorder %s34, 4
      // Predicated region
      $region73: #{our_model_forward.1} parent=5 // pred_check
        %p743 = pneg %p742
      $region74: #{our_model_forward.1} parent=5 // pred_check_branch
        %745 = sbr.rel (%p743) target = $region76
      $region75: #{our_model_forward.1} parent=5 // pred_region
        // Predicated region
        $region77: #{our_model_forward.1} parent=75 // pred_check
          %p746 = pneg %p138
        $region78: #{our_model_forward.1} parent=75 // pred_check_branch
          %748 = sbr.rel (%p746) target = $region80
        $region79: #{our_model_forward.1} parent=75 // pred_region
          %p749 = scmp.lt.s32.totalorder %s34, 3
          %s750 = scalar_select %p749, %s34, 3
          %s751 = smul.addr %s750, 96
          %s752 = smul.addr %s751, 4
          %s753 = scalar_lea.vmem %s4, %s752
        $region80: #{our_model_forward.1} parent=75 // pred_fallthru
          _
        // Predicated region
        $region81: #{our_model_forward.1} parent=75 // pred_check
          %p754 = pneg %p164
        $region82: #{our_model_forward.1} parent=75 // pred_check_branch
          %756 = sbr.rel (%p754) target = $region84
        $region83: #{our_model_forward.1} parent=75 // pred_region
          %p757 = scmp.lt.s32.totalorder %s34, 3
          %s758 = scalar_select %p757, %s34, 3
          %s759 = smul.addr %s758, 6
          %s760 = scalar_lea.vmem %s5, %s759
        $region84: #{our_model_forward.1} parent=75 // pred_fallthru
          _
        // Predicated region
        $region85: #{our_model_forward.1} parent=75 // pred_check
          %p761 = pneg %p190
        $region86: #{our_model_forward.1} parent=75 // pred_check_branch
          %763 = sbr.rel (%p761) target = $region88
        $region87: #{our_model_forward.1} parent=75 // pred_region
          %p764 = scmp.lt.s32.totalorder %s34, 3
          %s765 = scalar_select %p764, %s34, 3
          %s766 = smul.addr %s765, 32
          %s767 = smul.addr %s766, 4
          %s768 = scalar_lea.vmem %s6, %s767
        $region88: #{our_model_forward.1} parent=75 // pred_fallthru
          _
        // Predicated region
        $region89: #{our_model_forward.1} parent=75 // pred_check
          %p769 = pneg %p216
        $region90: #{our_model_forward.1} parent=75 // pred_check_branch
          %771 = sbr.rel (%p769) target = $region92
        $region91: #{our_model_forward.1} parent=75 // pred_region
          %p772 = scmp.lt.s32.totalorder %s34, 3
          %s773 = scalar_select %p772, %s34, 3
          %s774 = scalar_lea.vmem %s7, %s773
        $region92: #{our_model_forward.1} parent=75 // pred_fallthru
          _
        // Predicated region
        $region93: #{our_model_forward.1} parent=75 // pred_check
          %p775 = pneg %p242
        $region94: #{our_model_forward.1} parent=75 // pred_check_branch
          %777 = sbr.rel (%p775) target = $region96
        $region95: #{our_model_forward.1} parent=75 // pred_region
          %p778 = scmp.lt.s32.totalorder %s34, 3
          %s779 = scalar_select %p778, %s34, 3
          %s780 = scalar_lea.vmem %s8, %s779
        $region96: #{our_model_forward.1} parent=75 // pred_fallthru
          _
        // Predicated region
        $region97: #{our_model_forward.1} parent=75 // pred_check
          %p781 = pneg %p268
        $region98: #{our_model_forward.1} parent=75 // pred_check_branch
          %783 = sbr.rel (%p781) target = $region100
        $region99: #{our_model_forward.1} parent=75 // pred_region
          %p784 = scmp.lt.s32.totalorder %s34, 3
          %s785 = scalar_select %p784, %s34, 3
          %s786 = scalar_lea.vmem %s9, %s785
        $region100: #{our_model_forward.1} parent=75 // pred_fallthru
          _
        // Predicated region
        $region101: #{our_model_forward.1} parent=75 // pred_check
          %p787 = pneg %p294
        $region102: #{our_model_forward.1} parent=75 // pred_check_branch
          %789 = sbr.rel (%p787) target = $region104
        $region103: #{our_model_forward.1} parent=75 // pred_region
          %p790 = scmp.lt.s32.totalorder %s34, 3
          %s791 = scalar_select %p790, %s34, 3
          %s792 = smul.addr %s791, 16
          %s793 = smul.addr %s792, 4
          %s794 = scalar_lea.vmem %s10, %s793
        $region104: #{our_model_forward.1} parent=75 // pred_fallthru
          _
        // Predicated region
        $region105: #{our_model_forward.1} parent=75 // pred_check
          %p795 = pneg %p320
        $region106: #{our_model_forward.1} parent=75 // pred_check_branch
          %797 = sbr.rel (%p795) target = $region108
        $region107: #{our_model_forward.1} parent=75 // pred_region
          %p798 = scmp.lt.s32.totalorder %s34, 3
          %s799 = scalar_select %p798, %s34, 3
          %s800 = scalar_lea.vmem %s11, %s799
        $region108: #{our_model_forward.1} parent=75 // pred_fallthru
          _
        // Predicated region
        $region109: #{our_model_forward.1} parent=75 // pred_check
          %p801 = pneg %p346
        $region110: #{our_model_forward.1} parent=75 // pred_check_branch
          %803 = sbr.rel (%p801) target = $region112
        $region111: #{our_model_forward.1} parent=75 // pred_region
          %p804 = scmp.lt.s32.totalorder %s34, 3
          %s805 = scalar_select %p804, %s34, 3
          %s806 = smul.addr %s805, 16
          %s807 = smul.addr %s806, 4
          %s808 = scalar_lea.vmem %s12, %s807
        $region112: #{our_model_forward.1} parent=75 // pred_fallthru
          _
        // Predicated region
        $region113: #{our_model_forward.1} parent=75 // pred_check
          %p809 = pneg %p372
        $region114: #{our_model_forward.1} parent=75 // pred_check_branch
          %811 = sbr.rel (%p809) target = $region116
        $region115: #{our_model_forward.1} parent=75 // pred_region
          %p812 = scmp.lt.s32.totalorder %s34, 3
          %s813 = scalar_select %p812, %s34, 3
          %s814 = scalar_lea.vmem %s13, %s813
        $region116: #{our_model_forward.1} parent=75 // pred_fallthru
          _
        // Predicated region
        $region117: #{our_model_forward.1} parent=75 // pred_check
          %p815 = pneg %p398
        $region118: #{our_model_forward.1} parent=75 // pred_check_branch
          %817 = sbr.rel (%p815) target = $region120
        $region119: #{our_model_forward.1} parent=75 // pred_region
          %p818 = scmp.lt.s32.totalorder %s34, 3
          %s819 = scalar_select %p818, %s34, 3
          %s820 = scalar_lea.vmem %s14, %s819
        $region120: #{our_model_forward.1} parent=75 // pred_fallthru
          _
        // Predicated region
        $region121: #{our_model_forward.1} parent=75 // pred_check
          %p821 = pneg %p424
        $region122: #{our_model_forward.1} parent=75 // pred_check_branch
          %823 = sbr.rel (%p821) target = $region124
        $region123: #{our_model_forward.1} parent=75 // pred_region
          %p824 = scmp.lt.s32.totalorder %s34, 3
          %s825 = scalar_select %p824, %s34, 3
          %s826 = scalar_lea.vmem %s15, %s825
        $region124: #{our_model_forward.1} parent=75 // pred_fallthru
          _
      $region76: #{our_model_forward.1} parent=5 // pred_fallthru
        _
      %p827 = scmp.le.s32.totalorder 1, %s34
      %p828 = scmp.lt.s32.totalorder %s34, 5
      %p829 = pnand %p827, %p828
      %p830 = pneg %p829
      // Predicated region
      $region125: #{our_model_forward.1} parent=5 // pred_check
        _
      $region126: #{our_model_forward.1} parent=5 // pred_check_branch
        %832 = sbr.rel (%p829) target = $region128
      $region127: #{our_model_forward.1} parent=5 // pred_region
        %s833 = ssub.s32 %s34, 1
        %p834 = pneg %p55
        %p835 = pneg %p52
        %p836 = pneg %p76
        %p837 = pneg %p73
        %p838 = pneg %p97
        %p839 = pneg %p94
        %p840 = pneg %p118
        %p841 = pneg %p115
        %p842 = scmp.lt.s32.totalorder %s39, 3
        %s843 = scalar_select %p842, %s39, 3
        %s844 = smul.addr %s843, 96
        %s845 = smul.addr %s844, 4
        %s846 = scalar_lea.vmem %s4, %s845
        %p847 = pneg %p144
        %p848 = pneg %p141
        %p849 = scmp.lt.s32.totalorder %s39, 3
        %s850 = scalar_select %p849, %s39, 3
        %s851 = smul.addr %s850, 6
        %s852 = scalar_lea.vmem %s5, %s851
        %p853 = pneg %p170
        %p854 = pneg %p167
        %p855 = scmp.lt.s32.totalorder %s39, 3
        %s856 = scalar_select %p855, %s39, 3
        %s857 = smul.addr %s856, 32
        %s858 = smul.addr %s857, 4
        %s859 = scalar_lea.vmem %s6, %s858
        %p860 = pneg %p196
        %p861 = pneg %p193
        %p862 = scmp.lt.s32.totalorder %s39, 3
        %s863 = scalar_select %p862, %s39, 3
        %s864 = scalar_lea.vmem %s7, %s863
        %p865 = pneg %p222
        %p866 = pneg %p219
        %p867 = scmp.lt.s32.totalorder %s39, 3
        %s868 = scalar_select %p867, %s39, 3
        %s869 = scalar_lea.vmem %s8, %s868
        %p870 = pneg %p248
        %p871 = pneg %p245
        %p872 = scmp.lt.s32.totalorder %s39, 3
        %s873 = scalar_select %p872, %s39, 3
        %s874 = scalar_lea.vmem %s9, %s873
        %p875 = pneg %p274
        %p876 = pneg %p271
        %p877 = scmp.lt.s32.totalorder %s39, 3
        %s878 = scalar_select %p877, %s39, 3
        %s879 = smul.addr %s878, 16
        %s880 = smul.addr %s879, 4
        %s881 = scalar_lea.vmem %s10, %s880
        %p882 = pneg %p300
        %p883 = pneg %p297
        %p884 = scmp.lt.s32.totalorder %s39, 3
        %s885 = scalar_select %p884, %s39, 3
        %s886 = scalar_lea.vmem %s11, %s885
        %p887 = pneg %p326
        %p888 = pneg %p323
        %p889 = scmp.lt.s32.totalorder %s39, 3
        %s890 = scalar_select %p889, %s39, 3
        %s891 = smul.addr %s890, 16
        %s892 = smul.addr %s891, 4
        %s893 = scalar_lea.vmem %s12, %s892
        %p894 = pneg %p352
        %p895 = pneg %p349
        %p896 = scmp.lt.s32.totalorder %s39, 3
        %s897 = scalar_select %p896, %s39, 3
        %s898 = scalar_lea.vmem %s13, %s897
        %p899 = pneg %p378
        %p900 = pneg %p375
        %p901 = scmp.lt.s32.totalorder %s39, 3
        %s902 = scalar_select %p901, %s39, 3
        %s903 = scalar_lea.vmem %s14, %s902
        %p904 = pneg %p404
        %p905 = pneg %p401
        %p906 = scmp.lt.s32.totalorder %s39, 3
        %s907 = scalar_select %p906, %s39, 3
        %s908 = scalar_lea.vmem %s15, %s907
        %p909 = pneg %p430
        %p910 = pneg %p427
        %p911 = pneg %p451
        %p912 = pneg %p448
        %p913 = pneg %p472
        %p914 = pneg %p469
        %p915 = pneg %p493
        %p916 = pneg %p490
        %p917 = pneg %p514
        %p918 = pneg %p511
        %p919 = pneg %p535
        %p920 = pneg %p532
        %p921 = pneg %p556
        %p922 = pneg %p553
        %p923 = pneg %p577
        %p924 = pneg %p574
        %p925 = pneg %p598
        %p926 = pneg %p595
        %p927 = pneg %p619
        %p928 = pneg %p616
        %p929 = pneg %p640
        %p930 = pneg %p637
        %p931 = pneg %p661
        %p932 = pneg %p658
        %p933 = pneg %p682
        %p934 = pneg %p679
        %p935 = scmp.lt.s32.totalorder %s39, 3
        %s936 = scalar_select %p935, %s39, 3
        %s937 = smul.addr %s936, 96
        %s938 = smul.addr %s937, 4
        %s939 = scalar_lea.vmem %s4, %s938
        %p940 = scmp.lt.s32.totalorder %s39, 3
        %s941 = scalar_select %p940, %s39, 3
        %s942 = smul.addr %s941, 6
        %s943 = scalar_lea.vmem %s5, %s942
        %p944 = scmp.lt.s32.totalorder %s39, 3
        %s945 = scalar_select %p944, %s39, 3
        %s946 = smul.addr %s945, 32
        %s947 = smul.addr %s946, 4
        %s948 = scalar_lea.vmem %s6, %s947
        %p949 = scmp.lt.s32.totalorder %s39, 3
        %s950 = scalar_select %p949, %s39, 3
        %s951 = scalar_lea.vmem %s7, %s950
        %p952 = scmp.lt.s32.totalorder %s39, 3
        %s953 = scalar_select %p952, %s39, 3
        %s954 = scalar_lea.vmem %s8, %s953
        %p955 = scmp.lt.s32.totalorder %s39, 3
        %s956 = scalar_select %p955, %s39, 3
        %s957 = scalar_lea.vmem %s9, %s956
        %p958 = scmp.lt.s32.totalorder %s39, 3
        %s959 = scalar_select %p958, %s39, 3
        %s960 = smul.addr %s959, 16
        %s961 = smul.addr %s960, 4
        %s962 = scalar_lea.vmem %s10, %s961
        %p963 = scmp.lt.s32.totalorder %s39, 3
        %s964 = scalar_select %p963, %s39, 3
        %s965 = scalar_lea.vmem %s11, %s964
        %p966 = scmp.lt.s32.totalorder %s39, 3
        %s967 = scalar_select %p966, %s39, 3
        %s968 = smul.addr %s967, 16
        %s969 = smul.addr %s968, 4
        %s970 = scalar_lea.vmem %s12, %s969
        %p971 = scmp.lt.s32.totalorder %s39, 3
        %s972 = scalar_select %p971, %s39, 3
        %s973 = scalar_lea.vmem %s13, %s972
        %p974 = scmp.lt.s32.totalorder %s39, 3
        %s975 = scalar_select %p974, %s39, 3
        %s976 = scalar_lea.vmem %s14, %s975
        %p977 = scmp.lt.s32.totalorder %s39, 3
        %s978 = scalar_select %p977, %s39, 3
        %s979 = scalar_lea.vmem %s15, %s978
        %p981 = scmp.eq.s32.totalorder %s39, 0
        // Predicated region
        $region129: #{our_model_forward.1} parent=127 // pred_check
          %p982 = pneg %p981
        $region130: #{our_model_forward.1} parent=127 // pred_check_branch
          %984 = sbr.rel (%p982) target = $region132
        $region131: #{our_model_forward.1} parent=127 // pred_region
          %v985 = vld [vmem:[%s0] sm:$0xff]
          %v986 = vld [vmem:[%s0 + $0x8] sm:$0xff]
          %v987 = vld [vmem:[%s0 + $0x10] sm:$0xff]
          %v988 = vld [vmem:[%s0 + $0x18] sm:$0xff]
          %v989 = vld [vmem:[%s0 + $0x20] sm:$0xff]
          %v990 = vld [vmem:[%s0 + $0x28] sm:$0xff]
          %v991 = vld [vmem:[%s0 + $0x30] sm:$0xff]
          %v992 = vld [vmem:[%s0 + $0x38] sm:$0xff]
          %v993 = vpack.c.bf16 %v986, %v985
          %v994 = vpack.c.bf16 %v988, %v987
          %v995 = vpack.c.bf16 %v990, %v989
          %v996 = vpack.c.bf16 %v992, %v991
          %v997 = vld [vmem:[%s2] sm:$0xf]
          %v998 = vld [vmem:[%s2 + $0x4] sm:$0xf]
          %v999 = vld [vmem:[%s3] sm:$0x1]
          %v1001 = vlaneseq
          %v1002 = vshrl.u32 %v1001, 7
          %v1003 = vsub.s32 0, %v1002
          %v1004 = vrot.slane %v999, %v1003
          %v1008 = vunpack.c.l.b16 %v997
          %v1009 = vunpack.c.l.b16 %v998
          %v1010 = vpack.c.b16 %v1009, %v1008
          %vm1012 = vcmask 130048
          %v1014 = vsel %vm1012, %v993, 0
          %v1017 = vsel %vm1012, %v994, 0
          %v1020 = vsel %vm1012, %v995, 0
          %v1023 = vsel %vm1012, %v996, 0
          %1025 = vmatprep.subr.bf16.mxu0 0
          %1026 = vmatpush1.bf16.msra.mxu0 %v1010
          %1027 = vmatprep.subr.bf16.mxu0 0
          %1028 = vmatpush1.bf16.msra.mxu0 0
          %1029 = vmatprep.subr.bf16.mxu0 0
          %1030 = vmatpush1.bf16.msra.mxu0 0
          %1031 = vmatprep.subr.bf16.mxu0 0
          %1032 = vmatpush1.bf16.msra.mxu0 0
          %1033 = vmatprep.subr.bf16.mxu0 0
          %1034 = vmatpush1.bf16.msra.mxu0 0
          %1035 = vmatprep.subr.bf16.mxu0 0
          %1036 = vmatpush1.bf16.msra.mxu0 0
          %1037 = vmatprep.subr.bf16.mxu0 0
          %1038 = vmatpush1.bf16.msra.mxu0 0
          %1039 = vmatprep.subr.bf16.mxu0 0
          %1040 = vmatpush1.bf16.msra.mxu0 0
          %1041 = vmatprep.subr.bf16.mxu0 0
          %1042 = vmatpush1.bf16.msra.mxu0 0
          %1043 = vmatprep.subr.bf16.mxu0 0
          %1044 = vmatpush1.bf16.msra.mxu0 0
          %1045 = vmatprep.subr.bf16.mxu0 0
          %1046 = vmatpush1.bf16.msra.mxu0 0
          %1047 = vmatprep.subr.bf16.mxu0 0
          %1048 = vmatpush1.bf16.msra.mxu0 0
          %1049 = vmatprep.subr.bf16.mxu0 0
          %1050 = vmatpush1.bf16.msra.mxu0 0
          %1051 = vmatprep.subr.bf16.mxu0 0
          %1052 = vmatpush1.bf16.msra.mxu0 0
          %1053 = vmatprep.subr.bf16.mxu0 0
          %1054 = vmatpush1.bf16.msra.mxu0 0
          %1055 = vmatprep.subr.bf16.mxu0 0
          %1056 = vmatpush1.bf16.msra.mxu0 0
          %1057 = vmatprep.mubr.bf16.mxu0 0
          %1058 = vmatmul.mubr.bf16.gmra.mrb[0].mxu0 %v1014
          %v1059 = vpop.f32.mrb[0].mxu0
          %v1060 = vadd.f32 %v1004, %v1059
          %v1061 = vpop.f32.mrb[0].mxu0
          %v1062 = vpop.f32.mrb[0].mxu0
          %v1063 = vadd.f32 %v1004, %v1062
          %v1064 = vpop.f32.mrb[0].mxu0
          %1065 = vmatprep.mubr.bf16.mxu0 0
          %1066 = vmatmul.mubr.bf16.gmra.mrb[0].mxu0 %v1017
          %v1067 = vpop.f32.mrb[0].mxu0
          %v1068 = vadd.f32 %v1004, %v1067
          %v1069 = vpop.f32.mrb[0].mxu0
          %v1070 = vpop.f32.mrb[0].mxu0
          %v1071 = vadd.f32 %v1004, %v1070
          %v1072 = vpop.f32.mrb[0].mxu0
          %1073 = vmatprep.mubr.bf16.mxu0 0
          %1074 = vmatmul.mubr.bf16.gmra.mrb[0].mxu0 %v1020
          %v1075 = vpop.f32.mrb[0].mxu0
          %v1076 = vadd.f32 %v1004, %v1075
          %v1077 = vpop.f32.mrb[0].mxu0
          %v1078 = vpop.f32.mrb[0].mxu0
          %v1079 = vadd.f32 %v1004, %v1078
          %v1080 = vpop.f32.mrb[0].mxu0
          %1081 = vmatprep.mubr.bf16.mxu0 0
          %1082 = vmatmul.mubr.bf16.gmra.mrb[0].mxu0 %v1023
          %v1083 = vpop.f32.mrb[0].mxu0
          %v1084 = vadd.f32 %v1004, %v1083
          %v1085 = vpop.f32.mrb[0].mxu0
          %v1086 = vpop.f32.mrb[0].mxu0
          %v1087 = vadd.f32 %v1004, %v1086
          %v1088 = vpop.f32.mrb[0].mxu0
          %1089 = vdwg.mxu0
          %v1090 = vld [vmem:[%s1] sm:$0xff]
          %v1091 = vld [vmem:[%s1 + $0x8] sm:$0xff]
          %v1092 = vld [vmem:[%s1 + $0x10] sm:$0xff]
          %v1093 = vld [vmem:[%s1 + $0x18] sm:$0xff]
          %v1094 = vld [vmem:[%s1 + $0x20] sm:$0xff]
          %v1095 = vld [vmem:[%s1 + $0x28] sm:$0xff]
          %v1096 = vld [vmem:[%s1 + $0x30] sm:$0xff]
          %v1097 = vld [vmem:[%s1 + $0x38] sm:$0xff]
          %v1098 = vadd.f32 %v1060, %v1090
          %v1099 = vadd.f32 %v1063, %v1091
          %v1100 = vadd.f32 %v1068, %v1092
          %v1101 = vadd.f32 %v1071, %v1093
          %v1102 = vadd.f32 %v1076, %v1094
          %v1103 = vadd.f32 %v1079, %v1095
          %v1104 = vadd.f32 %v1084, %v1096
          %v1105 = vadd.f32 %v1087, %v1097
          %1106 = vst [vmem:[#allocation2] sm:$0xff] %v1098
          %1107 = vst [vmem:[#allocation2 + $0x8] sm:$0xff] %v1099
          %1108 = vst [vmem:[#allocation2 + $0x10] sm:$0xff] %v1100
          %1109 = vst [vmem:[#allocation2 + $0x18] sm:$0xff] %v1101
          %1110 = vst [vmem:[#allocation2 + $0x20] sm:$0xff] %v1102
          %1111 = vst [vmem:[#allocation2 + $0x28] sm:$0xff] %v1103
          %1112 = vst [vmem:[#allocation2 + $0x30] sm:$0xff] %v1104
          %1113 = vst [vmem:[#allocation2 + $0x38] sm:$0xff] %v1105
        $region132: #{our_model_forward.1} parent=127 // pred_fallthru
          _
        %v1114 = vlaneseq
        %v1115 = vand.u32 %v1114, 127
        %vm1116 = vcmp.lt.s32.totalorder %v1115, 96
        %v1117 = vlaneseq
        %v1118 = vshrl.u32 %v1117, 7
        %v1119 = vadd.s32 %v1118, 8
        %v1120 = vadd.s32 %v1118, 16
        %v1121 = vadd.s32 %v1118, 24
        %v1122 = vadd.s32 %v1118, 32
        %v1123 = vadd.s32 %v1118, 40
        %v1124 = vadd.s32 %v1118, 48
        %v1125 = vadd.s32 %v1118, 56
        %v1126 = vshra.s32 %v1118, 2
        %v1127 = vshra.s32 %v1119, 2
        %v1128 = vshra.s32 %v1120, 2
        %v1129 = vshra.s32 %v1121, 2
        %v1130 = vshra.s32 %v1122, 2
        %v1131 = vshra.s32 %v1123, 2
        %v1132 = vshra.s32 %v1124, 2
        %v1133 = vshra.s32 %v1125, 2
        %v1134 = vshra.s32 %v1115, 2
        %vm1135 = vcmp.eq.s32.totalorder %v1126, %v1134
        %vm1136 = vcmp.eq.s32.totalorder %v1127, %v1134
        %vm1137 = vcmp.eq.s32.totalorder %v1128, %v1134
        %vm1138 = vcmp.eq.s32.totalorder %v1129, %v1134
        %vm1139 = vcmp.eq.s32.totalorder %v1130, %v1134
        %vm1140 = vcmp.eq.s32.totalorder %v1131, %v1134
        %vm1141 = vcmp.eq.s32.totalorder %v1132, %v1134
        %vm1142 = vcmp.eq.s32.totalorder %v1133, %v1134
        %v1143 = vld [vmem:[#allocation2] sm:$0xff]
        %v1144 = vld [vmem:[#allocation2 + $0x8] sm:$0xff]
        %v1145 = vld [vmem:[#allocation2 + $0x10] sm:$0xff]
        %v1146 = vld [vmem:[#allocation2 + $0x18] sm:$0xff]
        %v1147 = vld [vmem:[#allocation2 + $0x20] sm:$0xff]
        %v1148 = vld [vmem:[#allocation2 + $0x28] sm:$0xff]
        %v1149 = vld [vmem:[#allocation2 + $0x30] sm:$0xff]
        %v1150 = vld [vmem:[#allocation2 + $0x38] sm:$0xff]
        %v1151 = vpack.c.bf16 %v1144, %v1143
        %v1152 = vpack.c.bf16 %v1146, %v1145
        %v1153 = vpack.c.bf16 %v1148, %v1147
        %v1154 = vpack.c.bf16 %v1150, %v1149
        %v1155 = vld [vmem:[%s939] sm:$0xf]
        %v1156 = vld [vmem:[%s939 + $0x18] sm:$0xf]
        %v1157 = vld [vmem:[%s939 + $0x30] sm:$0xf]
        %v1158 = vld [vmem:[%s939 + $0x48] sm:$0xf]
        %v1159 = vld [vmem:[%s939 + $0x60] sm:$0xf]
        %v1160 = vld [vmem:[%s939 + $0x78] sm:$0xf]
        %v1161 = vld [vmem:[%s939 + $0x90] sm:$0xf]
        %v1162 = vld [vmem:[%s939 + $0xa8] sm:$0xf]
        %v1163 = vld [vmem:[%s939 + $0xc0] sm:$0xf]
        %v1164 = vld [vmem:[%s939 + $0xd8] sm:$0xf]
        %v1165 = vld [vmem:[%s939 + $0xf0] sm:$0xf]
        %v1166 = vld [vmem:[%s939 + $0x108] sm:$0xf]
        %v1167 = vld [vmem:[%s939 + $0x120] sm:$0xf]
        %v1168 = vld [vmem:[%s939 + $0x138] sm:$0xf]
        %v1169 = vld [vmem:[%s939 + $0x150] sm:$0xf]
        %v1170 = vld [vmem:[%s939 + $0x168] sm:$0xf]
        %v1171 = vld [vmem:[%s943] sm:$0x1]
        %v1173 = vlaneseq
        %v1174 = vshrl.u32 %v1173, 7
        %v1175 = vsub.s32 0, %v1174
        %v1176 = vrot.slane %v1171, %v1175
        %v1194 = vunpack.c.l.b16 %v1155
        %v1195 = vunpack.c.l.b16 %v1156
        %v1196 = vunpack.c.l.b16 %v1157
        %v1197 = vunpack.c.l.b16 %v1158
        %v1198 = vunpack.c.l.b16 %v1159
        %v1199 = vunpack.c.l.b16 %v1160
        %v1200 = vunpack.c.l.b16 %v1161
        %v1201 = vunpack.c.l.b16 %v1162
        %v1202 = vunpack.c.l.b16 %v1163
        %v1203 = vunpack.c.l.b16 %v1164
        %v1204 = vunpack.c.l.b16 %v1165
        %v1205 = vunpack.c.l.b16 %v1166
        %v1206 = vunpack.c.l.b16 %v1167
        %v1207 = vunpack.c.l.b16 %v1168
        %v1208 = vunpack.c.l.b16 %v1169
        %v1209 = vunpack.c.l.b16 %v1170
        %v1210 = vpack.c.b16 %v1195, %v1194
        %v1211 = vpack.c.b16 %v1197, %v1196
        %v1212 = vpack.c.b16 %v1199, %v1198
        %v1213 = vpack.c.b16 %v1201, %v1200
        %v1214 = vpack.c.b16 %v1203, %v1202
        %v1215 = vpack.c.b16 %v1205, %v1204
        %v1216 = vpack.c.b16 %v1207, %v1206
        %v1217 = vpack.c.b16 %v1209, %v1208
        %1226 = vmatprep.subr.bf16.mxu0 0
        %1227 = vmatpush1.bf16.msra.mxu0 %v1210
        %1228 = vmatprep.subr.bf16.mxu0 0
        %1229 = vmatpush1.bf16.msra.mxu0 %v1211
        %1230 = vmatprep.subr.bf16.mxu0 0
        %1231 = vmatpush1.bf16.msra.mxu0 %v1212
        %1232 = vmatprep.subr.bf16.mxu0 0
        %1233 = vmatpush1.bf16.msra.mxu0 %v1213
        %1234 = vmatprep.subr.bf16.mxu0 0
        %1235 = vmatpush1.bf16.msra.mxu0 %v1214
        %1236 = vmatprep.subr.bf16.mxu0 0
        %1237 = vmatpush1.bf16.msra.mxu0 %v1215
        %1238 = vmatprep.subr.bf16.mxu0 0
        %1239 = vmatpush1.bf16.msra.mxu0 %v1216
        %1240 = vmatprep.subr.bf16.mxu0 0
        %1241 = vmatpush1.bf16.msra.mxu0 %v1217
        %1242 = vmatprep.subr.bf16.mxu0 0
        %1243 = vmatpush1.bf16.msra.mxu0 0
        %1244 = vmatprep.subr.bf16.mxu0 0
        %1245 = vmatpush1.bf16.msra.mxu0 0
        %1246 = vmatprep.subr.bf16.mxu0 0
        %1247 = vmatpush1.bf16.msra.mxu0 0
        %1248 = vmatprep.subr.bf16.mxu0 0
        %1249 = vmatpush1.bf16.msra.mxu0 0
        %1250 = vmatprep.subr.bf16.mxu0 0
        %1251 = vmatpush1.bf16.msra.mxu0 0
        %1252 = vmatprep.subr.bf16.mxu0 0
        %1253 = vmatpush1.bf16.msra.mxu0 0
        %1254 = vmatprep.subr.bf16.mxu0 0
        %1255 = vmatpush1.bf16.msra.mxu0 0
        %1256 = vmatprep.subr.bf16.mxu0 0
        %1257 = vmatpush1.bf16.msra.mxu0 0
        %1258 = vmatprep.mubr.bf16.mxu0 0
        %1259 = vmatmul.mubr.bf16.gmra.mrb[0].mxu0 %v1151
        %v1260 = vpop.f32.mrb[0].mxu0
        %v1261 = vadd.f32 %v1176, %v1260
        %v1262 = vpop.f32.mrb[0].mxu0
        %v1263 = vpop.f32.mrb[0].mxu0
        %v1264 = vadd.f32 %v1176, %v1263
        %v1265 = vpop.f32.mrb[0].mxu0
        %1266 = vmatprep.mubr.bf16.mxu0 0
        %1267 = vmatmul.mubr.bf16.gmra.mrb[0].mxu0 %v1152
        %v1268 = vpop.f32.mrb[0].mxu0
        %v1269 = vadd.f32 %v1176, %v1268
        %v1270 = vpop.f32.mrb[0].mxu0
        %v1271 = vpop.f32.mrb[0].mxu0
        %v1272 = vadd.f32 %v1176, %v1271
        %v1273 = vpop.f32.mrb[0].mxu0
        %1274 = vmatprep.mubr.bf16.mxu0 0
        %1275 = vmatmul.mubr.bf16.gmra.mrb[0].mxu0 %v1153
        %v1276 = vpop.f32.mrb[0].mxu0
        %v1277 = vadd.f32 %v1176, %v1276
        %v1278 = vpop.f32.mrb[0].mxu0
        %v1279 = vpop.f32.mrb[0].mxu0
        %v1280 = vadd.f32 %v1176, %v1279
        %v1281 = vpop.f32.mrb[0].mxu0
        %1282 = vmatprep.mubr.bf16.mxu0 0
        %1283 = vmatmul.mubr.bf16.gmra.mrb[0].mxu0 %v1154
        %v1284 = vpop.f32.mrb[0].mxu0
        %v1285 = vadd.f32 %v1176, %v1284
        %v1286 = vpop.f32.mrb[0].mxu0
        %v1287 = vpop.f32.mrb[0].mxu0
        %v1288 = vadd.f32 %v1176, %v1287
        %v1289 = vpop.f32.mrb[0].mxu0
        %1290 = vdwg.mxu0
        %v1291 = vld [vmem:[%s939 + $0x8] sm:$0xf]
        %v1292 = vld [vmem:[%s939 + $0x20] sm:$0xf]
        %v1293 = vld [vmem:[%s939 + $0x38] sm:$0xf]
        %v1294 = vld [vmem:[%s939 + $0x50] sm:$0xf]
        %v1295 = vld [vmem:[%s939 + $0x68] sm:$0xf]
        %v1296 = vld [vmem:[%s939 + $0x80] sm:$0xf]
        %v1297 = vld [vmem:[%s939 + $0x98] sm:$0xf]
        %v1298 = vld [vmem:[%s939 + $0xb0] sm:$0xf]
        %v1299 = vld [vmem:[%s939 + $0xc8] sm:$0xf]
        %v1300 = vld [vmem:[%s939 + $0xe0] sm:$0xf]
        %v1301 = vld [vmem:[%s939 + $0xf8] sm:$0xf]
        %v1302 = vld [vmem:[%s939 + $0x110] sm:$0xf]
        %v1303 = vld [vmem:[%s939 + $0x128] sm:$0xf]
        %v1304 = vld [vmem:[%s939 + $0x140] sm:$0xf]
        %v1305 = vld [vmem:[%s939 + $0x158] sm:$0xf]
        %v1306 = vld [vmem:[%s939 + $0x170] sm:$0xf]
        %v1307 = vld [vmem:[%s943 + $0x2] sm:$0x1]
        %v1309 = vlaneseq
        %v1310 = vshrl.u32 %v1309, 7
        %v1311 = vsub.s32 0, %v1310
        %v1312 = vrot.slane %v1307, %v1311
        %v1330 = vunpack.c.l.b16 %v1291
        %v1331 = vunpack.c.l.b16 %v1292
        %v1332 = vunpack.c.l.b16 %v1293
        %v1333 = vunpack.c.l.b16 %v1294
        %v1334 = vunpack.c.l.b16 %v1295
        %v1335 = vunpack.c.l.b16 %v1296
        %v1336 = vunpack.c.l.b16 %v1297
        %v1337 = vunpack.c.l.b16 %v1298
        %v1338 = vunpack.c.l.b16 %v1299
        %v1339 = vunpack.c.l.b16 %v1300
        %v1340 = vunpack.c.l.b16 %v1301
        %v1341 = vunpack.c.l.b16 %v1302
        %v1342 = vunpack.c.l.b16 %v1303
        %v1343 = vunpack.c.l.b16 %v1304
        %v1344 = vunpack.c.l.b16 %v1305
        %v1345 = vunpack.c.l.b16 %v1306
        %v1346 = vpack.c.b16 %v1331, %v1330
        %v1347 = vpack.c.b16 %v1333, %v1332
        %v1348 = vpack.c.b16 %v1335, %v1334
        %v1349 = vpack.c.b16 %v1337, %v1336
        %v1350 = vpack.c.b16 %v1339, %v1338
        %v1351 = vpack.c.b16 %v1341, %v1340
        %v1352 = vpack.c.b16 %v1343, %v1342
        %v1353 = vpack.c.b16 %v1345, %v1344
        %1362 = vmatprep.subr.bf16.mxu0 0
        %1363 = vmatpush1.bf16.msra.mxu0 %v1346
        %1364 = vmatprep.subr.bf16.mxu0 0
        %1365 = vmatpush1.bf16.msra.mxu0 %v1347
        %1366 = vmatprep.subr.bf16.mxu0 0
        %1367 = vmatpush1.bf16.msra.mxu0 %v1348
        %1368 = vmatprep.subr.bf16.mxu0 0
        %1369 = vmatpush1.bf16.msra.mxu0 %v1349
        %1370 = vmatprep.subr.bf16.mxu0 0
        %1371 = vmatpush1.bf16.msra.mxu0 %v1350
        %1372 = vmatprep.subr.bf16.mxu0 0
        %1373 = vmatpush1.bf16.msra.mxu0 %v1351
        %1374 = vmatprep.subr.bf16.mxu0 0
        %1375 = vmatpush1.bf16.msra.mxu0 %v1352
        %1376 = vmatprep.subr.bf16.mxu0 0
        %1377 = vmatpush1.bf16.msra.mxu0 %v1353
        %1378 = vmatprep.subr.bf16.mxu0 0
        %1379 = vmatpush1.bf16.msra.mxu0 0
        %1380 = vmatprep.subr.bf16.mxu0 0
        %1381 = vmatpush1.bf16.msra.mxu0 0
        %1382 = vmatprep.subr.bf16.mxu0 0
        %1383 = vmatpush1.bf16.msra.mxu0 0
        %1384 = vmatprep.subr.bf16.mxu0 0
        %1385 = vmatpush1.bf16.msra.mxu0 0
        %1386 = vmatprep.subr.bf16.mxu0 0
        %1387 = vmatpush1.bf16.msra.mxu0 0
        %1388 = vmatprep.subr.bf16.mxu0 0
        %1389 = vmatpush1.bf16.msra.mxu0 0
        %1390 = vmatprep.subr.bf16.mxu0 0
        %1391 = vmatpush1.bf16.msra.mxu0 0
        %1392 = vmatprep.subr.bf16.mxu0 0
        %1393 = vmatpush1.bf16.msra.mxu0 0
        %1394 = vmatprep.mubr.bf16.mxu0 0
        %1395 = vmatmul.mubr.bf16.gmra.mrb[0].mxu0 %v1151
        %v1396 = vpop.f32.mrb[0].mxu0
        %v1397 = vadd.f32 %v1312, %v1396
        %v1398 = vpop.f32.mrb[0].mxu0
        %v1399 = vpop.f32.mrb[0].mxu0
        %v1400 = vadd.f32 %v1312, %v1399
        %v1401 = vpop.f32.mrb[0].mxu0
        %1402 = vmatprep.mubr.bf16.mxu0 0
        %1403 = vmatmul.mubr.bf16.gmra.mrb[0].mxu0 %v1152
        %v1404 = vpop.f32.mrb[0].mxu0
        %v1405 = vadd.f32 %v1312, %v1404
        %v1406 = vpop.f32.mrb[0].mxu0
        %v1407 = vpop.f32.mrb[0].mxu0
        %v1408 = vadd.f32 %v1312, %v1407
        %v1409 = vpop.f32.mrb[0].mxu0
        %1410 = vmatprep.mubr.bf16.mxu0 0
        %1411 = vmatmul.mubr.bf16.gmra.mrb[0].mxu0 %v1153
        %v1412 = vpop.f32.mrb[0].mxu0
        %v1413 = vadd.f32 %v1312, %v1412
        %v1414 = vpop.f32.mrb[0].mxu0
        %v1415 = vpop.f32.mrb[0].mxu0
        %v1416 = vadd.f32 %v1312, %v1415
        %v1417 = vpop.f32.mrb[0].mxu0
        %1418 = vmatprep.mubr.bf16.mxu0 0
        %1419 = vmatmul.mubr.bf16.gmra.mrb[0].mxu0 %v1154
        %v1420 = vpop.f32.mrb[0].mxu0
        %v1421 = vadd.f32 %v1312, %v1420
        %v1422 = vpop.f32.mrb[0].mxu0
        %v1423 = vpop.f32.mrb[0].mxu0
        %v1424 = vadd.f32 %v1312, %v1423
        %v1425 = vpop.f32.mrb[0].mxu0
        %1426 = vdwg.mxu0
        %v1427 = vld [vmem:[%s939 + $0x10] sm:$0xf]
        %v1428 = vld [vmem:[%s939 + $0x28] sm:$0xf]
        %v1429 = vld [vmem:[%s939 + $0x40] sm:$0xf]
        %v1430 = vld [vmem:[%s939 + $0x58] sm:$0xf]
        %v1431 = vld [vmem:[%s939 + $0x70] sm:$0xf]
        %v1432 = vld [vmem:[%s939 + $0x88] sm:$0xf]
        %v1433 = vld [vmem:[%s939 + $0xa0] sm:$0xf]
        %v1434 = vld [vmem:[%s939 + $0xb8] sm:$0xf]
        %v1435 = vld [vmem:[%s939 + $0xd0] sm:$0xf]
        %v1436 = vld [vmem:[%s939 + $0xe8] sm:$0xf]
        %v1437 = vld [vmem:[%s939 + $0x100] sm:$0xf]
        %v1438 = vld [vmem:[%s939 + $0x118] sm:$0xf]
        %v1439 = vld [vmem:[%s939 + $0x130] sm:$0xf]
        %v1440 = vld [vmem:[%s939 + $0x148] sm:$0xf]
        %v1441 = vld [vmem:[%s939 + $0x160] sm:$0xf]
        %v1442 = vld [vmem:[%s939 + $0x178] sm:$0xf]
        %v1443 = vld [vmem:[%s943 + $0x4] sm:$0x1]
        %v1445 = vlaneseq
        %v1446 = vshrl.u32 %v1445, 7
        %v1447 = vsub.s32 0, %v1446
        %v1448 = vrot.slane %v1443, %v1447
        %v1466 = vunpack.c.l.b16 %v1427
        %v1467 = vunpack.c.l.b16 %v1428
        %v1468 = vunpack.c.l.b16 %v1429
        %v1469 = vunpack.c.l.b16 %v1430
        %v1470 = vunpack.c.l.b16 %v1431
        %v1471 = vunpack.c.l.b16 %v1432
        %v1472 = vunpack.c.l.b16 %v1433
        %v1473 = vunpack.c.l.b16 %v1434
        %v1474 = vunpack.c.l.b16 %v1435
        %v1475 = vunpack.c.l.b16 %v1436
        %v1476 = vunpack.c.l.b16 %v1437
        %v1477 = vunpack.c.l.b16 %v1438
        %v1478 = vunpack.c.l.b16 %v1439
        %v1479 = vunpack.c.l.b16 %v1440
        %v1480 = vunpack.c.l.b16 %v1441
        %v1481 = vunpack.c.l.b16 %v1442
        %v1482 = vpack.c.b16 %v1467, %v1466
        %v1483 = vpack.c.b16 %v1469, %v1468
        %v1484 = vpack.c.b16 %v1471, %v1470
        %v1485 = vpack.c.b16 %v1473, %v1472
        %v1486 = vpack.c.b16 %v1475, %v1474
        %v1487 = vpack.c.b16 %v1477, %v1476
        %v1488 = vpack.c.b16 %v1479, %v1478
        %v1489 = vpack.c.b16 %v1481, %v1480
        %1498 = vmatprep.subr.bf16.mxu0 0
        %1499 = vmatpush1.bf16.msra.mxu0 %v1482
        %1500 = vmatprep.subr.bf16.mxu0 0
        %1501 = vmatpush1.bf16.msra.mxu0 %v1483
        %1502 = vmatprep.subr.bf16.mxu0 0
        %1503 = vmatpush1.bf16.msra.mxu0 %v1484
        %1504 = vmatprep.subr.bf16.mxu0 0
        %1505 = vmatpush1.bf16.msra.mxu0 %v1485
        %1506 = vmatprep.subr.bf16.mxu0 0
        %1507 = vmatpush1.bf16.msra.mxu0 %v1486
        %1508 = vmatprep.subr.bf16.mxu0 0
        %1509 = vmatpush1.bf16.msra.mxu0 %v1487
        %1510 = vmatprep.subr.bf16.mxu0 0
        %1511 = vmatpush1.bf16.msra.mxu0 %v1488
        %1512 = vmatprep.subr.bf16.mxu0 0
        %1513 = vmatpush1.bf16.msra.mxu0 %v1489
        %1514 = vmatprep.subr.bf16.mxu0 0
        %1515 = vmatpush1.bf16.msra.mxu0 0
        %1516 = vmatprep.subr.bf16.mxu0 0
        %1517 = vmatpush1.bf16.msra.mxu0 0
        %1518 = vmatprep.subr.bf16.mxu0 0
        %1519 = vmatpush1.bf16.msra.mxu0 0
        %1520 = vmatprep.subr.bf16.mxu0 0
        %1521 = vmatpush1.bf16.msra.mxu0 0
        %1522 = vmatprep.subr.bf16.mxu0 0
        %1523 = vmatpush1.bf16.msra.mxu0 0
        %1524 = vmatprep.subr.bf16.mxu0 0
        %1525 = vmatpush1.bf16.msra.mxu0 0
        %1526 = vmatprep.subr.bf16.mxu0 0
        %1527 = vmatpush1.bf16.msra.mxu0 0
        %1528 = vmatprep.subr.bf16.mxu0 0
        %1529 = vmatpush1.bf16.msra.mxu0 0
        %1530 = vmatprep.mubr.bf16.mxu0 0
        %1531 = vmatmul.mubr.bf16.gmra.mrb[0].mxu0 %v1151
        %v1532 = vpop.f32.mrb[0].mxu0
        %v1533 = vadd.f32 %v1448, %v1532
        %v1534 = vpop.f32.mrb[0].mxu0
        %v1535 = vpop.f32.mrb[0].mxu0
        %v1536 = vadd.f32 %v1448, %v1535
        %v1537 = vpop.f32.mrb[0].mxu0
        %1538 = vmatprep.mubr.bf16.mxu0 0
        %1539 = vmatmul.mubr.bf16.gmra.mrb[0].mxu0 %v1152
        %v1540 = vpop.f32.mrb[0].mxu0
        %v1541 = vadd.f32 %v1448, %v1540
        %v1542 = vpop.f32.mrb[0].mxu0
        %v1543 = vpop.f32.mrb[0].mxu0
        %v1544 = vadd.f32 %v1448, %v1543
        %v1545 = vpop.f32.mrb[0].mxu0
        %1546 = vmatprep.mubr.bf16.mxu0 0
        %1547 = vmatmul.mubr.bf16.gmra.mrb[0].mxu0 %v1153
        %v1548 = vpop.f32.mrb[0].mxu0
        %v1549 = vadd.f32 %v1448, %v1548
        %v1550 = vpop.f32.mrb[0].mxu0
        %v1551 = vpop.f32.mrb[0].mxu0
        %v1552 = vadd.f32 %v1448, %v1551
        %v1553 = vpop.f32.mrb[0].mxu0
        %1554 = vmatprep.mubr.bf16.mxu0 0
        %1555 = vmatmul.mubr.bf16.gmra.mrb[0].mxu0 %v1154
        %v1556 = vpop.f32.mrb[0].mxu0
        %v1557 = vadd.f32 %v1448, %v1556
        %v1558 = vpop.f32.mrb[0].mxu0
        %v1559 = vpop.f32.mrb[0].mxu0
        %v1560 = vadd.f32 %v1448, %v1559
        %v1561 = vpop.f32.mrb[0].mxu0
        %1562 = vdwg.mxu0
        %v1563 = vpack.c.bf16 %v1264, %v1261
        %v1564 = vpack.c.bf16 %v1272, %v1269
        %v1565 = vpack.c.bf16 %v1280, %v1277
        %v1566 = vpack.c.bf16 %v1288, %v1285
        %v1567 = vpack.c.bf16 %v1400, %v1397
        %v1568 = vpack.c.bf16 %v1408, %v1405
        %v1569 = vpack.c.bf16 %v1416, %v1413
        %v1570 = vpack.c.bf16 %v1424, %v1421
        %1571 = vmatprep.subr.bf16.mxu0 0
        %1572 = vmatpush1.bf16.xpose.msra.mxu0 %v1567
        %1573 = vmatprep.subr.bf16.mxu0 0
        %1574 = vmatpush1.bf16.xpose.msra.mxu0 %v1568
        %1575 = vmatprep.subr.bf16.mxu0 0
        %1576 = vmatpush1.bf16.xpose.msra.mxu0 %v1569
        %1577 = vmatprep.subr.bf16.mxu0 0
        %1578 = vmatpush1.bf16.xpose.msra.mxu0 %v1570
        %1579 = vmatprep.subr.bf16.mxu0 0
        %1580 = vmatpush1.bf16.xpose.msra.mxu0 0
        %1581 = vmatprep.subr.bf16.mxu0 0
        %1582 = vmatpush1.bf16.xpose.msra.mxu0 0
        %1583 = vmatprep.subr.bf16.mxu0 0
        %1584 = vmatpush1.bf16.xpose.msra.mxu0 0
        %1585 = vmatprep.subr.bf16.mxu0 0
        %1586 = vmatpush1.bf16.xpose.msra.mxu0 0
        %1587 = vmatprep.subr.bf16.mxu0 0
        %1588 = vmatpush1.bf16.xpose.msra.mxu0 0
        %1589 = vmatprep.subr.bf16.mxu0 0
        %1590 = vmatpush1.bf16.xpose.msra.mxu0 0
        %1591 = vmatprep.subr.bf16.mxu0 0
        %1592 = vmatpush1.bf16.xpose.msra.mxu0 0
        %1593 = vmatprep.subr.bf16.mxu0 0
        %1594 = vmatpush1.bf16.xpose.msra.mxu0 0
        %1595 = vmatprep.subr.bf16.mxu0 0
        %1596 = vmatpush1.bf16.xpose.msra.mxu0 0
        %1597 = vmatprep.subr.bf16.mxu0 0
        %1598 = vmatpush1.bf16.xpose.msra.mxu0 0
        %1599 = vmatprep.subr.bf16.mxu0 0
        %1600 = vmatpush1.bf16.xpose.msra.mxu0 0
        %1601 = vmatprep.subr.bf16.mxu0 0
        %1602 = vmatpush1.bf16.xpose.msra.mxu0 0
        %1603 = vmatprep.mubr.bf16.mxu0 0
        %1604 = vmatmul.mubr.bf16.gmra.mrb[0].mxu0 %v1563
        %v1605 = vpop.f32.mrb[0].mxu0
        %v1606 = vadd.f32 0.0, %v1605
        %v1607 = vpop.f32.mrb[0].mxu0
        %v1608 = vpop.f32.mrb[0].mxu0
        %v1609 = vadd.f32 0.0, %v1608
        %v1610 = vpop.f32.mrb[0].mxu0
        %1611 = vmatprep.mubr.bf16.mxu0 0
        %1612 = vmatmul.mubr.bf16.gmra.mrb[0].mxu0 %v1564
        %v1613 = vpop.f32.mrb[0].mxu0
        %v1614 = vadd.f32 0.0, %v1613
        %v1615 = vpop.f32.mrb[0].mxu0
        %v1616 = vpop.f32.mrb[0].mxu0
        %v1617 = vadd.f32 0.0, %v1616
        %v1618 = vpop.f32.mrb[0].mxu0
        %1619 = vmatprep.mubr.bf16.mxu0 0
        %1620 = vmatmul.mubr.bf16.gmra.mrb[0].mxu0 %v1565
        %v1621 = vpop.f32.mrb[0].mxu0
        %v1622 = vadd.f32 0.0, %v1621
        %v1623 = vpop.f32.mrb[0].mxu0
        %v1624 = vpop.f32.mrb[0].mxu0
        %v1625 = vadd.f32 0.0, %v1624
        %v1626 = vpop.f32.mrb[0].mxu0
        %1627 = vmatprep.mubr.bf16.mxu0 0
        %1628 = vmatmul.mubr.bf16.gmra.mrb[0].mxu0 %v1566
        %v1629 = vpop.f32.mrb[0].mxu0
        %v1630 = vadd.f32 0.0, %v1629
        %v1631 = vpop.f32.mrb[0].mxu0
        %v1632 = vpop.f32.mrb[0].mxu0
        %v1633 = vadd.f32 0.0, %v1632
        %v1634 = vpop.f32.mrb[0].mxu0
        %1635 = vdwg.mxu0
        %v1636 = vmul.f32 %v1606, 0.14433756
        %v1637 = vmul.f32 %v1609, 0.14433756
        %v1638 = vmul.f32 %v1614, 0.14433756
        %v1639 = vmul.f32 %v1617, 0.14433756
        %v1640 = vmul.f32 %v1622, 0.14433756
        %v1641 = vmul.f32 %v1625, 0.14433756
        %v1642 = vmul.f32 %v1630, 0.14433756
        %v1643 = vmul.f32 %v1633, 0.14433756
        %v1644 = vsel %vm1135, %v1636, -1e+30
        %v1645 = vsel %vm1136, %v1637, -1e+30
        %v1646 = vsel %vm1137, %v1638, -1e+30
        %v1647 = vsel %vm1138, %v1639, -1e+30
        %v1648 = vsel %vm1139, %v1640, -1e+30
        %v1649 = vsel %vm1140, %v1641, -1e+30
        %v1650 = vsel %vm1141, %v1642, -1e+30
        %v1651 = vsel %vm1142, %v1643, -1e+30
        %vm1652 = vcmask 523264
        %v1653 = vsel %vm1652, %v1644, -inf
        %1654 = vmax.xlane.f32.xlu0 %v1653
        %v1655 = vpop.xlane.xlu0 %1654
        %v1656 = vsel %vm1652, %v1645, -inf
        %1657 = vmax.xlane.f32.xlu0 %v1656
        %v1658 = vpop.xlane.xlu0 %1657
        %v1659 = vsel %vm1652, %v1646, -inf
        %1660 = vmax.xlane.f32.xlu0 %v1659
        %v1661 = vpop.xlane.xlu0 %1660
        %v1662 = vsel %vm1652, %v1647, -inf
        %1663 = vmax.xlane.f32.xlu0 %v1662
        %v1664 = vpop.xlane.xlu0 %1663
        %v1665 = vsel %vm1652, %v1648, -inf
        %1666 = vmax.xlane.f32.xlu0 %v1665
        %v1667 = vpop.xlane.xlu0 %1666
        %v1668 = vsel %vm1652, %v1649, -inf
        %1669 = vmax.xlane.f32.xlu0 %v1668
        %v1670 = vpop.xlane.xlu0 %1669
        %v1671 = vsel %vm1652, %v1650, -inf
        %1672 = vmax.xlane.f32.xlu0 %v1671
        %v1673 = vpop.xlane.xlu0 %1672
        %v1674 = vsel %vm1652, %v1651, -inf
        %1675 = vmax.xlane.f32.xlu0 %v1674
        %v1676 = vpop.xlane.xlu0 %1675
        %v1677 = vsub.f32 %v1644, %v1655
        %v1678 = vsub.f32 %v1645, %v1658
        %v1679 = vsub.f32 %v1646, %v1661
        %v1680 = vsub.f32 %v1647, %v1664
        %v1681 = vsub.f32 %v1648, %v1667
        %v1682 = vsub.f32 %v1649, %v1670
        %v1683 = vsub.f32 %v1650, %v1673
        %v1684 = vsub.f32 %v1651, %v1676
        %v1685 = vmul.f32 %v1677, 1.442695
        %v1686 = vpow.pop %v1685
        %v1687 = vmul.f32 %v1678, 1.442695
        %v1688 = vpow.pop %v1687
        %v1689 = vmul.f32 %v1679, 1.442695
        %v1690 = vpow.pop %v1689
        %v1691 = vmul.f32 %v1680, 1.442695
        %v1692 = vpow.pop %v1691
        %v1693 = vmul.f32 %v1681, 1.442695
        %v1694 = vpow.pop %v1693
        %v1695 = vmul.f32 %v1682, 1.442695
        %v1696 = vpow.pop %v1695
        %v1697 = vmul.f32 %v1683, 1.442695
        %v1698 = vpow.pop %v1697
        %v1699 = vmul.f32 %v1684, 1.442695
        %v1700 = vpow.pop %v1699
        %v1701 = vsel %vm1652, %v1686, 0.0
        %1702 = vadd.xlane.f32.xlu0 %v1701
        %v1703 = vpop.xlane.xlu0 %1702
        %v1704 = vsel %vm1652, %v1688, 0.0
        %1705 = vadd.xlane.f32.xlu0 %v1704
        %v1706 = vpop.xlane.xlu0 %1705
        %v1707 = vsel %vm1652, %v1690, 0.0
        %1708 = vadd.xlane.f32.xlu0 %v1707
        %v1709 = vpop.xlane.xlu0 %1708
        %v1710 = vsel %vm1652, %v1692, 0.0
        %1711 = vadd.xlane.f32.xlu0 %v1710
        %v1712 = vpop.xlane.xlu0 %1711
        %v1713 = vsel %vm1652, %v1694, 0.0
        %1714 = vadd.xlane.f32.xlu0 %v1713
        %v1715 = vpop.xlane.xlu0 %1714
        %v1716 = vsel %vm1652, %v1696, 0.0
        %1717 = vadd.xlane.f32.xlu0 %v1716
        %v1718 = vpop.xlane.xlu0 %1717
        %v1719 = vsel %vm1652, %v1698, 0.0
        %1720 = vadd.xlane.f32.xlu0 %v1719
        %v1721 = vpop.xlane.xlu0 %1720
        %v1722 = vsel %vm1652, %v1700, 0.0
        %1723 = vadd.xlane.f32.xlu0 %v1722
        %v1724 = vpop.xlane.xlu0 %1723
        %v1725 = vrcp.pop %v1703
        %v1726 = vrcp.pop %v1706
        %v1727 = vrcp.pop %v1709
        %v1728 = vrcp.pop %v1712
        %v1729 = vrcp.pop %v1715
        %v1730 = vrcp.pop %v1718
        %v1731 = vrcp.pop %v1721
        %v1732 = vrcp.pop %v1724
        %v1733 = vmul.f32 %v1686, %v1725
        %v1734 = vmul.f32 %v1688, %v1726
        %v1735 = vmul.f32 %v1690, %v1727
        %v1736 = vmul.f32 %v1692, %v1728
        %v1737 = vmul.f32 %v1694, %v1729
        %v1738 = vmul.f32 %v1696, %v1730
        %v1739 = vmul.f32 %v1698, %v1731
        %v1740 = vmul.f32 %v1700, %v1732
        %v1741 = vpack.c.bf16 %v1734, %v1733
        %v1742 = vpack.c.bf16 %v1736, %v1735
        %v1743 = vpack.c.bf16 %v1738, %v1737
        %v1744 = vpack.c.bf16 %v1740, %v1739
        %v1745 = vpack.c.bf16 %v1536, %v1533
        %v1746 = vpack.c.bf16 %v1544, %v1541
        %v1747 = vpack.c.bf16 %v1552, %v1549
        %v1748 = vpack.c.bf16 %v1560, %v1557
        %v1750 = vsel %vm1652, %v1741, 0
        %v1753 = vsel %vm1652, %v1742, 0
        %v1756 = vsel %vm1652, %v1743, 0
        %v1759 = vsel %vm1652, %v1744, 0
        %1761 = vmatprep.subr.bf16.mxu0 0
        %1762 = vmatpush1.bf16.msra.mxu0 %v1745
        %1763 = vmatprep.subr.bf16.mxu0 0
        %1764 = vmatpush1.bf16.msra.mxu0 %v1746
        %1765 = vmatprep.subr.bf16.mxu0 0
        %1766 = vmatpush1.bf16.msra.mxu0 %v1747
        %1767 = vmatprep.subr.bf16.mxu0 0
        %1768 = vmatpush1.bf16.msra.mxu0 %v1748
        %1769 = vmatprep.subr.bf16.mxu0 0
        %1770 = vmatpush1.bf16.msra.mxu0 0
        %1771 = vmatprep.subr.bf16.mxu0 0
        %1772 = vmatpush1.bf16.msra.mxu0 0
        %1773 = vmatprep.subr.bf16.mxu0 0
        %1774 = vmatpush1.bf16.msra.mxu0 0
        %1775 = vmatprep.subr.bf16.mxu0 0
        %1776 = vmatpush1.bf16.msra.mxu0 0
        %1777 = vmatprep.subr.bf16.mxu0 0
        %1778 = vmatpush1.bf16.msra.mxu0 0
        %1779 = vmatprep.subr.bf16.mxu0 0
        %1780 = vmatpush1.bf16.msra.mxu0 0
        %1781 = vmatprep.subr.bf16.mxu0 0
        %1782 = vmatpush1.bf16.msra.mxu0 0
        %1783 = vmatprep.subr.bf16.mxu0 0
        %1784 = vmatpush1.bf16.msra.mxu0 0
        %1785 = vmatprep.subr.bf16.mxu0 0
        %1786 = vmatpush1.bf16.msra.mxu0 0
        %1787 = vmatprep.subr.bf16.mxu0 0
        %1788 = vmatpush1.bf16.msra.mxu0 0
        %1789 = vmatprep.subr.bf16.mxu0 0
        %1790 = vmatpush1.bf16.msra.mxu0 0
        %1791 = vmatprep.subr.bf16.mxu0 0
        %1792 = vmatpush1.bf16.msra.mxu0 0
        %1793 = vmatprep.mubr.bf16.mxu0 0
        %1794 = vmatmul.mubr.bf16.gmra.mrb[0].mxu0 %v1750
        %v1795 = vpop.f32.mrb[0].mxu0
        %v1796 = vadd.f32 0.0, %v1795
        %v1797 = vpop.f32.mrb[0].mxu0
        %v1798 = vpop.f32.mrb[0].mxu0
        %v1799 = vadd.f32 0.0, %v1798
        %v1800 = vpop.f32.mrb[0].mxu0
        %1801 = vmatprep.mubr.bf16.mxu0 0
        %1802 = vmatmul.mubr.bf16.gmra.mrb[0].mxu0 %v1753
        %v1803 = vpop.f32.mrb[0].mxu0
        %v1804 = vadd.f32 0.0, %v1803
        %v1805 = vpop.f32.mrb[0].mxu0
        %v1806 = vpop.f32.mrb[0].mxu0
        %v1807 = vadd.f32 0.0, %v1806
        %v1808 = vpop.f32.mrb[0].mxu0
        %1809 = vmatprep.mubr.bf16.mxu0 0
        %1810 = vmatmul.mubr.bf16.gmra.mrb[0].mxu0 %v1756
        %v1811 = vpop.f32.mrb[0].mxu0
        %v1812 = vadd.f32 0.0, %v1811
        %v1813 = vpop.f32.mrb[0].mxu0
        %v1814 = vpop.f32.mrb[0].mxu0
        %v1815 = vadd.f32 0.0, %v1814
        %v1816 = vpop.f32.mrb[0].mxu0
        %1817 = vmatprep.mubr.bf16.mxu0 0
        %1818 = vmatmul.mubr.bf16.gmra.mrb[0].mxu0 %v1759
        %v1819 = vpop.f32.mrb[0].mxu0
        %v1820 = vadd.f32 0.0, %v1819
        %v1821 = vpop.f32.mrb[0].mxu0
        %v1822 = vpop.f32.mrb[0].mxu0
        %v1823 = vadd.f32 0.0, %v1822
        %v1824 = vpop.f32.mrb[0].mxu0
        %1825 = vdwg.mxu0
        %v1826 = vld [vmem:[%s939 + $0x4] sm:$0xf]
        %v1827 = vld [vmem:[%s939 + $0x1c] sm:$0xf]
        %v1828 = vld [vmem:[%s939 + $0x34] sm:$0xf]
        %v1829 = vld [vmem:[%s939 + $0x4c] sm:$0xf]
        %v1830 = vld [vmem:[%s939 + $0x64] sm:$0xf]
        %v1831 = vld [vmem:[%s939 + $0x7c] sm:$0xf]
        %v1832 = vld [vmem:[%s939 + $0x94] sm:$0xf]
        %v1833 = vld [vmem:[%s939 + $0xac] sm:$0xf]
        %v1834 = vld [vmem:[%s939 + $0xc4] sm:$0xf]
        %v1835 = vld [vmem:[%s939 + $0xdc] sm:$0xf]
        %v1836 = vld [vmem:[%s939 + $0xf4] sm:$0xf]
        %v1837 = vld [vmem:[%s939 + $0x10c] sm:$0xf]
        %v1838 = vld [vmem:[%s939 + $0x124] sm:$0xf]
        %v1839 = vld [vmem:[%s939 + $0x13c] sm:$0xf]
        %v1840 = vld [vmem:[%s939 + $0x154] sm:$0xf]
        %v1841 = vld [vmem:[%s939 + $0x16c] sm:$0xf]
        %v1842 = vld [vmem:[%s943 + $0x1] sm:$0x1]
        %v1844 = vlaneseq
        %v1845 = vshrl.u32 %v1844, 7
        %v1846 = vsub.s32 0, %v1845
        %v1847 = vrot.slane %v1842, %v1846
        %v1865 = vunpack.c.l.b16 %v1826
        %v1866 = vunpack.c.l.b16 %v1827
        %v1867 = vunpack.c.l.b16 %v1828
        %v1868 = vunpack.c.l.b16 %v1829
        %v1869 = vunpack.c.l.b16 %v1830
        %v1870 = vunpack.c.l.b16 %v1831
        %v1871 = vunpack.c.l.b16 %v1832
        %v1872 = vunpack.c.l.b16 %v1833
        %v1873 = vunpack.c.l.b16 %v1834
        %v1874 = vunpack.c.l.b16 %v1835
        %v1875 = vunpack.c.l.b16 %v1836
        %v1876 = vunpack.c.l.b16 %v1837
        %v1877 = vunpack.c.l.b16 %v1838
        %v1878 = vunpack.c.l.b16 %v1839
        %v1879 = vunpack.c.l.b16 %v1840
        %v1880 = vunpack.c.l.b16 %v1841
        %v1881 = vpack.c.b16 %v1866, %v1865
        %v1882 = vpack.c.b16 %v1868, %v1867
        %v1883 = vpack.c.b16 %v1870, %v1869
        %v1884 = vpack.c.b16 %v1872, %v1871
        %v1885 = vpack.c.b16 %v1874, %v1873
        %v1886 = vpack.c.b16 %v1876, %v1875
        %v1887 = vpack.c.b16 %v1878, %v1877
        %v1888 = vpack.c.b16 %v1880, %v1879
        %1897 = vmatprep.subr.bf16.mxu0 0
        %1898 = vmatpush1.bf16.msra.mxu0 %v1881
        %1899 = vmatprep.subr.bf16.mxu0 0
        %1900 = vmatpush1.bf16.msra.mxu0 %v1882
        %1901 = vmatprep.subr.bf16.mxu0 0
        %1902 = vmatpush1.bf16.msra.mxu0 %v1883
        %1903 = vmatprep.subr.bf16.mxu0 0
        %1904 = vmatpush1.bf16.msra.mxu0 %v1884
        %1905 = vmatprep.subr.bf16.mxu0 0
        %1906 = vmatpush1.bf16.msra.mxu0 %v1885
        %1907 = vmatprep.subr.bf16.mxu0 0
        %1908 = vmatpush1.bf16.msra.mxu0 %v1886
        %1909 = vmatprep.subr.bf16.mxu0 0
        %1910 = vmatpush1.bf16.msra.mxu0 %v1887
        %1911 = vmatprep.subr.bf16.mxu0 0
        %1912 = vmatpush1.bf16.msra.mxu0 %v1888
        %1913 = vmatprep.subr.bf16.mxu0 0
        %1914 = vmatpush1.bf16.msra.mxu0 0
        %1915 = vmatprep.subr.bf16.mxu0 0
        %1916 = vmatpush1.bf16.msra.mxu0 0
        %1917 = vmatprep.subr.bf16.mxu0 0
        %1918 = vmatpush1.bf16.msra.mxu0 0
        %1919 = vmatprep.subr.bf16.mxu0 0
        %1920 = vmatpush1.bf16.msra.mxu0 0
        %1921 = vmatprep.subr.bf16.mxu0 0
        %1922 = vmatpush1.bf16.msra.mxu0 0
        %1923 = vmatprep.subr.bf16.mxu0 0
        %1924 = vmatpush1.bf16.msra.mxu0 0
        %1925 = vmatprep.subr.bf16.mxu0 0
        %1926 = vmatpush1.bf16.msra.mxu0 0
        %1927 = vmatprep.subr.bf16.mxu0 0
        %1928 = vmatpush1.bf16.msra.mxu0 0
        %1929 = vmatprep.mubr.bf16.mxu0 0
        %1930 = vmatmul.mubr.bf16.gmra.mrb[0].mxu0 %v1151
        %v1931 = vpop.f32.mrb[0].mxu0
        %v1932 = vadd.f32 %v1847, %v1931
        %v1933 = vpop.f32.mrb[0].mxu0
        %v1934 = vpop.f32.mrb[0].mxu0
        %v1935 = vadd.f32 %v1847, %v1934
        %v1936 = vpop.f32.mrb[0].mxu0
        %1937 = vmatprep.mubr.bf16.mxu0 0
        %1938 = vmatmul.mubr.bf16.gmra.mrb[0].mxu0 %v1152
        %v1939 = vpop.f32.mrb[0].mxu0
        %v1940 = vadd.f32 %v1847, %v1939
        %v1941 = vpop.f32.mrb[0].mxu0
        %v1942 = vpop.f32.mrb[0].mxu0
        %v1943 = vadd.f32 %v1847, %v1942
        %v1944 = vpop.f32.mrb[0].mxu0
        %1945 = vmatprep.mubr.bf16.mxu0 0
        %1946 = vmatmul.mubr.bf16.gmra.mrb[0].mxu0 %v1153
        %v1947 = vpop.f32.mrb[0].mxu0
        %v1948 = vadd.f32 %v1847, %v1947
        %v1949 = vpop.f32.mrb[0].mxu0
        %v1950 = vpop.f32.mrb[0].mxu0
        %v1951 = vadd.f32 %v1847, %v1950
        %v1952 = vpop.f32.mrb[0].mxu0
        %1953 = vmatprep.mubr.bf16.mxu0 0
        %1954 = vmatmul.mubr.bf16.gmra.mrb[0].mxu0 %v1154
        %v1955 = vpop.f32.mrb[0].mxu0
        %v1956 = vadd.f32 %v1847, %v1955
        %v1957 = vpop.f32.mrb[0].mxu0
        %v1958 = vpop.f32.mrb[0].mxu0
        %v1959 = vadd.f32 %v1847, %v1958
        %v1960 = vpop.f32.mrb[0].mxu0
        %1961 = vdwg.mxu0
        %v1962 = vld [vmem:[%s939 + $0xc] sm:$0xf]
        %v1963 = vld [vmem:[%s939 + $0x24] sm:$0xf]
        %v1964 = vld [vmem:[%s939 + $0x3c] sm:$0xf]
        %v1965 = vld [vmem:[%s939 + $0x54] sm:$0xf]
        %v1966 = vld [vmem:[%s939 + $0x6c] sm:$0xf]
        %v1967 = vld [vmem:[%s939 + $0x84] sm:$0xf]
        %v1968 = vld [vmem:[%s939 + $0x9c] sm:$0xf]
        %v1969 = vld [vmem:[%s939 + $0xb4] sm:$0xf]
        %v1970 = vld [vmem:[%s939 + $0xcc] sm:$0xf]
        %v1971 = vld [vmem:[%s939 + $0xe4] sm:$0xf]
        %v1972 = vld [vmem:[%s939 + $0xfc] sm:$0xf]
        %v1973 = vld [vmem:[%s939 + $0x114] sm:$0xf]
        %v1974 = vld [vmem:[%s939 + $0x12c] sm:$0xf]
        %v1975 = vld [vmem:[%s939 + $0x144] sm:$0xf]
        %v1976 = vld [vmem:[%s939 + $0x15c] sm:$0xf]
        %v1977 = vld [vmem:[%s939 + $0x174] sm:$0xf]
        %v1978 = vld [vmem:[%s943 + $0x3] sm:$0x1]
        %v1980 = vlaneseq
        %v1981 = vshrl.u32 %v1980, 7
        %v1982 = vsub.s32 0, %v1981
        %v1983 = vrot.slane %v1978, %v1982
        %v2001 = vunpack.c.l.b16 %v1962
        %v2002 = vunpack.c.l.b16 %v1963
        %v2003 = vunpack.c.l.b16 %v1964
        %v2004 = vunpack.c.l.b16 %v1965
        %v2005 = vunpack.c.l.b16 %v1966
        %v2006 = vunpack.c.l.b16 %v1967
        %v2007 = vunpack.c.l.b16 %v1968
        %v2008 = vunpack.c.l.b16 %v1969
        %v2009 = vunpack.c.l.b16 %v1970
        %v2010 = vunpack.c.l.b16 %v1971
        %v2011 = vunpack.c.l.b16 %v1972
        %v2012 = vunpack.c.l.b16 %v1973
        %v2013 = vunpack.c.l.b16 %v1974
        %v2014 = vunpack.c.l.b16 %v1975
        %v2015 = vunpack.c.l.b16 %v1976
        %v2016 = vunpack.c.l.b16 %v1977
        %v2017 = vpack.c.b16 %v2002, %v2001
        %v2018 = vpack.c.b16 %v2004, %v2003
        %v2019 = vpack.c.b16 %v2006, %v2005
        %v2020 = vpack.c.b16 %v2008, %v2007
        %v2021 = vpack.c.b16 %v2010, %v2009
        %v2022 = vpack.c.b16 %v2012, %v2011
        %v2023 = vpack.c.b16 %v2014, %v2013
        %v2024 = vpack.c.b16 %v2016, %v2015
        %2033 = vmatprep.subr.bf16.mxu0 0
        %2034 = vmatpush1.bf16.msra.mxu0 %v2017
        %2035 = vmatprep.subr.bf16.mxu0 0
        %2036 = vmatpush1.bf16.msra.mxu0 %v2018
        %2037 = vmatprep.subr.bf16.mxu0 0
        %2038 = vmatpush1.bf16.msra.mxu0 %v2019
        %2039 = vmatprep.subr.bf16.mxu0 0
        %2040 = vmatpush1.bf16.msra.mxu0 %v2020
        %2041 = vmatprep.subr.bf16.mxu0 0
        %2042 = vmatpush1.bf16.msra.mxu0 %v2021
        %2043 = vmatprep.subr.bf16.mxu0 0
        %2044 = vmatpush1.bf16.msra.mxu0 %v2022
        %2045 = vmatprep.subr.bf16.mxu0 0
        %2046 = vmatpush1.bf16.msra.mxu0 %v2023
        %2047 = vmatprep.subr.bf16.mxu0 0
        %2048 = vmatpush1.bf16.msra.mxu0 %v2024
        %2049 = vmatprep.subr.bf16.mxu0 0
        %2050 = vmatpush1.bf16.msra.mxu0 0
        %2051 = vmatprep.subr.bf16.mxu0 0
        %2052 = vmatpush1.bf16.msra.mxu0 0
        %2053 = vmatprep.subr.bf16.mxu0 0
        %2054 = vmatpush1.bf16.msra.mxu0 0
        %2055 = vmatprep.subr.bf16.mxu0 0
        %2056 = vmatpush1.bf16.msra.mxu0 0
        %2057 = vmatprep.subr.bf16.mxu0 0
        %2058 = vmatpush1.bf16.msra.mxu0 0
        %2059 = vmatprep.subr.bf16.mxu0 0
        %2060 = vmatpush1.bf16.msra.mxu0 0
        %2061 = vmatprep.subr.bf16.mxu0 0
        %2062 = vmatpush1.bf16.msra.mxu0 0
        %2063 = vmatprep.subr.bf16.mxu0 0
        %2064 = vmatpush1.bf16.msra.mxu0 0
        %2065 = vmatprep.mubr.bf16.mxu0 0
        %2066 = vmatmul.mubr.bf16.gmra.mrb[0].mxu0 %v1151
        %v2067 = vpop.f32.mrb[0].mxu0
        %v2068 = vadd.f32 %v1983, %v2067
        %v2069 = vpop.f32.mrb[0].mxu0
        %v2070 = vpop.f32.mrb[0].mxu0
        %v2071 = vadd.f32 %v1983, %v2070
        %v2072 = vpop.f32.mrb[0].mxu0
        %2073 = vmatprep.mubr.bf16.mxu0 0
        %2074 = vmatmul.mubr.bf16.gmra.mrb[0].mxu0 %v1152
        %v2075 = vpop.f32.mrb[0].mxu0
        %v2076 = vadd.f32 %v1983, %v2075
        %v2077 = vpop.f32.mrb[0].mxu0
        %v2078 = vpop.f32.mrb[0].mxu0
        %v2079 = vadd.f32 %v1983, %v2078
        %v2080 = vpop.f32.mrb[0].mxu0
        %2081 = vmatprep.mubr.bf16.mxu0 0
        %2082 = vmatmul.mubr.bf16.gmra.mrb[0].mxu0 %v1153
        %v2083 = vpop.f32.mrb[0].mxu0
        %v2084 = vadd.f32 %v1983, %v2083
        %v2085 = vpop.f32.mrb[0].mxu0
        %v2086 = vpop.f32.mrb[0].mxu0
        %v2087 = vadd.f32 %v1983, %v2086
        %v2088 = vpop.f32.mrb[0].mxu0
        %2089 = vmatprep.mubr.bf16.mxu0 0
        %2090 = vmatmul.mubr.bf16.gmra.mrb[0].mxu0 %v1154
        %v2091 = vpop.f32.mrb[0].mxu0
        %v2092 = vadd.f32 %v1983, %v2091
        %v2093 = vpop.f32.mrb[0].mxu0
        %v2094 = vpop.f32.mrb[0].mxu0
        %v2095 = vadd.f32 %v1983, %v2094
        %v2096 = vpop.f32.mrb[0].mxu0
        %2097 = vdwg.mxu0
        %v2098 = vld [vmem:[%s939 + $0x14] sm:$0xf]
        %v2099 = vld [vmem:[%s939 + $0x2c] sm:$0xf]
        %v2100 = vld [vmem:[%s939 + $0x44] sm:$0xf]
        %v2101 = vld [vmem:[%s939 + $0x5c] sm:$0xf]
        %v2102 = vld [vmem:[%s939 + $0x74] sm:$0xf]
        %v2103 = vld [vmem:[%s939 + $0x8c] sm:$0xf]
        %v2104 = vld [vmem:[%s939 + $0xa4] sm:$0xf]
        %v2105 = vld [vmem:[%s939 + $0xbc] sm:$0xf]
        %v2106 = vld [vmem:[%s939 + $0xd4] sm:$0xf]
        %v2107 = vld [vmem:[%s939 + $0xec] sm:$0xf]
        %v2108 = vld [vmem:[%s939 + $0x104] sm:$0xf]
        %v2109 = vld [vmem:[%s939 + $0x11c] sm:$0xf]
        %v2110 = vld [vmem:[%s939 + $0x134] sm:$0xf]
        %v2111 = vld [vmem:[%s939 + $0x14c] sm:$0xf]
        %v2112 = vld [vmem:[%s939 + $0x164] sm:$0xf]
        %v2113 = vld [vmem:[%s939 + $0x17c] sm:$0xf]
        %v2114 = vld [vmem:[%s943 + $0x5] sm:$0x1]
        %v2116 = vlaneseq
        %v2117 = vshrl.u32 %v2116, 7
        %v2118 = vsub.s32 0, %v2117
        %v2119 = vrot.slane %v2114, %v2118
        %v2137 = vunpack.c.l.b16 %v2098
        %v2138 = vunpack.c.l.b16 %v2099
        %v2139 = vunpack.c.l.b16 %v2100
        %v2140 = vunpack.c.l.b16 %v2101
        %v2141 = vunpack.c.l.b16 %v2102
        %v2142 = vunpack.c.l.b16 %v2103
        %v2143 = vunpack.c.l.b16 %v2104
        %v2144 = vunpack.c.l.b16 %v2105
        %v2145 = vunpack.c.l.b16 %v2106
        %v2146 = vunpack.c.l.b16 %v2107
        %v2147 = vunpack.c.l.b16 %v2108
        %v2148 = vunpack.c.l.b16 %v2109
        %v2149 = vunpack.c.l.b16 %v2110
        %v2150 = vunpack.c.l.b16 %v2111
        %v2151 = vunpack.c.l.b16 %v2112
        %v2152 = vunpack.c.l.b16 %v2113
        %v2153 = vpack.c.b16 %v2138, %v2137
        %v2154 = vpack.c.b16 %v2140, %v2139
        %v2155 = vpack.c.b16 %v2142, %v2141
        %v2156 = vpack.c.b16 %v2144, %v2143
        %v2157 = vpack.c.b16 %v2146, %v2145
        %v2158 = vpack.c.b16 %v2148, %v2147
        %v2159 = vpack.c.b16 %v2150, %v2149
        %v2160 = vpack.c.b16 %v2152, %v2151
        %2169 = vmatprep.subr.bf16.mxu0 0
        %2170 = vmatpush1.bf16.msra.mxu0 %v2153
        %2171 = vmatprep.subr.bf16.mxu0 0
        %2172 = vmatpush1.bf16.msra.mxu0 %v2154
        %2173 = vmatprep.subr.bf16.mxu0 0
        %2174 = vmatpush1.bf16.msra.mxu0 %v2155
        %2175 = vmatprep.subr.bf16.mxu0 0
        %2176 = vmatpush1.bf16.msra.mxu0 %v2156
        %2177 = vmatprep.subr.bf16.mxu0 0
        %2178 = vmatpush1.bf16.msra.mxu0 %v2157
        %2179 = vmatprep.subr.bf16.mxu0 0
        %2180 = vmatpush1.bf16.msra.mxu0 %v2158
        %2181 = vmatprep.subr.bf16.mxu0 0
        %2182 = vmatpush1.bf16.msra.mxu0 %v2159
        %2183 = vmatprep.subr.bf16.mxu0 0
        %2184 = vmatpush1.bf16.msra.mxu0 %v2160
        %2185 = vmatprep.subr.bf16.mxu0 0
        %2186 = vmatpush1.bf16.msra.mxu0 0
        %2187 = vmatprep.subr.bf16.mxu0 0
        %2188 = vmatpush1.bf16.msra.mxu0 0
        %2189 = vmatprep.subr.bf16.mxu0 0
        %2190 = vmatpush1.bf16.msra.mxu0 0
        %2191 = vmatprep.subr.bf16.mxu0 0
        %2192 = vmatpush1.bf16.msra.mxu0 0
        %2193 = vmatprep.subr.bf16.mxu0 0
        %2194 = vmatpush1.bf16.msra.mxu0 0
        %2195 = vmatprep.subr.bf16.mxu0 0
        %2196 = vmatpush1.bf16.msra.mxu0 0
        %2197 = vmatprep.subr.bf16.mxu0 0
        %2198 = vmatpush1.bf16.msra.mxu0 0
        %2199 = vmatprep.subr.bf16.mxu0 0
        %2200 = vmatpush1.bf16.msra.mxu0 0
        %2201 = vmatprep.mubr.bf16.mxu0 0
        %2202 = vmatmul.mubr.bf16.gmra.mrb[0].mxu0 %v1151
        %v2203 = vpop.f32.mrb[0].mxu0
        %v2204 = vadd.f32 %v2119, %v2203
        %v2205 = vpop.f32.mrb[0].mxu0
        %v2206 = vpop.f32.mrb[0].mxu0
        %v2207 = vadd.f32 %v2119, %v2206
        %v2208 = vpop.f32.mrb[0].mxu0
        %2209 = vmatprep.mubr.bf16.mxu0 0
        %2210 = vmatmul.mubr.bf16.gmra.mrb[0].mxu0 %v1152
        %v2211 = vpop.f32.mrb[0].mxu0
        %v2212 = vadd.f32 %v2119, %v2211
        %v2213 = vpop.f32.mrb[0].mxu0
        %v2214 = vpop.f32.mrb[0].mxu0
        %v2215 = vadd.f32 %v2119, %v2214
        %v2216 = vpop.f32.mrb[0].mxu0
        %2217 = vmatprep.mubr.bf16.mxu0 0
        %2218 = vmatmul.mubr.bf16.gmra.mrb[0].mxu0 %v1153
        %v2219 = vpop.f32.mrb[0].mxu0
        %v2220 = vadd.f32 %v2119, %v2219
        %v2221 = vpop.f32.mrb[0].mxu0
        %v2222 = vpop.f32.mrb[0].mxu0
        %v2223 = vadd.f32 %v2119, %v2222
        %v2224 = vpop.f32.mrb[0].mxu0
        %2225 = vmatprep.mubr.bf16.mxu0 0
        %2226 = vmatmul.mubr.bf16.gmra.mrb[0].mxu0 %v1154
        %v2227 = vpop.f32.mrb[0].mxu0
        %v2228 = vadd.f32 %v2119, %v2227
        %v2229 = vpop.f32.mrb[0].mxu0
        %v2230 = vpop.f32.mrb[0].mxu0
        %v2231 = vadd.f32 %v2119, %v2230
        %v2232 = vpop.f32.mrb[0].mxu0
        %2233 = vdwg.mxu0
        %v2234 = vpack.c.bf16 %v1935, %v1932
        %v2235 = vpack.c.bf16 %v1943, %v1940
        %v2236 = vpack.c.bf16 %v1951, %v1948
        %v2237 = vpack.c.bf16 %v1959, %v1956
        %v2238 = vpack.c.bf16 %v2071, %v2068
        %v2239 = vpack.c.bf16 %v2079, %v2076
        %v2240 = vpack.c.bf16 %v2087, %v2084
        %v2241 = vpack.c.bf16 %v2095, %v2092
        %2242 = vmatprep.subr.bf16.mxu0 0
        %2243 = vmatpush1.bf16.xpose.msra.mxu0 %v2238
        %2244 = vmatprep.subr.bf16.mxu0 0
        %2245 = vmatpush1.bf16.xpose.msra.mxu0 %v2239
        %2246 = vmatprep.subr.bf16.mxu0 0
        %2247 = vmatpush1.bf16.xpose.msra.mxu0 %v2240
        %2248 = vmatprep.subr.bf16.mxu0 0
        %2249 = vmatpush1.bf16.xpose.msra.mxu0 %v2241
        %2250 = vmatprep.subr.bf16.mxu0 0
        %2251 = vmatpush1.bf16.xpose.msra.mxu0 0
        %2252 = vmatprep.subr.bf16.mxu0 0
        %2253 = vmatpush1.bf16.xpose.msra.mxu0 0
        %2254 = vmatprep.subr.bf16.mxu0 0
        %2255 = vmatpush1.bf16.xpose.msra.mxu0 0
        %2256 = vmatprep.subr.bf16.mxu0 0
        %2257 = vmatpush1.bf16.xpose.msra.mxu0 0
        %2258 = vmatprep.subr.bf16.mxu0 0
        %2259 = vmatpush1.bf16.xpose.msra.mxu0 0
        %2260 = vmatprep.subr.bf16.mxu0 0
        %2261 = vmatpush1.bf16.xpose.msra.mxu0 0
        %2262 = vmatprep.subr.bf16.mxu0 0
        %2263 = vmatpush1.bf16.xpose.msra.mxu0 0
        %2264 = vmatprep.subr.bf16.mxu0 0
        %2265 = vmatpush1.bf16.xpose.msra.mxu0 0
        %2266 = vmatprep.subr.bf16.mxu0 0
        %2267 = vmatpush1.bf16.xpose.msra.mxu0 0
        %2268 = vmatprep.subr.bf16.mxu0 0
        %2269 = vmatpush1.bf16.xpose.msra.mxu0 0
        %2270 = vmatprep.subr.bf16.mxu0 0
        %2271 = vmatpush1.bf16.xpose.msra.mxu0 0
        %2272 = vmatprep.subr.bf16.mxu0 0
        %2273 = vmatpush1.bf16.xpose.msra.mxu0 0
        %2274 = vmatprep.mubr.bf16.mxu0 0
        %2275 = vmatmul.mubr.bf16.gmra.mrb[0].mxu0 %v2234
        %v2276 = vpop.f32.mrb[0].mxu0
        %v2277 = vadd.f32 0.0, %v2276
        %v2278 = vpop.f32.mrb[0].mxu0
        %v2279 = vpop.f32.mrb[0].mxu0
        %v2280 = vadd.f32 0.0, %v2279
        %v2281 = vpop.f32.mrb[0].mxu0
        %2282 = vmatprep.mubr.bf16.mxu0 0
        %2283 = vmatmul.mubr.bf16.gmra.mrb[0].mxu0 %v2235
        %v2284 = vpop.f32.mrb[0].mxu0
        %v2285 = vadd.f32 0.0, %v2284
        %v2286 = vpop.f32.mrb[0].mxu0
        %v2287 = vpop.f32.mrb[0].mxu0
        %v2288 = vadd.f32 0.0, %v2287
        %v2289 = vpop.f32.mrb[0].mxu0
        %2290 = vmatprep.mubr.bf16.mxu0 0
        %2291 = vmatmul.mubr.bf16.gmra.mrb[0].mxu0 %v2236
        %v2292 = vpop.f32.mrb[0].mxu0
        %v2293 = vadd.f32 0.0, %v2292
        %v2294 = vpop.f32.mrb[0].mxu0
        %v2295 = vpop.f32.mrb[0].mxu0
        %v2296 = vadd.f32 0.0, %v2295
        %v2297 = vpop.f32.mrb[0].mxu0
        %2298 = vmatprep.mubr.bf16.mxu0 0
        %2299 = vmatmul.mubr.bf16.gmra.mrb[0].mxu0 %v2237
        %v2300 = vpop.f32.mrb[0].mxu0
        %v2301 = vadd.f32 0.0, %v2300
        %v2302 = vpop.f32.mrb[0].mxu0
        %v2303 = vpop.f32.mrb[0].mxu0
        %v2304 = vadd.f32 0.0, %v2303
        %v2305 = vpop.f32.mrb[0].mxu0
        %2306 = vdwg.mxu0
        %v2307 = vmul.f32 %v2277, 0.14433756
        %v2308 = vmul.f32 %v2280, 0.14433756
        %v2309 = vmul.f32 %v2285, 0.14433756
        %v2310 = vmul.f32 %v2288, 0.14433756
        %v2311 = vmul.f32 %v2293, 0.14433756
        %v2312 = vmul.f32 %v2296, 0.14433756
        %v2313 = vmul.f32 %v2301, 0.14433756
        %v2314 = vmul.f32 %v2304, 0.14433756
        %v2315 = vsel %vm1135, %v2307, -1e+30
        %v2316 = vsel %vm1136, %v2308, -1e+30
        %v2317 = vsel %vm1137, %v2309, -1e+30
        %v2318 = vsel %vm1138, %v2310, -1e+30
        %v2319 = vsel %vm1139, %v2311, -1e+30
        %v2320 = vsel %vm1140, %v2312, -1e+30
        %v2321 = vsel %vm1141, %v2313, -1e+30
        %v2322 = vsel %vm1142, %v2314, -1e+30
        %v2323 = vsel %vm1652, %v2315, -inf
        %2324 = vmax.xlane.f32.xlu0 %v2323
        %v2325 = vpop.xlane.xlu0 %2324
        %v2326 = vsel %vm1652, %v2316, -inf
        %2327 = vmax.xlane.f32.xlu0 %v2326
        %v2328 = vpop.xlane.xlu0 %2327
        %v2329 = vsel %vm1652, %v2317, -inf
        %2330 = vmax.xlane.f32.xlu0 %v2329
        %v2331 = vpop.xlane.xlu0 %2330
        %v2332 = vsel %vm1652, %v2318, -inf
        %2333 = vmax.xlane.f32.xlu0 %v2332
        %v2334 = vpop.xlane.xlu0 %2333
        %v2335 = vsel %vm1652, %v2319, -inf
        %2336 = vmax.xlane.f32.xlu0 %v2335
        %v2337 = vpop.xlane.xlu0 %2336
        %v2338 = vsel %vm1652, %v2320, -inf
        %2339 = vmax.xlane.f32.xlu0 %v2338
        %v2340 = vpop.xlane.xlu0 %2339
        %v2341 = vsel %vm1652, %v2321, -inf
        %2342 = vmax.xlane.f32.xlu0 %v2341
        %v2343 = vpop.xlane.xlu0 %2342
        %v2344 = vsel %vm1652, %v2322, -inf
        %2345 = vmax.xlane.f32.xlu0 %v2344
        %v2346 = vpop.xlane.xlu0 %2345
        %v2347 = vsub.f32 %v2315, %v2325
        %v2348 = vsub.f32 %v2316, %v2328
        %v2349 = vsub.f32 %v2317, %v2331
        %v2350 = vsub.f32 %v2318, %v2334
        %v2351 = vsub.f32 %v2319, %v2337
        %v2352 = vsub.f32 %v2320, %v2340
        %v2353 = vsub.f32 %v2321, %v2343
        %v2354 = vsub.f32 %v2322, %v2346
        %v2355 = vmul.f32 %v2347, 1.442695
        %v2356 = vpow.pop %v2355
        %v2357 = vmul.f32 %v2348, 1.442695
        %v2358 = vpow.pop %v2357
        %v2359 = vmul.f32 %v2349, 1.442695
        %v2360 = vpow.pop %v2359
        %v2361 = vmul.f32 %v2350, 1.442695
        %v2362 = vpow.pop %v2361
        %v2363 = vmul.f32 %v2351, 1.442695
        %v2364 = vpow.pop %v2363
        %v2365 = vmul.f32 %v2352, 1.442695
        %v2366 = vpow.pop %v2365
        %v2367 = vmul.f32 %v2353, 1.442695
        %v2368 = vpow.pop %v2367
        %v2369 = vmul.f32 %v2354, 1.442695
        %v2370 = vpow.pop %v2369
        %v2371 = vsel %vm1652, %v2356, 0.0
        %2372 = vadd.xlane.f32.xlu0 %v2371
        %v2373 = vpop.xlane.xlu0 %2372
        %v2374 = vsel %vm1652, %v2358, 0.0
        %2375 = vadd.xlane.f32.xlu0 %v2374
        %v2376 = vpop.xlane.xlu0 %2375
        %v2377 = vsel %vm1652, %v2360, 0.0
        %2378 = vadd.xlane.f32.xlu0 %v2377
        %v2379 = vpop.xlane.xlu0 %2378
        %v2380 = vsel %vm1652, %v2362, 0.0
        %2381 = vadd.xlane.f32.xlu0 %v2380
        %v2382 = vpop.xlane.xlu0 %2381
        %v2383 = vsel %vm1652, %v2364, 0.0
        %2384 = vadd.xlane.f32.xlu0 %v2383
        %v2385 = vpop.xlane.xlu0 %2384
        %v2386 = vsel %vm1652, %v2366, 0.0
        %2387 = vadd.xlane.f32.xlu0 %v2386
        %v2388 = vpop.xlane.xlu0 %2387
        %v2389 = vsel %vm1652, %v2368, 0.0
        %2390 = vadd.xlane.f32.xlu0 %v2389
        %v2391 = vpop.xlane.xlu0 %2390
        %v2392 = vsel %vm1652, %v2370, 0.0
        %2393 = vadd.xlane.f32.xlu0 %v2392
        %v2394 = vpop.xlane.xlu0 %2393
        %v2395 = vrcp.pop %v2373
        %v2396 = vrcp.pop %v2376
        %v2397 = vrcp.pop %v2379
        %v2398 = vrcp.pop %v2382
        %v2399 = vrcp.pop %v2385
        %v2400 = vrcp.pop %v2388
        %v2401 = vrcp.pop %v2391
        %v2402 = vrcp.pop %v2394
        %v2403 = vmul.f32 %v2356, %v2395
        %v2404 = vmul.f32 %v2358, %v2396
        %v2405 = vmul.f32 %v2360, %v2397
        %v2406 = vmul.f32 %v2362, %v2398
        %v2407 = vmul.f32 %v2364, %v2399
        %v2408 = vmul.f32 %v2366, %v2400
        %v2409 = vmul.f32 %v2368, %v2401
        %v2410 = vmul.f32 %v2370, %v2402
        %v2411 = vpack.c.bf16 %v2404, %v2403
        %v2412 = vpack.c.bf16 %v2406, %v2405
        %v2413 = vpack.c.bf16 %v2408, %v2407
        %v2414 = vpack.c.bf16 %v2410, %v2409
        %v2415 = vpack.c.bf16 %v2207, %v2204
        %v2416 = vpack.c.bf16 %v2215, %v2212
        %v2417 = vpack.c.bf16 %v2223, %v2220
        %v2418 = vpack.c.bf16 %v2231, %v2228
        %v2420 = vsel %vm1652, %v2411, 0
        %v2423 = vsel %vm1652, %v2412, 0
        %v2426 = vsel %vm1652, %v2413, 0
        %v2429 = vsel %vm1652, %v2414, 0
        %2431 = vmatprep.subr.bf16.mxu0 0
        %2432 = vmatpush1.bf16.msra.mxu0 %v2415
        %2433 = vmatprep.subr.bf16.mxu0 0
        %2434 = vmatpush1.bf16.msra.mxu0 %v2416
        %2435 = vmatprep.subr.bf16.mxu0 0
        %2436 = vmatpush1.bf16.msra.mxu0 %v2417
        %2437 = vmatprep.subr.bf16.mxu0 0
        %2438 = vmatpush1.bf16.msra.mxu0 %v2418
        %2439 = vmatprep.subr.bf16.mxu0 0
        %2440 = vmatpush1.bf16.msra.mxu0 0
        %2441 = vmatprep.subr.bf16.mxu0 0
        %2442 = vmatpush1.bf16.msra.mxu0 0
        %2443 = vmatprep.subr.bf16.mxu0 0
        %2444 = vmatpush1.bf16.msra.mxu0 0
        %2445 = vmatprep.subr.bf16.mxu0 0
        %2446 = vmatpush1.bf16.msra.mxu0 0
        %2447 = vmatprep.subr.bf16.mxu0 0
        %2448 = vmatpush1.bf16.msra.mxu0 0
        %2449 = vmatprep.subr.bf16.mxu0 0
        %2450 = vmatpush1.bf16.msra.mxu0 0
        %2451 = vmatprep.subr.bf16.mxu0 0
        %2452 = vmatpush1.bf16.msra.mxu0 0
        %2453 = vmatprep.subr.bf16.mxu0 0
        %2454 = vmatpush1.bf16.msra.mxu0 0
        %2455 = vmatprep.subr.bf16.mxu0 0
        %2456 = vmatpush1.bf16.msra.mxu0 0
        %2457 = vmatprep.subr.bf16.mxu0 0
        %2458 = vmatpush1.bf16.msra.mxu0 0
        %2459 = vmatprep.subr.bf16.mxu0 0
        %2460 = vmatpush1.bf16.msra.mxu0 0
        %2461 = vmatprep.subr.bf16.mxu0 0
        %2462 = vmatpush1.bf16.msra.mxu0 0
        %2463 = vmatprep.mubr.bf16.mxu0 0
        %2464 = vmatmul.mubr.bf16.gmra.mrb[0].mxu0 %v2420
        %v2465 = vpop.f32.mrb[0].mxu0
        %v2466 = vadd.f32 0.0, %v2465
        %v2467 = vpop.f32.mrb[0].mxu0
        %v2468 = vpop.f32.mrb[0].mxu0
        %v2469 = vadd.f32 0.0, %v2468
        %v2470 = vpop.f32.mrb[0].mxu0
        %2471 = vmatprep.mubr.bf16.mxu0 0
        %2472 = vmatmul.mubr.bf16.gmra.mrb[0].mxu0 %v2423
        %v2473 = vpop.f32.mrb[0].mxu0
        %v2474 = vadd.f32 0.0, %v2473
        %v2475 = vpop.f32.mrb[0].mxu0
        %v2476 = vpop.f32.mrb[0].mxu0
        %v2477 = vadd.f32 0.0, %v2476
        %v2478 = vpop.f32.mrb[0].mxu0
        %2479 = vmatprep.mubr.bf16.mxu0 0
        %2480 = vmatmul.mubr.bf16.gmra.mrb[0].mxu0 %v2426
        %v2481 = vpop.f32.mrb[0].mxu0
        %v2482 = vadd.f32 0.0, %v2481
        %v2483 = vpop.f32.mrb[0].mxu0
        %v2484 = vpop.f32.mrb[0].mxu0
        %v2485 = vadd.f32 0.0, %v2484
        %v2486 = vpop.f32.mrb[0].mxu0
        %2487 = vmatprep.mubr.bf16.mxu0 0
        %2488 = vmatmul.mubr.bf16.gmra.mrb[0].mxu0 %v2429
        %v2489 = vpop.f32.mrb[0].mxu0
        %v2490 = vadd.f32 0.0, %v2489
        %v2491 = vpop.f32.mrb[0].mxu0
        %v2492 = vpop.f32.mrb[0].mxu0
        %v2493 = vadd.f32 0.0, %v2492
        %v2494 = vpop.f32.mrb[0].mxu0
        %2495 = vdwg.mxu0
        %v2496 = vpack.c.bf16 %v1799, %v1796
        %v2497 = vpack.c.bf16 %v2469, %v2466
        %v2498 = vpack.c.bf16 %v1807, %v1804
        %v2499 = vpack.c.bf16 %v2477, %v2474
        %v2500 = vpack.c.bf16 %v1815, %v1812
        %v2501 = vpack.c.bf16 %v2485, %v2482
        %v2502 = vpack.c.bf16 %v1823, %v1820
        %v2503 = vpack.c.bf16 %v2493, %v2490
        %v2504 = vld [vmem:[%s948] sm:$0xf]
        %v2505 = vld [vmem:[%s948 + $0x4] sm:$0xf]
        %v2506 = vld [vmem:[%s948 + $0x8] sm:$0xf]
        %v2507 = vld [vmem:[%s948 + $0xc] sm:$0xf]
        %v2508 = vld [vmem:[%s948 + $0x10] sm:$0xf]
        %v2509 = vld [vmem:[%s948 + $0x14] sm:$0xf]
        %v2510 = vld [vmem:[%s948 + $0x18] sm:$0xf]
        %v2511 = vld [vmem:[%s948 + $0x1c] sm:$0xf]
        %v2512 = vld [vmem:[%s948 + $0x20] sm:$0xf]
        %v2513 = vld [vmem:[%s948 + $0x24] sm:$0xf]
        %v2514 = vld [vmem:[%s948 + $0x28] sm:$0xf]
        %v2515 = vld [vmem:[%s948 + $0x2c] sm:$0xf]
        %v2516 = vld [vmem:[%s948 + $0x30] sm:$0xf]
        %v2517 = vld [vmem:[%s948 + $0x34] sm:$0xf]
        %v2518 = vld [vmem:[%s948 + $0x38] sm:$0xf]
        %v2519 = vld [vmem:[%s948 + $0x3c] sm:$0xf]
        %v2520 = vld [vmem:[%s948 + $0x40] sm:$0xf]
        %v2521 = vld [vmem:[%s948 + $0x44] sm:$0xf]
        %v2522 = vld [vmem:[%s948 + $0x48] sm:$0xf]
        %v2523 = vld [vmem:[%s948 + $0x4c] sm:$0xf]
        %v2524 = vld [vmem:[%s948 + $0x50] sm:$0xf]
        %v2525 = vld [vmem:[%s948 + $0x54] sm:$0xf]
        %v2526 = vld [vmem:[%s948 + $0x58] sm:$0xf]
        %v2527 = vld [vmem:[%s948 + $0x5c] sm:$0xf]
        %v2528 = vld [vmem:[%s948 + $0x60] sm:$0xf]
        %v2529 = vld [vmem:[%s948 + $0x64] sm:$0xf]
        %v2530 = vld [vmem:[%s948 + $0x68] sm:$0xf]
        %v2531 = vld [vmem:[%s948 + $0x6c] sm:$0xf]
        %v2532 = vld [vmem:[%s948 + $0x70] sm:$0xf]
        %v2533 = vld [vmem:[%s948 + $0x74] sm:$0xf]
        %v2534 = vld [vmem:[%s948 + $0x78] sm:$0xf]
        %v2535 = vld [vmem:[%s948 + $0x7c] sm:$0xf]
        %v2568 = vunpack.c.l.b16 %v2504
        %v2569 = vunpack.c.l.b16 %v2505
        %v2570 = vunpack.c.l.b16 %v2506
        %v2571 = vunpack.c.l.b16 %v2507
        %v2572 = vunpack.c.l.b16 %v2508
        %v2573 = vunpack.c.l.b16 %v2509
        %v2574 = vunpack.c.l.b16 %v2510
        %v2575 = vunpack.c.l.b16 %v2511
        %v2576 = vunpack.c.l.b16 %v2512
        %v2577 = vunpack.c.l.b16 %v2513
        %v2578 = vunpack.c.l.b16 %v2514
        %v2579 = vunpack.c.l.b16 %v2515
        %v2580 = vunpack.c.l.b16 %v2516
        %v2581 = vunpack.c.l.b16 %v2517
        %v2582 = vunpack.c.l.b16 %v2518
        %v2583 = vunpack.c.l.b16 %v2519
        %v2584 = vunpack.c.l.b16 %v2520
        %v2585 = vunpack.c.l.b16 %v2521
        %v2586 = vunpack.c.l.b16 %v2522
        %v2587 = vunpack.c.l.b16 %v2523
        %v2588 = vunpack.c.l.b16 %v2524
        %v2589 = vunpack.c.l.b16 %v2525
        %v2590 = vunpack.c.l.b16 %v2526
        %v2591 = vunpack.c.l.b16 %v2527
        %v2592 = vunpack.c.l.b16 %v2528
        %v2593 = vunpack.c.l.b16 %v2529
        %v2594 = vunpack.c.l.b16 %v2530
        %v2595 = vunpack.c.l.b16 %v2531
        %v2596 = vunpack.c.l.b16 %v2532
        %v2597 = vunpack.c.l.b16 %v2533
        %v2598 = vunpack.c.l.b16 %v2534
        %v2599 = vunpack.c.l.b16 %v2535
        %v2600 = vpack.c.b16 %v2569, %v2568
        %v2601 = vpack.c.b16 %v2571, %v2570
        %v2602 = vpack.c.b16 %v2573, %v2572
        %v2603 = vpack.c.b16 %v2575, %v2574
        %v2604 = vpack.c.b16 %v2577, %v2576
        %v2605 = vpack.c.b16 %v2579, %v2578
        %v2606 = vpack.c.b16 %v2581, %v2580
        %v2607 = vpack.c.b16 %v2583, %v2582
        %v2608 = vpack.c.b16 %v2585, %v2584
        %v2609 = vpack.c.b16 %v2587, %v2586
        %v2610 = vpack.c.b16 %v2589, %v2588
        %v2611 = vpack.c.b16 %v2591, %v2590
        %v2612 = vpack.c.b16 %v2593, %v2592
        %v2613 = vpack.c.b16 %v2595, %v2594
        %v2614 = vpack.c.b16 %v2597, %v2596
        %v2615 = vpack.c.b16 %v2599, %v2598
        %2632 = vmatprep.subr.bf16.mxu0 0
        %2633 = vmatpush1.bf16.msra.mxu0 %v2600
        %2634 = vmatprep.subr.bf16.mxu0 0
        %2635 = vmatpush1.bf16.msra.mxu0 %v2601
        %2636 = vmatprep.subr.bf16.mxu0 0
        %2637 = vmatpush1.bf16.msra.mxu0 %v2602
        %2638 = vmatprep.subr.bf16.mxu0 0
        %2639 = vmatpush1.bf16.msra.mxu0 %v2603
        %2640 = vmatprep.subr.bf16.mxu0 0
        %2641 = vmatpush1.bf16.msra.mxu0 %v2604
        %2642 = vmatprep.subr.bf16.mxu0 0
        %2643 = vmatpush1.bf16.msra.mxu0 %v2605
        %2644 = vmatprep.subr.bf16.mxu0 0
        %2645 = vmatpush1.bf16.msra.mxu0 %v2606
        %2646 = vmatprep.subr.bf16.mxu0 0
        %2647 = vmatpush1.bf16.msra.mxu0 %v2607
        %2648 = vmatprep.subr.bf16.mxu0 0
        %2649 = vmatpush1.bf16.msra.mxu0 %v2608
        %2650 = vmatprep.subr.bf16.mxu0 0
        %2651 = vmatpush1.bf16.msra.mxu0 %v2609
        %2652 = vmatprep.subr.bf16.mxu0 0
        %2653 = vmatpush1.bf16.msra.mxu0 %v2610
        %2654 = vmatprep.subr.bf16.mxu0 0
        %2655 = vmatpush1.bf16.msra.mxu0 %v2611
        %2656 = vmatprep.subr.bf16.mxu0 0
        %2657 = vmatpush1.bf16.msra.mxu0 %v2612
        %2658 = vmatprep.subr.bf16.mxu0 0
        %2659 = vmatpush1.bf16.msra.mxu0 %v2613
        %2660 = vmatprep.subr.bf16.mxu0 0
        %2661 = vmatpush1.bf16.msra.mxu0 %v2614
        %2662 = vmatprep.subr.bf16.mxu0 0
        %2663 = vmatpush1.bf16.msra.mxu0 %v2615
        %2664 = vmatprep.mubr.bf16.mxu0 %v2497
        %2665 = vmatmul.mubr.bf16.gmra.mrb[0].mxu0 %v2496
        %v2666 = vpop.f32.mrb[0].mxu0
        %v2667 = vadd.f32 0.0, %v2666
        %v2668 = vpop.f32.mrb[0].mxu0
        %v2669 = vpop.f32.mrb[0].mxu0
        %v2670 = vadd.f32 0.0, %v2669
        %v2671 = vpop.f32.mrb[0].mxu0
        %2672 = vmatprep.mubr.bf16.mxu0 %v2499
        %2673 = vmatmul.mubr.bf16.gmra.mrb[0].mxu0 %v2498
        %v2674 = vpop.f32.mrb[0].mxu0
        %v2675 = vadd.f32 0.0, %v2674
        %v2676 = vpop.f32.mrb[0].mxu0
        %v2677 = vpop.f32.mrb[0].mxu0
        %v2678 = vadd.f32 0.0, %v2677
        %v2679 = vpop.f32.mrb[0].mxu0
        %2680 = vmatprep.mubr.bf16.mxu0 %v2501
        %2681 = vmatmul.mubr.bf16.gmra.mrb[0].mxu0 %v2500
        %v2682 = vpop.f32.mrb[0].mxu0
        %v2683 = vadd.f32 0.0, %v2682
        %v2684 = vpop.f32.mrb[0].mxu0
        %v2685 = vpop.f32.mrb[0].mxu0
        %v2686 = vadd.f32 0.0, %v2685
        %v2687 = vpop.f32.mrb[0].mxu0
        %2688 = vmatprep.mubr.bf16.mxu0 %v2503
        %2689 = vmatmul.mubr.bf16.gmra.mrb[0].mxu0 %v2502
        %v2690 = vpop.f32.mrb[0].mxu0
        %v2691 = vadd.f32 0.0, %v2690
        %v2692 = vpop.f32.mrb[0].mxu0
        %v2693 = vpop.f32.mrb[0].mxu0
        %v2694 = vadd.f32 0.0, %v2693
        %v2695 = vpop.f32.mrb[0].mxu0
        %2696 = vdwg.mxu0
        %v2697 = vadd.f32 %v1143, %v2667
        %v2698 = vadd.f32 %v1144, %v2670
        %v2699 = vadd.f32 %v1145, %v2675
        %v2700 = vadd.f32 %v1146, %v2678
        %v2701 = vadd.f32 %v1147, %v2683
        %v2702 = vadd.f32 %v1148, %v2686
        %v2703 = vadd.f32 %v1149, %v2691
        %v2704 = vadd.f32 %v1150, %v2694
        %v2705 = vld [vmem:[%s951] sm:$0x1]
        %v2707 = vlaneseq
        %v2708 = vshrl.u32 %v2707, 7
        %v2709 = vsub.s32 0, %v2708
        %v2710 = vrot.slane %v2705, %v2709
        %v2712 = vadd.f32 %v2697, %v2710
        %v2713 = vadd.f32 %v2698, %v2710
        %v2714 = vadd.f32 %v2699, %v2710
        %v2715 = vadd.f32 %v2700, %v2710
        %v2716 = vadd.f32 %v2701, %v2710
        %v2717 = vadd.f32 %v2702, %v2710
        %v2718 = vadd.f32 %v2703, %v2710
        %v2719 = vadd.f32 %v2704, %v2710
        %v2720 = vld [vmem:[%s954] sm:$0x1]
        %v2721 = vld [vmem:[%s957] sm:$0x1]
        %2722 = vadd.xlane.f32.xlu0 %v2712
        %v2723 = vpop.xlane.xlu0 %2722
        %2724 = vadd.xlane.f32.xlu0 %v2713
        %v2725 = vpop.xlane.xlu0 %2724
        %2726 = vadd.xlane.f32.xlu0 %v2714
        %v2727 = vpop.xlane.xlu0 %2726
        %2728 = vadd.xlane.f32.xlu0 %v2715
        %v2729 = vpop.xlane.xlu0 %2728
        %2730 = vadd.xlane.f32.xlu0 %v2716
        %v2731 = vpop.xlane.xlu0 %2730
        %2732 = vadd.xlane.f32.xlu0 %v2717
        %v2733 = vpop.xlane.xlu0 %2732
        %2734 = vadd.xlane.f32.xlu0 %v2718
        %v2735 = vpop.xlane.xlu0 %2734
        %2736 = vadd.xlane.f32.xlu0 %v2719
        %v2737 = vpop.xlane.xlu0 %2736
        %v2738 = vmul.f32 %v2723, 0.010416667
        %v2739 = vmul.f32 %v2725, 0.010416667
        %v2740 = vmul.f32 %v2727, 0.010416667
        %v2741 = vmul.f32 %v2729, 0.010416667
        %v2742 = vmul.f32 %v2731, 0.010416667
        %v2743 = vmul.f32 %v2733, 0.010416667
        %v2744 = vmul.f32 %v2735, 0.010416667
        %v2745 = vmul.f32 %v2737, 0.010416667
        %v2746 = vsub.f32 %v2712, %v2738
        %v2747 = vsub.f32 %v2713, %v2739
        %v2748 = vsub.f32 %v2714, %v2740
        %v2749 = vsub.f32 %v2715, %v2741
        %v2750 = vsub.f32 %v2716, %v2742
        %v2751 = vsub.f32 %v2717, %v2743
        %v2752 = vsub.f32 %v2718, %v2744
        %v2753 = vsub.f32 %v2719, %v2745
        %v2754 = vsel %vm1116, 1, 0
        %vm2755 = vcmp.eq.s32.totalorder %v2754, 1
        %v2756 = vsel %vm2755, %v2746, 0.0
        %v2757 = vsel %vm2755, %v2747, 0.0
        %v2758 = vsel %vm2755, %v2748, 0.0
        %v2759 = vsel %vm2755, %v2749, 0.0
        %v2760 = vsel %vm2755, %v2750, 0.0
        %v2761 = vsel %vm2755, %v2751, 0.0
        %v2762 = vsel %vm2755, %v2752, 0.0
        %v2763 = vsel %vm2755, %v2753, 0.0
        %v2764 = vmul.f32 %v2756, %v2756
        %v2765 = vmul.f32 %v2757, %v2757
        %v2766 = vmul.f32 %v2758, %v2758
        %v2767 = vmul.f32 %v2759, %v2759
        %v2768 = vmul.f32 %v2760, %v2760
        %v2769 = vmul.f32 %v2761, %v2761
        %v2770 = vmul.f32 %v2762, %v2762
        %v2771 = vmul.f32 %v2763, %v2763
        %2772 = vadd.xlane.f32.xlu0 %v2764
        %v2773 = vpop.xlane.xlu0 %2772
        %2774 = vadd.xlane.f32.xlu0 %v2765
        %v2775 = vpop.xlane.xlu0 %2774
        %2776 = vadd.xlane.f32.xlu0 %v2766
        %v2777 = vpop.xlane.xlu0 %2776
        %2778 = vadd.xlane.f32.xlu0 %v2767
        %v2779 = vpop.xlane.xlu0 %2778
        %2780 = vadd.xlane.f32.xlu0 %v2768
        %v2781 = vpop.xlane.xlu0 %2780
        %2782 = vadd.xlane.f32.xlu0 %v2769
        %v2783 = vpop.xlane.xlu0 %2782
        %2784 = vadd.xlane.f32.xlu0 %v2770
        %v2785 = vpop.xlane.xlu0 %2784
        %2786 = vadd.xlane.f32.xlu0 %v2771
        %v2787 = vpop.xlane.xlu0 %2786
        %v2788 = vmul.f32 %v2773, 0.010416667
        %v2789 = vmul.f32 %v2775, 0.010416667
        %v2790 = vmul.f32 %v2777, 0.010416667
        %v2791 = vmul.f32 %v2779, 0.010416667
        %v2792 = vmul.f32 %v2781, 0.010416667
        %v2793 = vmul.f32 %v2783, 0.010416667
        %v2794 = vmul.f32 %v2785, 0.010416667
        %v2795 = vmul.f32 %v2787, 0.010416667
        %v2796 = vadd.f32 %v2788, 1e-05
        %v2797 = vadd.f32 %v2789, 1e-05
        %v2798 = vadd.f32 %v2790, 1e-05
        %v2799 = vadd.f32 %v2791, 1e-05
        %v2800 = vadd.f32 %v2792, 1e-05
        %v2801 = vadd.f32 %v2793, 1e-05
        %v2802 = vadd.f32 %v2794, 1e-05
        %v2803 = vadd.f32 %v2795, 1e-05
        %v2804 = vrsqrt.pop %v2796
        %v2805 = vrsqrt.pop %v2797
        %v2806 = vrsqrt.pop %v2798
        %v2807 = vrsqrt.pop %v2799
        %v2808 = vrsqrt.pop %v2800
        %v2809 = vrsqrt.pop %v2801
        %v2810 = vrsqrt.pop %v2802
        %v2811 = vrsqrt.pop %v2803
        %v2812 = vmul.f32 %v2756, %v2804
        %v2813 = vmul.f32 %v2757, %v2805
        %v2814 = vmul.f32 %v2758, %v2806
        %v2815 = vmul.f32 %v2759, %v2807
        %v2816 = vmul.f32 %v2760, %v2808
        %v2817 = vmul.f32 %v2761, %v2809
        %v2818 = vmul.f32 %v2762, %v2810
        %v2819 = vmul.f32 %v2763, %v2811
        %v2821 = vlaneseq
        %v2822 = vshrl.u32 %v2821, 7
        %v2823 = vsub.s32 0, %v2822
        %v2824 = vrot.slane %v2720, %v2823
        %v2826 = vmul.f32 %v2812, %v2824
        %v2827 = vmul.f32 %v2813, %v2824
        %v2828 = vmul.f32 %v2814, %v2824
        %v2829 = vmul.f32 %v2815, %v2824
        %v2830 = vmul.f32 %v2816, %v2824
        %v2831 = vmul.f32 %v2817, %v2824
        %v2832 = vmul.f32 %v2818, %v2824
        %v2833 = vmul.f32 %v2819, %v2824
        %v2835 = vlaneseq
        %v2836 = vshrl.u32 %v2835, 7
        %v2837 = vsub.s32 0, %v2836
        %v2838 = vrot.slane %v2721, %v2837
        %v2840 = vadd.f32 %v2826, %v2838
        %v2841 = vadd.f32 %v2827, %v2838
        %v2842 = vadd.f32 %v2828, %v2838
        %v2843 = vadd.f32 %v2829, %v2838
        %v2844 = vadd.f32 %v2830, %v2838
        %v2845 = vadd.f32 %v2831, %v2838
        %v2846 = vadd.f32 %v2832, %v2838
        %v2847 = vadd.f32 %v2833, %v2838
        %v2848 = vpack.c.bf16 %v2841, %v2840
        %v2849 = vpack.c.bf16 %v2843, %v2842
        %v2850 = vpack.c.bf16 %v2845, %v2844
        %v2851 = vpack.c.bf16 %v2847, %v2846
        %v2852 = vld [vmem:[%s962] sm:$0xf]
        %v2853 = vld [vmem:[%s962 + $0x4] sm:$0xf]
        %v2854 = vld [vmem:[%s962 + $0x8] sm:$0xf]
        %v2855 = vld [vmem:[%s962 + $0xc] sm:$0xf]
        %v2856 = vld [vmem:[%s962 + $0x10] sm:$0xf]
        %v2857 = vld [vmem:[%s962 + $0x14] sm:$0xf]
        %v2858 = vld [vmem:[%s962 + $0x18] sm:$0xf]
        %v2859 = vld [vmem:[%s962 + $0x1c] sm:$0xf]
        %v2860 = vld [vmem:[%s962 + $0x20] sm:$0xf]
        %v2861 = vld [vmem:[%s962 + $0x24] sm:$0xf]
        %v2862 = vld [vmem:[%s962 + $0x28] sm:$0xf]
        %v2863 = vld [vmem:[%s962 + $0x2c] sm:$0xf]
        %v2864 = vld [vmem:[%s962 + $0x30] sm:$0xf]
        %v2865 = vld [vmem:[%s962 + $0x34] sm:$0xf]
        %v2866 = vld [vmem:[%s962 + $0x38] sm:$0xf]
        %v2867 = vld [vmem:[%s962 + $0x3c] sm:$0xf]
        %v2868 = vld [vmem:[%s965] sm:$0x1]
        %v2870 = vlaneseq
        %v2871 = vshrl.u32 %v2870, 7
        %v2872 = vsub.s32 0, %v2871
        %v2873 = vrot.slane %v2868, %v2872
        %v2891 = vunpack.c.l.b16 %v2852
        %v2892 = vunpack.c.l.b16 %v2853
        %v2893 = vunpack.c.l.b16 %v2854
        %v2894 = vunpack.c.l.b16 %v2855
        %v2895 = vunpack.c.l.b16 %v2856
        %v2896 = vunpack.c.l.b16 %v2857
        %v2897 = vunpack.c.l.b16 %v2858
        %v2898 = vunpack.c.l.b16 %v2859
        %v2899 = vunpack.c.l.b16 %v2860
        %v2900 = vunpack.c.l.b16 %v2861
        %v2901 = vunpack.c.l.b16 %v2862
        %v2902 = vunpack.c.l.b16 %v2863
        %v2903 = vunpack.c.l.b16 %v2864
        %v2904 = vunpack.c.l.b16 %v2865
        %v2905 = vunpack.c.l.b16 %v2866
        %v2906 = vunpack.c.l.b16 %v2867
        %v2907 = vpack.c.b16 %v2892, %v2891
        %v2908 = vpack.c.b16 %v2894, %v2893
        %v2909 = vpack.c.b16 %v2896, %v2895
        %v2910 = vpack.c.b16 %v2898, %v2897
        %v2911 = vpack.c.b16 %v2900, %v2899
        %v2912 = vpack.c.b16 %v2902, %v2901
        %v2913 = vpack.c.b16 %v2904, %v2903
        %v2914 = vpack.c.b16 %v2906, %v2905
        %2923 = vmatprep.subr.bf16.mxu0 0
        %2924 = vmatpush1.bf16.msra.mxu0 %v2907
        %2925 = vmatprep.subr.bf16.mxu0 0
        %2926 = vmatpush1.bf16.msra.mxu0 %v2908
        %2927 = vmatprep.subr.bf16.mxu0 0
        %2928 = vmatpush1.bf16.msra.mxu0 %v2909
        %2929 = vmatprep.subr.bf16.mxu0 0
        %2930 = vmatpush1.bf16.msra.mxu0 %v2910
        %2931 = vmatprep.subr.bf16.mxu0 0
        %2932 = vmatpush1.bf16.msra.mxu0 %v2911
        %2933 = vmatprep.subr.bf16.mxu0 0
        %2934 = vmatpush1.bf16.msra.mxu0 %v2912
        %2935 = vmatprep.subr.bf16.mxu0 0
        %2936 = vmatpush1.bf16.msra.mxu0 %v2913
        %2937 = vmatprep.subr.bf16.mxu0 0
        %2938 = vmatpush1.bf16.msra.mxu0 %v2914
        %2939 = vmatprep.subr.bf16.mxu0 0
        %2940 = vmatpush1.bf16.msra.mxu0 0
        %2941 = vmatprep.subr.bf16.mxu0 0
        %2942 = vmatpush1.bf16.msra.mxu0 0
        %2943 = vmatprep.subr.bf16.mxu0 0
        %2944 = vmatpush1.bf16.msra.mxu0 0
        %2945 = vmatprep.subr.bf16.mxu0 0
        %2946 = vmatpush1.bf16.msra.mxu0 0
        %2947 = vmatprep.subr.bf16.mxu0 0
        %2948 = vmatpush1.bf16.msra.mxu0 0
        %2949 = vmatprep.subr.bf16.mxu0 0
        %2950 = vmatpush1.bf16.msra.mxu0 0
        %2951 = vmatprep.subr.bf16.mxu0 0
        %2952 = vmatpush1.bf16.msra.mxu0 0
        %2953 = vmatprep.subr.bf16.mxu0 0
        %2954 = vmatpush1.bf16.msra.mxu0 0
        %2955 = vmatprep.mubr.bf16.mxu0 0
        %2956 = vmatmul.mubr.bf16.gmra.mrb[0].mxu0 %v2848
        %v2957 = vpop.f32.mrb[0].mxu0
        %v2958 = vadd.f32 %v2873, %v2957
        %v2959 = vpop.f32.mrb[0].mxu0
        %v2960 = vpop.f32.mrb[0].mxu0
        %v2961 = vadd.f32 %v2873, %v2960
        %v2962 = vpop.f32.mrb[0].mxu0
        %2963 = vmatprep.mubr.bf16.mxu0 0
        %2964 = vmatmul.mubr.bf16.gmra.mrb[0].mxu0 %v2849
        %v2965 = vpop.f32.mrb[0].mxu0
        %v2966 = vadd.f32 %v2873, %v2965
        %v2967 = vpop.f32.mrb[0].mxu0
        %v2968 = vpop.f32.mrb[0].mxu0
        %v2969 = vadd.f32 %v2873, %v2968
        %v2970 = vpop.f32.mrb[0].mxu0
        %2971 = vmatprep.mubr.bf16.mxu0 0
        %2972 = vmatmul.mubr.bf16.gmra.mrb[0].mxu0 %v2850
        %v2973 = vpop.f32.mrb[0].mxu0
        %v2974 = vadd.f32 %v2873, %v2973
        %v2975 = vpop.f32.mrb[0].mxu0
        %v2976 = vpop.f32.mrb[0].mxu0
        %v2977 = vadd.f32 %v2873, %v2976
        %v2978 = vpop.f32.mrb[0].mxu0
        %2979 = vmatprep.mubr.bf16.mxu0 0
        %2980 = vmatmul.mubr.bf16.gmra.mrb[0].mxu0 %v2851
        %v2981 = vpop.f32.mrb[0].mxu0
        %v2982 = vadd.f32 %v2873, %v2981
        %v2983 = vpop.f32.mrb[0].mxu0
        %v2984 = vpop.f32.mrb[0].mxu0
        %v2985 = vadd.f32 %v2873, %v2984
        %v2986 = vpop.f32.mrb[0].mxu0
        %2987 = vdwg.mxu0
        %v2988 = vmax.f32 %v2958, 0.0
        %v2989 = vmax.f32 %v2961, 0.0
        %v2990 = vmax.f32 %v2966, 0.0
        %v2991 = vmax.f32 %v2969, 0.0
        %v2992 = vmax.f32 %v2974, 0.0
        %v2993 = vmax.f32 %v2977, 0.0
        %v2994 = vmax.f32 %v2982, 0.0
        %v2995 = vmax.f32 %v2985, 0.0
        %v2996 = vpack.c.bf16 %v2989, %v2988
        %v2997 = vpack.c.bf16 %v2991, %v2990
        %v2998 = vpack.c.bf16 %v2993, %v2992
        %v2999 = vpack.c.bf16 %v2995, %v2994
        %v3000 = vld [vmem:[%s970] sm:$0xf]
        %v3001 = vld [vmem:[%s970 + $0x4] sm:$0xf]
        %v3002 = vld [vmem:[%s970 + $0x8] sm:$0xf]
        %v3003 = vld [vmem:[%s970 + $0xc] sm:$0xf]
        %v3004 = vld [vmem:[%s970 + $0x10] sm:$0xf]
        %v3005 = vld [vmem:[%s970 + $0x14] sm:$0xf]
        %v3006 = vld [vmem:[%s970 + $0x18] sm:$0xf]
        %v3007 = vld [vmem:[%s970 + $0x1c] sm:$0xf]
        %v3008 = vld [vmem:[%s970 + $0x20] sm:$0xf]
        %v3009 = vld [vmem:[%s970 + $0x24] sm:$0xf]
        %v3010 = vld [vmem:[%s970 + $0x28] sm:$0xf]
        %v3011 = vld [vmem:[%s970 + $0x2c] sm:$0xf]
        %v3012 = vld [vmem:[%s970 + $0x30] sm:$0xf]
        %v3013 = vld [vmem:[%s970 + $0x34] sm:$0xf]
        %v3014 = vld [vmem:[%s970 + $0x38] sm:$0xf]
        %v3015 = vld [vmem:[%s970 + $0x3c] sm:$0xf]
        %v3016 = vld [vmem:[%s973] sm:$0x1]
        %v3018 = vlaneseq
        %v3019 = vshrl.u32 %v3018, 7
        %v3020 = vsub.s32 0, %v3019
        %v3021 = vrot.slane %v3016, %v3020
        %v3039 = vunpack.c.l.b16 %v3000
        %v3040 = vunpack.c.l.b16 %v3001
        %v3041 = vunpack.c.l.b16 %v3002
        %v3042 = vunpack.c.l.b16 %v3003
        %v3043 = vunpack.c.l.b16 %v3004
        %v3044 = vunpack.c.l.b16 %v3005
        %v3045 = vunpack.c.l.b16 %v3006
        %v3046 = vunpack.c.l.b16 %v3007
        %v3047 = vunpack.c.l.b16 %v3008
        %v3048 = vunpack.c.l.b16 %v3009
        %v3049 = vunpack.c.l.b16 %v3010
        %v3050 = vunpack.c.l.b16 %v3011
        %v3051 = vunpack.c.l.b16 %v3012
        %v3052 = vunpack.c.l.b16 %v3013
        %v3053 = vunpack.c.l.b16 %v3014
        %v3054 = vunpack.c.l.b16 %v3015
        %v3055 = vpack.c.b16 %v3040, %v3039
        %v3056 = vpack.c.b16 %v3042, %v3041
        %v3057 = vpack.c.b16 %v3044, %v3043
        %v3058 = vpack.c.b16 %v3046, %v3045
        %v3059 = vpack.c.b16 %v3048, %v3047
        %v3060 = vpack.c.b16 %v3050, %v3049
        %v3061 = vpack.c.b16 %v3052, %v3051
        %v3062 = vpack.c.b16 %v3054, %v3053
        %3071 = vmatprep.subr.bf16.mxu0 0
        %3072 = vmatpush1.bf16.msra.mxu0 %v3055
        %3073 = vmatprep.subr.bf16.mxu0 0
        %3074 = vmatpush1.bf16.msra.mxu0 %v3056
        %3075 = vmatprep.subr.bf16.mxu0 0
        %3076 = vmatpush1.bf16.msra.mxu0 %v3057
        %3077 = vmatprep.subr.bf16.mxu0 0
        %3078 = vmatpush1.bf16.msra.mxu0 %v3058
        %3079 = vmatprep.subr.bf16.mxu0 0
        %3080 = vmatpush1.bf16.msra.mxu0 %v3059
        %3081 = vmatprep.subr.bf16.mxu0 0
        %3082 = vmatpush1.bf16.msra.mxu0 %v3060
        %3083 = vmatprep.subr.bf16.mxu0 0
        %3084 = vmatpush1.bf16.msra.mxu0 %v3061
        %3085 = vmatprep.subr.bf16.mxu0 0
        %3086 = vmatpush1.bf16.msra.mxu0 %v3062
        %3087 = vmatprep.subr.bf16.mxu0 0
        %3088 = vmatpush1.bf16.msra.mxu0 0
        %3089 = vmatprep.subr.bf16.mxu0 0
        %3090 = vmatpush1.bf16.msra.mxu0 0
        %3091 = vmatprep.subr.bf16.mxu0 0
        %3092 = vmatpush1.bf16.msra.mxu0 0
        %3093 = vmatprep.subr.bf16.mxu0 0
        %3094 = vmatpush1.bf16.msra.mxu0 0
        %3095 = vmatprep.subr.bf16.mxu0 0
        %3096 = vmatpush1.bf16.msra.mxu0 0
        %3097 = vmatprep.subr.bf16.mxu0 0
        %3098 = vmatpush1.bf16.msra.mxu0 0
        %3099 = vmatprep.subr.bf16.mxu0 0
        %3100 = vmatpush1.bf16.msra.mxu0 0
        %3101 = vmatprep.subr.bf16.mxu0 0
        %3102 = vmatpush1.bf16.msra.mxu0 0
        %3103 = vmatprep.mubr.bf16.mxu0 0
        %3104 = vmatmul.mubr.bf16.gmra.mrb[0].mxu0 %v2996
        %v3105 = vpop.f32.mrb[0].mxu0
        %v3106 = vadd.f32 %v3021, %v3105
        %v3107 = vpop.f32.mrb[0].mxu0
        %v3108 = vpop.f32.mrb[0].mxu0
        %v3109 = vadd.f32 %v3021, %v3108
        %v3110 = vpop.f32.mrb[0].mxu0
        %3111 = vmatprep.mubr.bf16.mxu0 0
        %3112 = vmatmul.mubr.bf16.gmra.mrb[0].mxu0 %v2997
        %v3113 = vpop.f32.mrb[0].mxu0
        %v3114 = vadd.f32 %v3021, %v3113
        %v3115 = vpop.f32.mrb[0].mxu0
        %v3116 = vpop.f32.mrb[0].mxu0
        %v3117 = vadd.f32 %v3021, %v3116
        %v3118 = vpop.f32.mrb[0].mxu0
        %3119 = vmatprep.mubr.bf16.mxu0 0
        %3120 = vmatmul.mubr.bf16.gmra.mrb[0].mxu0 %v2998
        %v3121 = vpop.f32.mrb[0].mxu0
        %v3122 = vadd.f32 %v3021, %v3121
        %v3123 = vpop.f32.mrb[0].mxu0
        %v3124 = vpop.f32.mrb[0].mxu0
        %v3125 = vadd.f32 %v3021, %v3124
        %v3126 = vpop.f32.mrb[0].mxu0
        %3127 = vmatprep.mubr.bf16.mxu0 0
        %3128 = vmatmul.mubr.bf16.gmra.mrb[0].mxu0 %v2999
        %v3129 = vpop.f32.mrb[0].mxu0
        %v3130 = vadd.f32 %v3021, %v3129
        %v3131 = vpop.f32.mrb[0].mxu0
        %v3132 = vpop.f32.mrb[0].mxu0
        %v3133 = vadd.f32 %v3021, %v3132
        %v3134 = vpop.f32.mrb[0].mxu0
        %3135 = vdwg.mxu0
        %v3136 = vadd.f32 %v2840, %v3106
        %v3137 = vadd.f32 %v2841, %v3109
        %v3138 = vadd.f32 %v2842, %v3114
        %v3139 = vadd.f32 %v2843, %v3117
        %v3140 = vadd.f32 %v2844, %v3122
        %v3141 = vadd.f32 %v2845, %v3125
        %v3142 = vadd.f32 %v2846, %v3130
        %v3143 = vadd.f32 %v2847, %v3133
        %v3144 = vld [vmem:[%s976] sm:$0x1]
        %v3145 = vld [vmem:[%s979] sm:$0x1]
        %3146 = vadd.xlane.f32.xlu0 %v3136
        %v3147 = vpop.xlane.xlu0 %3146
        %3148 = vadd.xlane.f32.xlu0 %v3137
        %v3149 = vpop.xlane.xlu0 %3148
        %3150 = vadd.xlane.f32.xlu0 %v3138
        %v3151 = vpop.xlane.xlu0 %3150
        %3152 = vadd.xlane.f32.xlu0 %v3139
        %v3153 = vpop.xlane.xlu0 %3152
        %3154 = vadd.xlane.f32.xlu0 %v3140
        %v3155 = vpop.xlane.xlu0 %3154
        %3156 = vadd.xlane.f32.xlu0 %v3141
        %v3157 = vpop.xlane.xlu0 %3156
        %3158 = vadd.xlane.f32.xlu0 %v3142
        %v3159 = vpop.xlane.xlu0 %3158
        %3160 = vadd.xlane.f32.xlu0 %v3143
        %v3161 = vpop.xlane.xlu0 %3160
        %v3162 = vmul.f32 %v3147, 0.010416667
        %v3163 = vmul.f32 %v3149, 0.010416667
        %v3164 = vmul.f32 %v3151, 0.010416667
        %v3165 = vmul.f32 %v3153, 0.010416667
        %v3166 = vmul.f32 %v3155, 0.010416667
        %v3167 = vmul.f32 %v3157, 0.010416667
        %v3168 = vmul.f32 %v3159, 0.010416667
        %v3169 = vmul.f32 %v3161, 0.010416667
        %v3170 = vsub.f32 %v3136, %v3162
        %v3171 = vsub.f32 %v3137, %v3163
        %v3172 = vsub.f32 %v3138, %v3164
        %v3173 = vsub.f32 %v3139, %v3165
        %v3174 = vsub.f32 %v3140, %v3166
        %v3175 = vsub.f32 %v3141, %v3167
        %v3176 = vsub.f32 %v3142, %v3168
        %v3177 = vsub.f32 %v3143, %v3169
        %v3178 = vsel %vm2755, %v3170, 0.0
        %v3179 = vsel %vm2755, %v3171, 0.0
        %v3180 = vsel %vm2755, %v3172, 0.0
        %v3181 = vsel %vm2755, %v3173, 0.0
        %v3182 = vsel %vm2755, %v3174, 0.0
        %v3183 = vsel %vm2755, %v3175, 0.0
        %v3184 = vsel %vm2755, %v3176, 0.0
        %v3185 = vsel %vm2755, %v3177, 0.0
        %v3186 = vmul.f32 %v3178, %v3178
        %v3187 = vmul.f32 %v3179, %v3179
        %v3188 = vmul.f32 %v3180, %v3180
        %v3189 = vmul.f32 %v3181, %v3181
        %v3190 = vmul.f32 %v3182, %v3182
        %v3191 = vmul.f32 %v3183, %v3183
        %v3192 = vmul.f32 %v3184, %v3184
        %v3193 = vmul.f32 %v3185, %v3185
        %3194 = vadd.xlane.f32.xlu0 %v3186
        %v3195 = vpop.xlane.xlu0 %3194
        %3196 = vadd.xlane.f32.xlu0 %v3187
        %v3197 = vpop.xlane.xlu0 %3196
        %3198 = vadd.xlane.f32.xlu0 %v3188
        %v3199 = vpop.xlane.xlu0 %3198
        %3200 = vadd.xlane.f32.xlu0 %v3189
        %v3201 = vpop.xlane.xlu0 %3200
        %3202 = vadd.xlane.f32.xlu0 %v3190
        %v3203 = vpop.xlane.xlu0 %3202
        %3204 = vadd.xlane.f32.xlu0 %v3191
        %v3205 = vpop.xlane.xlu0 %3204
        %3206 = vadd.xlane.f32.xlu0 %v3192
        %v3207 = vpop.xlane.xlu0 %3206
        %3208 = vadd.xlane.f32.xlu0 %v3193
        %v3209 = vpop.xlane.xlu0 %3208
        %v3210 = vmul.f32 %v3195, 0.010416667
        %v3211 = vmul.f32 %v3197, 0.010416667
        %v3212 = vmul.f32 %v3199, 0.010416667
        %v3213 = vmul.f32 %v3201, 0.010416667
        %v3214 = vmul.f32 %v3203, 0.010416667
        %v3215 = vmul.f32 %v3205, 0.010416667
        %v3216 = vmul.f32 %v3207, 0.010416667
        %v3217 = vmul.f32 %v3209, 0.010416667
        %v3218 = vadd.f32 %v3210, 1e-05
        %v3219 = vadd.f32 %v3211, 1e-05
        %v3220 = vadd.f32 %v3212, 1e-05
        %v3221 = vadd.f32 %v3213, 1e-05
        %v3222 = vadd.f32 %v3214, 1e-05
        %v3223 = vadd.f32 %v3215, 1e-05
        %v3224 = vadd.f32 %v3216, 1e-05
        %v3225 = vadd.f32 %v3217, 1e-05
        %v3226 = vrsqrt.pop %v3218
        %v3227 = vrsqrt.pop %v3219
        %v3228 = vrsqrt.pop %v3220
        %v3229 = vrsqrt.pop %v3221
        %v3230 = vrsqrt.pop %v3222
        %v3231 = vrsqrt.pop %v3223
        %v3232 = vrsqrt.pop %v3224
        %v3233 = vrsqrt.pop %v3225
        %v3234 = vmul.f32 %v3178, %v3226
        %v3235 = vmul.f32 %v3179, %v3227
        %v3236 = vmul.f32 %v3180, %v3228
        %v3237 = vmul.f32 %v3181, %v3229
        %v3238 = vmul.f32 %v3182, %v3230
        %v3239 = vmul.f32 %v3183, %v3231
        %v3240 = vmul.f32 %v3184, %v3232
        %v3241 = vmul.f32 %v3185, %v3233
        %v3243 = vlaneseq
        %v3244 = vshrl.u32 %v3243, 7
        %v3245 = vsub.s32 0, %v3244
        %v3246 = vrot.slane %v3144, %v3245
        %v3248 = vmul.f32 %v3234, %v3246
        %v3249 = vmul.f32 %v3235, %v3246
        %v3250 = vmul.f32 %v3236, %v3246
        %v3251 = vmul.f32 %v3237, %v3246
        %v3252 = vmul.f32 %v3238, %v3246
        %v3253 = vmul.f32 %v3239, %v3246
        %v3254 = vmul.f32 %v3240, %v3246
        %v3255 = vmul.f32 %v3241, %v3246
        %v3257 = vlaneseq
        %v3258 = vshrl.u32 %v3257, 7
        %v3259 = vsub.s32 0, %v3258
        %v3260 = vrot.slane %v3145, %v3259
        %v3262 = vadd.f32 %v3248, %v3260
        %v3263 = vadd.f32 %v3249, %v3260
        %v3264 = vadd.f32 %v3250, %v3260
        %v3265 = vadd.f32 %v3251, %v3260
        %v3266 = vadd.f32 %v3252, %v3260
        %v3267 = vadd.f32 %v3253, %v3260
        %v3268 = vadd.f32 %v3254, %v3260
        %v3269 = vadd.f32 %v3255, %v3260
        %3270 = vst [vmem:[#allocation2] sm:$0xff] %v3262
        %3271 = vst [vmem:[#allocation2 + $0x8] sm:$0xff] %v3263
        %3272 = vst [vmem:[#allocation2 + $0x10] sm:$0xff] %v3264
        %3273 = vst [vmem:[#allocation2 + $0x18] sm:$0xff] %v3265
        %3274 = vst [vmem:[#allocation2 + $0x20] sm:$0xff] %v3266
        %3275 = vst [vmem:[#allocation2 + $0x28] sm:$0xff] %v3267
        %3276 = vst [vmem:[#allocation2 + $0x30] sm:$0xff] %v3268
        %3277 = vst [vmem:[#allocation2 + $0x38] sm:$0xff] %v3269
        %p3278 = scmp.eq.s32.totalorder %s39, 3
        // Predicated region
        $region133: #{our_model_forward.1} parent=127 // pred_check
          %p3279 = pneg %p3278
        $region134: #{our_model_forward.1} parent=127 // pred_check_branch
          %3281 = sbr.rel (%p3279) target = $region136
        $region135: #{our_model_forward.1} parent=127 // pred_region
          %v3282 = vmax.f32 %v3262, 0.0
          %v3283 = vmax.f32 %v3263, 0.0
          %v3284 = vmax.f32 %v3264, 0.0
          %v3285 = vmax.f32 %v3265, 0.0
          %v3286 = vmax.f32 %v3266, 0.0
          %v3287 = vmax.f32 %v3267, 0.0
          %v3288 = vmax.f32 %v3268, 0.0
          %v3289 = vmax.f32 %v3269, 0.0
          %v3290 = vld [vmem:[%s16] sm:$0xff]
          %v3291 = vld [vmem:[%s16 + $0x8] sm:$0xff]
          %v3292 = vld [vmem:[%s16 + $0x10] sm:$0xff]
          %v3293 = vld [vmem:[%s16 + $0x18] sm:$0xff]
          %v3294 = vld [vmem:[%s16 + $0x20] sm:$0xff]
          %v3295 = vld [vmem:[%s16 + $0x28] sm:$0xff]
          %v3296 = vld [vmem:[%s16 + $0x30] sm:$0xff]
          %v3297 = vld [vmem:[%s16 + $0x38] sm:$0xff]
          %v3298 = vld [vmem:[%s17] sm:$0xff]
          %v3299 = vld [vmem:[%s17 + $0x8] sm:$0xff]
          %v3300 = vld [vmem:[%s17 + $0x10] sm:$0xff]
          %v3301 = vld [vmem:[%s17 + $0x18] sm:$0xff]
          %v3302 = vld [vmem:[%s17 + $0x20] sm:$0xff]
          %v3303 = vld [vmem:[%s17 + $0x28] sm:$0xff]
          %v3304 = vld [vmem:[%s17 + $0x30] sm:$0xff]
          %v3305 = vld [vmem:[%s17 + $0x38] sm:$0xff]
          %vm3306 = vcmp.eq.f32.partialorder %v3298, 0.0
          %vm3307 = vcmp.eq.f32.partialorder %v3299, 0.0
          %vm3308 = vcmp.eq.f32.partialorder %v3300, 0.0
          %vm3309 = vcmp.eq.f32.partialorder %v3301, 0.0
          %vm3310 = vcmp.eq.f32.partialorder %v3302, 0.0
          %vm3311 = vcmp.eq.f32.partialorder %v3303, 0.0
          %vm3312 = vcmp.eq.f32.partialorder %v3304, 0.0
          %vm3313 = vcmp.eq.f32.partialorder %v3305, 0.0
          %v3314 = vrcp.pop 1000.0
          %v3315 = vmul.f32 %v3290, %v3314
          %v3316 = vmul.f32 %v3291, %v3314
          %v3317 = vmul.f32 %v3292, %v3314
          %v3318 = vmul.f32 %v3293, %v3314
          %v3319 = vmul.f32 %v3294, %v3314
          %v3320 = vmul.f32 %v3295, %v3314
          %v3321 = vmul.f32 %v3296, %v3314
          %v3322 = vmul.f32 %v3297, %v3314
          %v3323 = vsel %vm3306, %v3315, %v3290
          %v3324 = vsel %vm3307, %v3316, %v3291
          %v3325 = vsel %vm3308, %v3317, %v3292
          %v3326 = vsel %vm3309, %v3318, %v3293
          %v3327 = vsel %vm3310, %v3319, %v3294
          %v3328 = vsel %vm3311, %v3320, %v3295
          %v3329 = vsel %vm3312, %v3321, %v3296
          %v3330 = vsel %vm3313, %v3322, %v3297
          %vm3331 = vcmask 162816
          %v3332 = vsel %vm3331, %v3323, 0.0
          %3333 = vadd.xlane.f32.xlu0 %v3332
          %v3334 = vpop.xlane.xlu0 %3333
          %v3335 = vsel %vm3331, %v3324, 0.0
          %3336 = vadd.xlane.f32.xlu0 %v3335
          %v3337 = vpop.xlane.xlu0 %3336
          %v3338 = vsel %vm3331, %v3325, 0.0
          %3339 = vadd.xlane.f32.xlu0 %v3338
          %v3340 = vpop.xlane.xlu0 %3339
          %v3341 = vsel %vm3331, %v3326, 0.0
          %3342 = vadd.xlane.f32.xlu0 %v3341
          %v3343 = vpop.xlane.xlu0 %3342
          %v3344 = vsel %vm3331, %v3327, 0.0
          %3345 = vadd.xlane.f32.xlu0 %v3344
          %v3346 = vpop.xlane.xlu0 %3345
          %v3347 = vsel %vm3331, %v3328, 0.0
          %3348 = vadd.xlane.f32.xlu0 %v3347
          %v3349 = vpop.xlane.xlu0 %3348
          %v3350 = vsel %vm3331, %v3329, 0.0
          %3351 = vadd.xlane.f32.xlu0 %v3350
          %v3352 = vpop.xlane.xlu0 %3351
          %v3353 = vsel %vm3331, %v3330, 0.0
          %3354 = vadd.xlane.f32.xlu0 %v3353
          %v3355 = vpop.xlane.xlu0 %3354
          %v3356 = vmul.f32 %v3323, %v3298
          %v3357 = vmul.f32 %v3324, %v3299
          %v3358 = vmul.f32 %v3325, %v3300
          %v3359 = vmul.f32 %v3326, %v3301
          %v3360 = vmul.f32 %v3327, %v3302
          %v3361 = vmul.f32 %v3328, %v3303
          %v3362 = vmul.f32 %v3329, %v3304
          %v3363 = vmul.f32 %v3330, %v3305
          %v3364 = vsel %vm3331, %v3356, 0.0
          %3365 = vadd.xlane.f32.xlu0 %v3364
          %v3366 = vpop.xlane.xlu0 %3365
          %v3367 = vsel %vm3331, %v3357, 0.0
          %3368 = vadd.xlane.f32.xlu0 %v3367
          %v3369 = vpop.xlane.xlu0 %3368
          %v3370 = vsel %vm3331, %v3358, 0.0
          %3371 = vadd.xlane.f32.xlu0 %v3370
          %v3372 = vpop.xlane.xlu0 %3371
          %v3373 = vsel %vm3331, %v3359, 0.0
          %3374 = vadd.xlane.f32.xlu0 %v3373
          %v3375 = vpop.xlane.xlu0 %3374
          %v3376 = vsel %vm3331, %v3360, 0.0
          %3377 = vadd.xlane.f32.xlu0 %v3376
          %v3378 = vpop.xlane.xlu0 %3377
          %v3379 = vsel %vm3331, %v3361, 0.0
          %3380 = vadd.xlane.f32.xlu0 %v3379
          %v3381 = vpop.xlane.xlu0 %3380
          %v3382 = vsel %vm3331, %v3362, 0.0
          %3383 = vadd.xlane.f32.xlu0 %v3382
          %v3384 = vpop.xlane.xlu0 %3383
          %v3385 = vsel %vm3331, %v3363, 0.0
          %3386 = vadd.xlane.f32.xlu0 %v3385
          %v3387 = vpop.xlane.xlu0 %3386
          %v3388 = vrcp.pop %v3334
          %v3389 = vmul.f32 %v3366, %v3388
          %v3390 = vrcp.pop %v3337
          %v3391 = vmul.f32 %v3369, %v3390
          %v3392 = vrcp.pop %v3340
          %v3393 = vmul.f32 %v3372, %v3392
          %v3394 = vrcp.pop %v3343
          %v3395 = vmul.f32 %v3375, %v3394
          %v3396 = vrcp.pop %v3346
          %v3397 = vmul.f32 %v3378, %v3396
          %v3398 = vrcp.pop %v3349
          %v3399 = vmul.f32 %v3381, %v3398
          %v3400 = vrcp.pop %v3352
          %v3401 = vmul.f32 %v3384, %v3400
          %v3402 = vrcp.pop %v3355
          %v3403 = vmul.f32 %v3387, %v3402
          %v3404 = vsel %vm3331, %v3298, 0.0
          %3405 = vadd.xlane.f32.xlu0 %v3404
          %v3406 = vpop.xlane.xlu0 %3405
          %v3407 = vsel %vm3331, %v3299, 0.0
          %3408 = vadd.xlane.f32.xlu0 %v3407
          %v3409 = vpop.xlane.xlu0 %3408
          %v3410 = vsel %vm3331, %v3300, 0.0
          %3411 = vadd.xlane.f32.xlu0 %v3410
          %v3412 = vpop.xlane.xlu0 %3411
          %v3413 = vsel %vm3331, %v3301, 0.0
          %3414 = vadd.xlane.f32.xlu0 %v3413
          %v3415 = vpop.xlane.xlu0 %3414
          %v3416 = vsel %vm3331, %v3302, 0.0
          %3417 = vadd.xlane.f32.xlu0 %v3416
          %v3418 = vpop.xlane.xlu0 %3417
          %v3419 = vsel %vm3331, %v3303, 0.0
          %3420 = vadd.xlane.f32.xlu0 %v3419
          %v3421 = vpop.xlane.xlu0 %3420
          %v3422 = vsel %vm3331, %v3304, 0.0
          %3423 = vadd.xlane.f32.xlu0 %v3422
          %v3424 = vpop.xlane.xlu0 %3423
          %v3425 = vsel %vm3331, %v3305, 0.0
          %3426 = vadd.xlane.f32.xlu0 %v3425
          %v3427 = vpop.xlane.xlu0 %3426
          %v3428 = vmul.f32 %v3406, 0.05
          %v3429 = vmul.f32 %v3409, 0.05
          %v3430 = vmul.f32 %v3412, 0.05
          %v3431 = vmul.f32 %v3415, 0.05
          %v3432 = vmul.f32 %v3418, 0.05
          %v3433 = vmul.f32 %v3421, 0.05
          %v3434 = vmul.f32 %v3424, 0.05
          %v3435 = vmul.f32 %v3427, 0.05
          %v3436 = vsub.f32 %v3298, %v3428
          %v3437 = vsub.f32 %v3299, %v3429
          %v3438 = vsub.f32 %v3300, %v3430
          %v3439 = vsub.f32 %v3301, %v3431
          %v3440 = vsub.f32 %v3302, %v3432
          %v3441 = vsub.f32 %v3303, %v3433
          %v3442 = vsub.f32 %v3304, %v3434
          %v3443 = vsub.f32 %v3305, %v3435
          %v3444 = vmul.f32 %v3436, %v3436
          %v3445 = vmul.f32 %v3437, %v3437
          %v3446 = vmul.f32 %v3438, %v3438
          %v3447 = vmul.f32 %v3439, %v3439
          %v3448 = vmul.f32 %v3440, %v3440
          %v3449 = vmul.f32 %v3441, %v3441
          %v3450 = vmul.f32 %v3442, %v3442
          %v3451 = vmul.f32 %v3443, %v3443
          %v3452 = vsel %vm3331, %v3444, 0.0
          %3453 = vadd.xlane.f32.xlu0 %v3452
          %v3454 = vpop.xlane.xlu0 %3453
          %v3455 = vsel %vm3331, %v3445, 0.0
          %3456 = vadd.xlane.f32.xlu0 %v3455
          %v3457 = vpop.xlane.xlu0 %3456
          %v3458 = vsel %vm3331, %v3446, 0.0
          %3459 = vadd.xlane.f32.xlu0 %v3458
          %v3460 = vpop.xlane.xlu0 %3459
          %v3461 = vsel %vm3331, %v3447, 0.0
          %3462 = vadd.xlane.f32.xlu0 %v3461
          %v3463 = vpop.xlane.xlu0 %3462
          %v3464 = vsel %vm3331, %v3448, 0.0
          %3465 = vadd.xlane.f32.xlu0 %v3464
          %v3466 = vpop.xlane.xlu0 %3465
          %v3467 = vsel %vm3331, %v3449, 0.0
          %3468 = vadd.xlane.f32.xlu0 %v3467
          %v3469 = vpop.xlane.xlu0 %3468
          %v3470 = vsel %vm3331, %v3450, 0.0
          %3471 = vadd.xlane.f32.xlu0 %v3470
          %v3472 = vpop.xlane.xlu0 %3471
          %v3473 = vsel %vm3331, %v3451, 0.0
          %3474 = vadd.xlane.f32.xlu0 %v3473
          %v3475 = vpop.xlane.xlu0 %3474
          %v3476 = vmul.f32 %v3454, 0.05263158
          %v3477 = vmul.f32 %v3457, 0.05263158
          %v3478 = vmul.f32 %v3460, 0.05263158
          %v3479 = vmul.f32 %v3463, 0.05263158
          %v3480 = vmul.f32 %v3466, 0.05263158
          %v3481 = vmul.f32 %v3469, 0.05263158
          %v3482 = vmul.f32 %v3472, 0.05263158
          %v3483 = vmul.f32 %v3475, 0.05263158
          %v3484 = vrsqrt.pop %v3476
          %v3485 = vmul.f32 %v3476, %v3484
          %vm3486 = vcmp.eq.f32.partialorder %v3476, inf
          %v3487 = vsel %vm3486, %v3476, %v3485
          %vm3488 = vcmp.eq.f32.partialorder %v3476, 0.0
          %v3489 = vand.u32 %v3476, 2147483648
          %v3490 = vsel %vm3488, %v3489, %v3487
          %v3491 = vrsqrt.pop %v3477
          %v3492 = vmul.f32 %v3477, %v3491
          %vm3493 = vcmp.eq.f32.partialorder %v3477, inf
          %v3494 = vsel %vm3493, %v3477, %v3492
          %vm3495 = vcmp.eq.f32.partialorder %v3477, 0.0
          %v3496 = vand.u32 %v3477, 2147483648
          %v3497 = vsel %vm3495, %v3496, %v3494
          %v3498 = vrsqrt.pop %v3478
          %v3499 = vmul.f32 %v3478, %v3498
          %vm3500 = vcmp.eq.f32.partialorder %v3478, inf
          %v3501 = vsel %vm3500, %v3478, %v3499
          %vm3502 = vcmp.eq.f32.partialorder %v3478, 0.0
          %v3503 = vand.u32 %v3478, 2147483648
          %v3504 = vsel %vm3502, %v3503, %v3501
          %v3505 = vrsqrt.pop %v3479
          %v3506 = vmul.f32 %v3479, %v3505
          %vm3507 = vcmp.eq.f32.partialorder %v3479, inf
          %v3508 = vsel %vm3507, %v3479, %v3506
          %vm3509 = vcmp.eq.f32.partialorder %v3479, 0.0
          %v3510 = vand.u32 %v3479, 2147483648
          %v3511 = vsel %vm3509, %v3510, %v3508
          %v3512 = vrsqrt.pop %v3480
          %v3513 = vmul.f32 %v3480, %v3512
          %vm3514 = vcmp.eq.f32.partialorder %v3480, inf
          %v3515 = vsel %vm3514, %v3480, %v3513
          %vm3516 = vcmp.eq.f32.partialorder %v3480, 0.0
          %v3517 = vand.u32 %v3480, 2147483648
          %v3518 = vsel %vm3516, %v3517, %v3515
          %v3519 = vrsqrt.pop %v3481
          %v3520 = vmul.f32 %v3481, %v3519
          %vm3521 = vcmp.eq.f32.partialorder %v3481, inf
          %v3522 = vsel %vm3521, %v3481, %v3520
          %vm3523 = vcmp.eq.f32.partialorder %v3481, 0.0
          %v3524 = vand.u32 %v3481, 2147483648
          %v3525 = vsel %vm3523, %v3524, %v3522
          %v3526 = vrsqrt.pop %v3482
          %v3527 = vmul.f32 %v3482, %v3526
          %vm3528 = vcmp.eq.f32.partialorder %v3482, inf
          %v3529 = vsel %vm3528, %v3482, %v3527
          %vm3530 = vcmp.eq.f32.partialorder %v3482, 0.0
          %v3531 = vand.u32 %v3482, 2147483648
          %v3532 = vsel %vm3530, %v3531, %v3529
          %v3533 = vrsqrt.pop %v3483
          %v3534 = vmul.f32 %v3483, %v3533
          %vm3535 = vcmp.eq.f32.partialorder %v3483, inf
          %v3536 = vsel %vm3535, %v3483, %v3534
          %vm3537 = vcmp.eq.f32.partialorder %v3483, 0.0
          %v3538 = vand.u32 %v3483, 2147483648
          %v3539 = vsel %vm3537, %v3538, %v3536
          %v3540 = vld [vmem:[%s18] sm:$0xff]
          %v3541 = vld [vmem:[%s18 + $0x8] sm:$0xff]
          %v3542 = vld [vmem:[%s18 + $0x10] sm:$0xff]
          %v3543 = vld [vmem:[%s18 + $0x18] sm:$0xff]
          %v3544 = vld [vmem:[%s18 + $0x20] sm:$0xff]
          %v3545 = vld [vmem:[%s18 + $0x28] sm:$0xff]
          %v3546 = vld [vmem:[%s18 + $0x30] sm:$0xff]
          %v3547 = vld [vmem:[%s18 + $0x38] sm:$0xff]
          %v3548 = vld [vmem:[%s19] sm:$0xff]
          %v3549 = vld [vmem:[%s19 + $0x8] sm:$0xff]
          %v3550 = vld [vmem:[%s19 + $0x10] sm:$0xff]
          %v3551 = vld [vmem:[%s19 + $0x18] sm:$0xff]
          %v3552 = vld [vmem:[%s19 + $0x20] sm:$0xff]
          %v3553 = vld [vmem:[%s19 + $0x28] sm:$0xff]
          %v3554 = vld [vmem:[%s19 + $0x30] sm:$0xff]
          %v3555 = vld [vmem:[%s19 + $0x38] sm:$0xff]
          %vm3556 = vcmp.eq.f32.partialorder %v3548, 0.0
          %vm3557 = vcmp.eq.f32.partialorder %v3549, 0.0
          %vm3558 = vcmp.eq.f32.partialorder %v3550, 0.0
          %vm3559 = vcmp.eq.f32.partialorder %v3551, 0.0
          %vm3560 = vcmp.eq.f32.partialorder %v3552, 0.0
          %vm3561 = vcmp.eq.f32.partialorder %v3553, 0.0
          %vm3562 = vcmp.eq.f32.partialorder %v3554, 0.0
          %vm3563 = vcmp.eq.f32.partialorder %v3555, 0.0
          %v3564 = vmul.f32 %v3540, %v3314
          %v3565 = vmul.f32 %v3541, %v3314
          %v3566 = vmul.f32 %v3542, %v3314
          %v3567 = vmul.f32 %v3543, %v3314
          %v3568 = vmul.f32 %v3544, %v3314
          %v3569 = vmul.f32 %v3545, %v3314
          %v3570 = vmul.f32 %v3546, %v3314
          %v3571 = vmul.f32 %v3547, %v3314
          %v3572 = vsel %vm3556, %v3564, %v3540
          %v3573 = vsel %vm3557, %v3565, %v3541
          %v3574 = vsel %vm3558, %v3566, %v3542
          %v3575 = vsel %vm3559, %v3567, %v3543
          %v3576 = vsel %vm3560, %v3568, %v3544
          %v3577 = vsel %vm3561, %v3569, %v3545
          %v3578 = vsel %vm3562, %v3570, %v3546
          %v3579 = vsel %vm3563, %v3571, %v3547
          %v3580 = vsel %vm3331, %v3572, 0.0
          %3581 = vadd.xlane.f32.xlu0 %v3580
          %v3582 = vpop.xlane.xlu0 %3581
          %v3583 = vsel %vm3331, %v3573, 0.0
          %3584 = vadd.xlane.f32.xlu0 %v3583
          %v3585 = vpop.xlane.xlu0 %3584
          %v3586 = vsel %vm3331, %v3574, 0.0
          %3587 = vadd.xlane.f32.xlu0 %v3586
          %v3588 = vpop.xlane.xlu0 %3587
          %v3589 = vsel %vm3331, %v3575, 0.0
          %3590 = vadd.xlane.f32.xlu0 %v3589
          %v3591 = vpop.xlane.xlu0 %3590
          %v3592 = vsel %vm3331, %v3576, 0.0
          %3593 = vadd.xlane.f32.xlu0 %v3592
          %v3594 = vpop.xlane.xlu0 %3593
          %v3595 = vsel %vm3331, %v3577, 0.0
          %3596 = vadd.xlane.f32.xlu0 %v3595
          %v3597 = vpop.xlane.xlu0 %3596
          %v3598 = vsel %vm3331, %v3578, 0.0
          %3599 = vadd.xlane.f32.xlu0 %v3598
          %v3600 = vpop.xlane.xlu0 %3599
          %v3601 = vsel %vm3331, %v3579, 0.0
          %3602 = vadd.xlane.f32.xlu0 %v3601
          %v3603 = vpop.xlane.xlu0 %3602
          %v3604 = vmul.f32 %v3572, %v3548
          %v3605 = vmul.f32 %v3573, %v3549
          %v3606 = vmul.f32 %v3574, %v3550
          %v3607 = vmul.f32 %v3575, %v3551
          %v3608 = vmul.f32 %v3576, %v3552
          %v3609 = vmul.f32 %v3577, %v3553
          %v3610 = vmul.f32 %v3578, %v3554
          %v3611 = vmul.f32 %v3579, %v3555
          %v3612 = vsel %vm3331, %v3604, 0.0
          %3613 = vadd.xlane.f32.xlu0 %v3612
          %v3614 = vpop.xlane.xlu0 %3613
          %v3615 = vsel %vm3331, %v3605, 0.0
          %3616 = vadd.xlane.f32.xlu0 %v3615
          %v3617 = vpop.xlane.xlu0 %3616
          %v3618 = vsel %vm3331, %v3606, 0.0
          %3619 = vadd.xlane.f32.xlu0 %v3618
          %v3620 = vpop.xlane.xlu0 %3619
          %v3621 = vsel %vm3331, %v3607, 0.0
          %3622 = vadd.xlane.f32.xlu0 %v3621
          %v3623 = vpop.xlane.xlu0 %3622
          %v3624 = vsel %vm3331, %v3608, 0.0
          %3625 = vadd.xlane.f32.xlu0 %v3624
          %v3626 = vpop.xlane.xlu0 %3625
          %v3627 = vsel %vm3331, %v3609, 0.0
          %3628 = vadd.xlane.f32.xlu0 %v3627
          %v3629 = vpop.xlane.xlu0 %3628
          %v3630 = vsel %vm3331, %v3610, 0.0
          %3631 = vadd.xlane.f32.xlu0 %v3630
          %v3632 = vpop.xlane.xlu0 %3631
          %v3633 = vsel %vm3331, %v3611, 0.0
          %3634 = vadd.xlane.f32.xlu0 %v3633
          %v3635 = vpop.xlane.xlu0 %3634
          %v3636 = vrcp.pop %v3582
          %v3637 = vmul.f32 %v3614, %v3636
          %v3638 = vrcp.pop %v3585
          %v3639 = vmul.f32 %v3617, %v3638
          %v3640 = vrcp.pop %v3588
          %v3641 = vmul.f32 %v3620, %v3640
          %v3642 = vrcp.pop %v3591
          %v3643 = vmul.f32 %v3623, %v3642
          %v3644 = vrcp.pop %v3594
          %v3645 = vmul.f32 %v3626, %v3644
          %v3646 = vrcp.pop %v3597
          %v3647 = vmul.f32 %v3629, %v3646
          %v3648 = vrcp.pop %v3600
          %v3649 = vmul.f32 %v3632, %v3648
          %v3650 = vrcp.pop %v3603
          %v3651 = vmul.f32 %v3635, %v3650
          %v3652 = vsel %vm3331, %v3548, 0.0
          %3653 = vadd.xlane.f32.xlu0 %v3652
          %v3654 = vpop.xlane.xlu0 %3653
          %v3655 = vsel %vm3331, %v3549, 0.0
          %3656 = vadd.xlane.f32.xlu0 %v3655
          %v3657 = vpop.xlane.xlu0 %3656
          %v3658 = vsel %vm3331, %v3550, 0.0
          %3659 = vadd.xlane.f32.xlu0 %v3658
          %v3660 = vpop.xlane.xlu0 %3659
          %v3661 = vsel %vm3331, %v3551, 0.0
          %3662 = vadd.xlane.f32.xlu0 %v3661
          %v3663 = vpop.xlane.xlu0 %3662
          %v3664 = vsel %vm3331, %v3552, 0.0
          %3665 = vadd.xlane.f32.xlu0 %v3664
          %v3666 = vpop.xlane.xlu0 %3665
          %v3667 = vsel %vm3331, %v3553, 0.0
          %3668 = vadd.xlane.f32.xlu0 %v3667
          %v3669 = vpop.xlane.xlu0 %3668
          %v3670 = vsel %vm3331, %v3554, 0.0
          %3671 = vadd.xlane.f32.xlu0 %v3670
          %v3672 = vpop.xlane.xlu0 %3671
          %v3673 = vsel %vm3331, %v3555, 0.0
          %3674 = vadd.xlane.f32.xlu0 %v3673
          %v3675 = vpop.xlane.xlu0 %3674
          %v3676 = vmul.f32 %v3654, 0.05
          %v3677 = vmul.f32 %v3657, 0.05
          %v3678 = vmul.f32 %v3660, 0.05
          %v3679 = vmul.f32 %v3663, 0.05
          %v3680 = vmul.f32 %v3666, 0.05
          %v3681 = vmul.f32 %v3669, 0.05
          %v3682 = vmul.f32 %v3672, 0.05
          %v3683 = vmul.f32 %v3675, 0.05
          %v3684 = vsub.f32 %v3548, %v3676
          %v3685 = vsub.f32 %v3549, %v3677
          %v3686 = vsub.f32 %v3550, %v3678
          %v3687 = vsub.f32 %v3551, %v3679
          %v3688 = vsub.f32 %v3552, %v3680
          %v3689 = vsub.f32 %v3553, %v3681
          %v3690 = vsub.f32 %v3554, %v3682
          %v3691 = vsub.f32 %v3555, %v3683
          %v3692 = vmul.f32 %v3684, %v3684
          %v3693 = vmul.f32 %v3685, %v3685
          %v3694 = vmul.f32 %v3686, %v3686
          %v3695 = vmul.f32 %v3687, %v3687
          %v3696 = vmul.f32 %v3688, %v3688
          %v3697 = vmul.f32 %v3689, %v3689
          %v3698 = vmul.f32 %v3690, %v3690
          %v3699 = vmul.f32 %v3691, %v3691
          %v3700 = vsel %vm3331, %v3692, 0.0
          %3701 = vadd.xlane.f32.xlu0 %v3700
          %v3702 = vpop.xlane.xlu0 %3701
          %v3703 = vsel %vm3331, %v3693, 0.0
          %3704 = vadd.xlane.f32.xlu0 %v3703
          %v3705 = vpop.xlane.xlu0 %3704
          %v3706 = vsel %vm3331, %v3694, 0.0
          %3707 = vadd.xlane.f32.xlu0 %v3706
          %v3708 = vpop.xlane.xlu0 %3707
          %v3709 = vsel %vm3331, %v3695, 0.0
          %3710 = vadd.xlane.f32.xlu0 %v3709
          %v3711 = vpop.xlane.xlu0 %3710
          %v3712 = vsel %vm3331, %v3696, 0.0
          %3713 = vadd.xlane.f32.xlu0 %v3712
          %v3714 = vpop.xlane.xlu0 %3713
          %v3715 = vsel %vm3331, %v3697, 0.0
          %3716 = vadd.xlane.f32.xlu0 %v3715
          %v3717 = vpop.xlane.xlu0 %3716
          %v3718 = vsel %vm3331, %v3698, 0.0
          %3719 = vadd.xlane.f32.xlu0 %v3718
          %v3720 = vpop.xlane.xlu0 %3719
          %v3721 = vsel %vm3331, %v3699, 0.0
          %3722 = vadd.xlane.f32.xlu0 %v3721
          %v3723 = vpop.xlane.xlu0 %3722
          %v3724 = vmul.f32 %v3702, 0.05263158
          %v3725 = vmul.f32 %v3705, 0.05263158
          %v3726 = vmul.f32 %v3708, 0.05263158
          %v3727 = vmul.f32 %v3711, 0.05263158
          %v3728 = vmul.f32 %v3714, 0.05263158
          %v3729 = vmul.f32 %v3717, 0.05263158
          %v3730 = vmul.f32 %v3720, 0.05263158
          %v3731 = vmul.f32 %v3723, 0.05263158
          %v3732 = vrsqrt.pop %v3724
          %v3733 = vmul.f32 %v3724, %v3732
          %vm3734 = vcmp.eq.f32.partialorder %v3724, inf
          %v3735 = vsel %vm3734, %v3724, %v3733
          %vm3736 = vcmp.eq.f32.partialorder %v3724, 0.0
          %v3737 = vand.u32 %v3724, 2147483648
          %v3738 = vsel %vm3736, %v3737, %v3735
          %v3739 = vrsqrt.pop %v3725
          %v3740 = vmul.f32 %v3725, %v3739
          %vm3741 = vcmp.eq.f32.partialorder %v3725, inf
          %v3742 = vsel %vm3741, %v3725, %v3740
          %vm3743 = vcmp.eq.f32.partialorder %v3725, 0.0
          %v3744 = vand.u32 %v3725, 2147483648
          %v3745 = vsel %vm3743, %v3744, %v3742
          %v3746 = vrsqrt.pop %v3726
          %v3747 = vmul.f32 %v3726, %v3746
          %vm3748 = vcmp.eq.f32.partialorder %v3726, inf
          %v3749 = vsel %vm3748, %v3726, %v3747
          %vm3750 = vcmp.eq.f32.partialorder %v3726, 0.0
          %v3751 = vand.u32 %v3726, 2147483648
          %v3752 = vsel %vm3750, %v3751, %v3749
          %v3753 = vrsqrt.pop %v3727
          %v3754 = vmul.f32 %v3727, %v3753
          %vm3755 = vcmp.eq.f32.partialorder %v3727, inf
          %v3756 = vsel %vm3755, %v3727, %v3754
          %vm3757 = vcmp.eq.f32.partialorder %v3727, 0.0
          %v3758 = vand.u32 %v3727, 2147483648
          %v3759 = vsel %vm3757, %v3758, %v3756
          %v3760 = vrsqrt.pop %v3728
          %v3761 = vmul.f32 %v3728, %v3760
          %vm3762 = vcmp.eq.f32.partialorder %v3728, inf
          %v3763 = vsel %vm3762, %v3728, %v3761
          %vm3764 = vcmp.eq.f32.partialorder %v3728, 0.0
          %v3765 = vand.u32 %v3728, 2147483648
          %v3766 = vsel %vm3764, %v3765, %v3763
          %v3767 = vrsqrt.pop %v3729
          %v3768 = vmul.f32 %v3729, %v3767
          %vm3769 = vcmp.eq.f32.partialorder %v3729, inf
          %v3770 = vsel %vm3769, %v3729, %v3768
          %vm3771 = vcmp.eq.f32.partialorder %v3729, 0.0
          %v3772 = vand.u32 %v3729, 2147483648
          %v3773 = vsel %vm3771, %v3772, %v3770
          %v3774 = vrsqrt.pop %v3730
          %v3775 = vmul.f32 %v3730, %v3774
          %vm3776 = vcmp.eq.f32.partialorder %v3730, inf
          %v3777 = vsel %vm3776, %v3730, %v3775
          %vm3778 = vcmp.eq.f32.partialorder %v3730, 0.0
          %v3779 = vand.u32 %v3730, 2147483648
          %v3780 = vsel %vm3778, %v3779, %v3777
          %v3781 = vrsqrt.pop %v3731
          %v3782 = vmul.f32 %v3731, %v3781
          %vm3783 = vcmp.eq.f32.partialorder %v3731, inf
          %v3784 = vsel %vm3783, %v3731, %v3782
          %vm3785 = vcmp.eq.f32.partialorder %v3731, 0.0
          %v3786 = vand.u32 %v3731, 2147483648
          %v3787 = vsel %vm3785, %v3786, %v3784
          %vm3788 = vcmp.eq.s32.totalorder %v1115, 0
          %v3789 = vsel %vm3788, %v3334, 0.0
          %v3790 = vsel %vm3788, %v3337, 0.0
          %v3791 = vsel %vm3788, %v3340, 0.0
          %v3792 = vsel %vm3788, %v3343, 0.0
          %v3793 = vsel %vm3788, %v3346, 0.0
          %v3794 = vsel %vm3788, %v3349, 0.0
          %v3795 = vsel %vm3788, %v3352, 0.0
          %v3796 = vsel %vm3788, %v3355, 0.0
          %vm3797 = vcmp.eq.s32.totalorder %v1115, 1
          %v3798 = vsel %vm3797, %v3582, %v3789
          %v3799 = vsel %vm3797, %v3585, %v3790
          %v3800 = vsel %vm3797, %v3588, %v3791
          %v3801 = vsel %vm3797, %v3591, %v3792
          %v3802 = vsel %vm3797, %v3594, %v3793
          %v3803 = vsel %vm3797, %v3597, %v3794
          %v3804 = vsel %vm3797, %v3600, %v3795
          %v3805 = vsel %vm3797, %v3603, %v3796
          %vm3806 = vcmp.eq.s32.totalorder %v1115, 2
          %v3807 = vsel %vm3806, %v3389, %v3798
          %v3808 = vsel %vm3806, %v3391, %v3799
          %v3809 = vsel %vm3806, %v3393, %v3800
          %v3810 = vsel %vm3806, %v3395, %v3801
          %v3811 = vsel %vm3806, %v3397, %v3802
          %v3812 = vsel %vm3806, %v3399, %v3803
          %v3813 = vsel %vm3806, %v3401, %v3804
          %v3814 = vsel %vm3806, %v3403, %v3805
          %vm3815 = vcmp.eq.s32.totalorder %v1115, 3
          %v3816 = vsel %vm3815, %v3637, %v3807
          %v3817 = vsel %vm3815, %v3639, %v3808
          %v3818 = vsel %vm3815, %v3641, %v3809
          %v3819 = vsel %vm3815, %v3643, %v3810
          %v3820 = vsel %vm3815, %v3645, %v3811
          %v3821 = vsel %vm3815, %v3647, %v3812
          %v3822 = vsel %vm3815, %v3649, %v3813
          %v3823 = vsel %vm3815, %v3651, %v3814
          %vm3824 = vcmp.eq.s32.totalorder %v1115, 4
          %v3825 = vsel %vm3824, %v3490, %v3816
          %v3826 = vsel %vm3824, %v3497, %v3817
          %v3827 = vsel %vm3824, %v3504, %v3818
          %v3828 = vsel %vm3824, %v3511, %v3819
          %v3829 = vsel %vm3824, %v3518, %v3820
          %v3830 = vsel %vm3824, %v3525, %v3821
          %v3831 = vsel %vm3824, %v3532, %v3822
          %v3832 = vsel %vm3824, %v3539, %v3823
          %vm3833 = vcmp.eq.s32.totalorder %v1115, 5
          %v3834 = vsel %vm3833, %v3738, %v3825
          %v3835 = vsel %vm3833, %v3745, %v3826
          %v3836 = vsel %vm3833, %v3752, %v3827
          %v3837 = vsel %vm3833, %v3759, %v3828
          %v3838 = vsel %vm3833, %v3766, %v3829
          %v3839 = vsel %vm3833, %v3773, %v3830
          %v3840 = vsel %vm3833, %v3780, %v3831
          %v3841 = vsel %vm3833, %v3787, %v3832
          %v3842 = vpack.c.bf16 %v3283, %v3282
          %v3843 = vpack.c.bf16 %v3285, %v3284
          %v3844 = vpack.c.bf16 %v3287, %v3286
          %v3845 = vpack.c.bf16 %v3289, %v3288
          %v3846 = vld [vmem:[%s21] sm:$0xf]
          %v3847 = vld [vmem:[%s21 + $0x4] sm:$0xf]
          %v3848 = vld [vmem:[%s21 + $0x8] sm:$0xf]
          %v3849 = vld [vmem:[%s21 + $0xc] sm:$0xf]
          %v3850 = vld [vmem:[%s21 + $0x10] sm:$0xf]
          %v3851 = vld [vmem:[%s21 + $0x14] sm:$0xf]
          %v3852 = vld [vmem:[%s21 + $0x18] sm:$0xf]
          %v3853 = vld [vmem:[%s21 + $0x1c] sm:$0xf]
          %v3854 = vld [vmem:[%s21 + $0x20] sm:$0xf]
          %v3855 = vld [vmem:[%s21 + $0x24] sm:$0xf]
          %v3856 = vld [vmem:[%s21 + $0x28] sm:$0xf]
          %v3857 = vld [vmem:[%s21 + $0x2c] sm:$0xf]
          %v3858 = vld [vmem:[%s21 + $0x30] sm:$0xf]
          %v3859 = vld [vmem:[%s21 + $0x34] sm:$0xf]
          %v3860 = vld [vmem:[%s21 + $0x38] sm:$0xf]
          %v3861 = vld [vmem:[%s21 + $0x3c] sm:$0xf]
          %v3862 = vld [vmem:[%s20] sm:$0xff]
          %vm3863 = vcmask 64512
          %v3865 = vsel %vm3863, %v3834, 0
          %v3868 = vsel %vm3863, %v3835, 0
          %v3871 = vsel %vm3863, %v3836, 0
          %v3874 = vsel %vm3863, %v3837, 0
          %v3877 = vsel %vm3863, %v3838, 0
          %v3880 = vsel %vm3863, %v3839, 0
          %v3883 = vsel %vm3863, %v3840, 0
          %v3886 = vsel %vm3863, %v3841, 0
          %3888 = vmatprep.subr.mxu0 0.0
          %3889 = vmatpush1.msra.mxu0 %v3862
          %3890 = vmatprep.subr.mxu0 0.0
          %3891 = vmatpush1.msra.mxu0 0.0
          %3892 = vmatprep.subr.mxu0 0.0
          %3893 = vmatpush1.msra.mxu0 0.0
          %3894 = vmatprep.subr.mxu0 0.0
          %3895 = vmatpush1.msra.mxu0 0.0
          %3896 = vmatprep.subr.mxu0 0.0
          %3897 = vmatpush1.msra.mxu0 0.0
          %3898 = vmatprep.subr.mxu0 0.0
          %3899 = vmatpush1.msra.mxu0 0.0
          %3900 = vmatprep.subr.mxu0 0.0
          %3901 = vmatpush1.msra.mxu0 0.0
          %3902 = vmatprep.subr.mxu0 0.0
          %3903 = vmatpush1.msra.mxu0 0.0
          %3904 = vmatprep.subr.mxu0 0.0
          %3905 = vmatpush1.msra.mxu0 0.0
          %3906 = vmatprep.subr.mxu0 0.0
          %3907 = vmatpush1.msra.mxu0 0.0
          %3908 = vmatprep.subr.mxu0 0.0
          %3909 = vmatpush1.msra.mxu0 0.0
          %3910 = vmatprep.subr.mxu0 0.0
          %3911 = vmatpush1.msra.mxu0 0.0
          %3912 = vmatprep.subr.mxu0 0.0
          %3913 = vmatpush1.msra.mxu0 0.0
          %3914 = vmatprep.subr.mxu0 0.0
          %3915 = vmatpush1.msra.mxu0 0.0
          %3916 = vmatprep.subr.mxu0 0.0
          %3917 = vmatpush1.msra.mxu0 0.0
          %3918 = vmatprep.subr.mxu0 0.0
          %3919 = vmatpush1.msra.mxu0 0.0
          %3920 = vmatprep.subr.mxu0 0.0
          %3921 = vmatpush1.msra.mxu0 0.0
          %3922 = vmatprep.subr.mxu0 0.0
          %3923 = vmatpush1.msra.mxu0 0.0
          %3924 = vmatprep.subr.mxu0 0.0
          %3925 = vmatpush1.msra.mxu0 0.0
          %3926 = vmatprep.subr.mxu0 0.0
          %3927 = vmatpush1.msra.mxu0 0.0
          %3928 = vmatprep.subr.mxu0 0.0
          %3929 = vmatpush1.msra.mxu0 0.0
          %3930 = vmatprep.subr.mxu0 0.0
          %3931 = vmatpush1.msra.mxu0 0.0
          %3932 = vmatprep.subr.mxu0 0.0
          %3933 = vmatpush1.msra.mxu0 0.0
          %3934 = vmatprep.subr.mxu0 0.0
          %3935 = vmatpush1.msra.mxu0 0.0
          %3936 = vmatprep.subr.mxu0 0.0
          %3937 = vmatpush1.msra.mxu0 0.0
          %3938 = vmatprep.subr.mxu0 0.0
          %3939 = vmatpush1.msra.mxu0 0.0
          %3940 = vmatprep.subr.mxu0 0.0
          %3941 = vmatpush1.msra.mxu0 0.0
          %3942 = vmatprep.subr.mxu0 0.0
          %3943 = vmatpush1.msra.mxu0 0.0
          %3944 = vmatprep.subr.mxu0 0.0
          %3945 = vmatpush1.msra.mxu0 0.0
          %3946 = vmatprep.subr.mxu0 0.0
          %3947 = vmatpush1.msra.mxu0 0.0
          %3948 = vmatprep.subr.mxu0 0.0
          %3949 = vmatpush1.msra.mxu0 0.0
          %3950 = vmatprep.subr.mxu0 0.0
          %3951 = vmatpush1.msra.mxu0 0.0
          %3952 = vmatprep.mubr.f32.mxu0 0.0
          %3953 = vmatmul.mubr.f32.gmra.mrb[0].mxu0 %v3865
          %v3954 = vpop.f32.mrb[0].mxu0
          %v3955 = vadd.f32 0.0, %v3954
          %v3956 = vpop.f32.mrb[0].mxu0
          %3957 = vmatprep.mubr.f32.mxu0 0.0
          %3958 = vmatmul.mubr.f32.gmra.mrb[0].mxu0 %v3868
          %v3959 = vpop.f32.mrb[0].mxu0
          %v3960 = vadd.f32 0.0, %v3959
          %v3961 = vpop.f32.mrb[0].mxu0
          %3962 = vmatprep.mubr.f32.mxu0 0.0
          %3963 = vmatmul.mubr.f32.gmra.mrb[0].mxu0 %v3871
          %v3964 = vpop.f32.mrb[0].mxu0
          %v3965 = vadd.f32 0.0, %v3964
          %v3966 = vpop.f32.mrb[0].mxu0
          %3967 = vmatprep.mubr.f32.mxu0 0.0
          %3968 = vmatmul.mubr.f32.gmra.mrb[0].mxu0 %v3874
          %v3969 = vpop.f32.mrb[0].mxu0
          %v3970 = vadd.f32 0.0, %v3969
          %v3971 = vpop.f32.mrb[0].mxu0
          %3972 = vmatprep.mubr.f32.mxu0 0.0
          %3973 = vmatmul.mubr.f32.gmra.mrb[0].mxu0 %v3877
          %v3974 = vpop.f32.mrb[0].mxu0
          %v3975 = vadd.f32 0.0, %v3974
          %v3976 = vpop.f32.mrb[0].mxu0
          %3977 = vmatprep.mubr.f32.mxu0 0.0
          %3978 = vmatmul.mubr.f32.gmra.mrb[0].mxu0 %v3880
          %v3979 = vpop.f32.mrb[0].mxu0
          %v3980 = vadd.f32 0.0, %v3979
          %v3981 = vpop.f32.mrb[0].mxu0
          %3982 = vmatprep.mubr.f32.mxu0 0.0
          %3983 = vmatmul.mubr.f32.gmra.mrb[0].mxu0 %v3883
          %v3984 = vpop.f32.mrb[0].mxu0
          %v3985 = vadd.f32 0.0, %v3984
          %v3986 = vpop.f32.mrb[0].mxu0
          %3987 = vmatprep.mubr.f32.mxu0 0.0
          %3988 = vmatmul.mubr.f32.gmra.mrb[0].mxu0 %v3886
          %v3989 = vpop.f32.mrb[0].mxu0
          %v3990 = vadd.f32 0.0, %v3989
          %v3991 = vpop.f32.mrb[0].mxu0
          %3992 = vdwg.mxu0
          %v4009 = vunpack.c.l.b16 %v3846
          %v4010 = vunpack.c.l.b16 %v3847
          %v4011 = vunpack.c.l.b16 %v3848
          %v4012 = vunpack.c.l.b16 %v3849
          %v4013 = vunpack.c.l.b16 %v3850
          %v4014 = vunpack.c.l.b16 %v3851
          %v4015 = vunpack.c.l.b16 %v3852
          %v4016 = vunpack.c.l.b16 %v3853
          %v4017 = vunpack.c.l.b16 %v3854
          %v4018 = vunpack.c.l.b16 %v3855
          %v4019 = vunpack.c.l.b16 %v3856
          %v4020 = vunpack.c.l.b16 %v3857
          %v4021 = vunpack.c.l.b16 %v3858
          %v4022 = vunpack.c.l.b16 %v3859
          %v4023 = vunpack.c.l.b16 %v3860
          %v4024 = vunpack.c.l.b16 %v3861
          %v4025 = vpack.c.b16 %v4010, %v4009
          %v4026 = vpack.c.b16 %v4012, %v4011
          %v4027 = vpack.c.b16 %v4014, %v4013
          %v4028 = vpack.c.b16 %v4016, %v4015
          %v4029 = vpack.c.b16 %v4018, %v4017
          %v4030 = vpack.c.b16 %v4020, %v4019
          %v4031 = vpack.c.b16 %v4022, %v4021
          %v4032 = vpack.c.b16 %v4024, %v4023
          %4041 = vmatprep.subr.bf16.mxu0 0
          %4042 = vmatpush1.bf16.msra.mxu0 %v4025
          %4043 = vmatprep.subr.bf16.mxu0 0
          %4044 = vmatpush1.bf16.msra.mxu0 %v4026
          %4045 = vmatprep.subr.bf16.mxu0 0
          %4046 = vmatpush1.bf16.msra.mxu0 %v4027
          %4047 = vmatprep.subr.bf16.mxu0 0
          %4048 = vmatpush1.bf16.msra.mxu0 %v4028
          %4049 = vmatprep.subr.bf16.mxu0 0
          %4050 = vmatpush1.bf16.msra.mxu0 %v4029
          %4051 = vmatprep.subr.bf16.mxu0 0
          %4052 = vmatpush1.bf16.msra.mxu0 %v4030
          %4053 = vmatprep.subr.bf16.mxu0 0
          %4054 = vmatpush1.bf16.msra.mxu0 %v4031
          %4055 = vmatprep.subr.bf16.mxu0 0
          %4056 = vmatpush1.bf16.msra.mxu0 %v4032
          %4057 = vmatprep.subr.bf16.mxu0 0
          %4058 = vmatpush1.bf16.msra.mxu0 0
          %4059 = vmatprep.subr.bf16.mxu0 0
          %4060 = vmatpush1.bf16.msra.mxu0 0
          %4061 = vmatprep.subr.bf16.mxu0 0
          %4062 = vmatpush1.bf16.msra.mxu0 0
          %4063 = vmatprep.subr.bf16.mxu0 0
          %4064 = vmatpush1.bf16.msra.mxu0 0
          %4065 = vmatprep.subr.bf16.mxu0 0
          %4066 = vmatpush1.bf16.msra.mxu0 0
          %4067 = vmatprep.subr.bf16.mxu0 0
          %4068 = vmatpush1.bf16.msra.mxu0 0
          %4069 = vmatprep.subr.bf16.mxu0 0
          %4070 = vmatpush1.bf16.msra.mxu0 0
          %4071 = vmatprep.subr.bf16.mxu0 0
          %4072 = vmatpush1.bf16.msra.mxu0 0
          %4073 = vmatprep.mubr.bf16.mxu0 0
          %4074 = vmatmul.mubr.bf16.gmra.mrb[0].mxu0 %v3842
          %v4075 = vpop.f32.mrb[0].mxu0
          %v4076 = vadd.f32 %v3955, %v4075
          %v4077 = vpop.f32.mrb[0].mxu0
          %v4078 = vpop.f32.mrb[0].mxu0
          %v4079 = vadd.f32 %v3960, %v4078
          %v4080 = vpop.f32.mrb[0].mxu0
          %4081 = vmatprep.mubr.bf16.mxu0 0
          %4082 = vmatmul.mubr.bf16.gmra.mrb[0].mxu0 %v3843
          %v4083 = vpop.f32.mrb[0].mxu0
          %v4084 = vadd.f32 %v3965, %v4083
          %v4085 = vpop.f32.mrb[0].mxu0
          %v4086 = vpop.f32.mrb[0].mxu0
          %v4087 = vadd.f32 %v3970, %v4086
          %v4088 = vpop.f32.mrb[0].mxu0
          %4089 = vmatprep.mubr.bf16.mxu0 0
          %4090 = vmatmul.mubr.bf16.gmra.mrb[0].mxu0 %v3844
          %v4091 = vpop.f32.mrb[0].mxu0
          %v4092 = vadd.f32 %v3975, %v4091
          %v4093 = vpop.f32.mrb[0].mxu0
          %v4094 = vpop.f32.mrb[0].mxu0
          %v4095 = vadd.f32 %v3980, %v4094
          %v4096 = vpop.f32.mrb[0].mxu0
          %4097 = vmatprep.mubr.bf16.mxu0 0
          %4098 = vmatmul.mubr.bf16.gmra.mrb[0].mxu0 %v3845
          %v4099 = vpop.f32.mrb[0].mxu0
          %v4100 = vadd.f32 %v3985, %v4099
          %v4101 = vpop.f32.mrb[0].mxu0
          %v4102 = vpop.f32.mrb[0].mxu0
          %v4103 = vadd.f32 %v3990, %v4102
          %v4104 = vpop.f32.mrb[0].mxu0
          %4105 = vdwg.mxu0
          %v4106 = vld [vmem:[%s22] sm:$0x1]
          %v4108 = vlaneseq
          %v4109 = vshrl.u32 %v4108, 7
          %v4110 = vsub.s32 0, %v4109
          %v4111 = vrot.slane %v4106, %v4110
          %v4113 = vadd.f32 %v4076, %v4111
          %v4114 = vadd.f32 %v4079, %v4111
          %v4115 = vadd.f32 %v4084, %v4111
          %v4116 = vadd.f32 %v4087, %v4111
          %v4117 = vadd.f32 %v4092, %v4111
          %v4118 = vadd.f32 %v4095, %v4111
          %v4119 = vadd.f32 %v4100, %v4111
          %v4120 = vadd.f32 %v4103, %v4111
          %v4121 = vmax.f32 %v4113, 0.0
          %v4122 = vmax.f32 %v4114, 0.0
          %v4123 = vmax.f32 %v4115, 0.0
          %v4124 = vmax.f32 %v4116, 0.0
          %v4125 = vmax.f32 %v4117, 0.0
          %v4126 = vmax.f32 %v4118, 0.0
          %v4127 = vmax.f32 %v4119, 0.0
          %v4128 = vmax.f32 %v4120, 0.0
          %v4129 = vld [vmem:[%s23] sm:$0x1]
          %v4131 = vlaneseq
          %v4132 = vshrl.u32 %v4131, 7
          %v4133 = vsub.s32 0, %v4132
          %v4134 = vrot.slane %v4129, %v4133
          %v4136 = vmul.f32 %v4121, %v4134
          %v4137 = vmul.f32 %v4122, %v4134
          %v4138 = vmul.f32 %v4123, %v4134
          %v4139 = vmul.f32 %v4124, %v4134
          %v4140 = vmul.f32 %v4125, %v4134
          %v4141 = vmul.f32 %v4126, %v4134
          %v4142 = vmul.f32 %v4127, %v4134
          %v4143 = vmul.f32 %v4128, %v4134
          %4144 = vadd.xlane.f32.xlu0 %v4136
          %v4145 = vpop.xlane.xlu0 %4144
          %4146 = vadd.xlane.f32.xlu0 %v4137
          %v4147 = vpop.xlane.xlu0 %4146
          %4148 = vadd.xlane.f32.xlu0 %v4138
          %v4149 = vpop.xlane.xlu0 %4148
          %4150 = vadd.xlane.f32.xlu0 %v4139
          %v4151 = vpop.xlane.xlu0 %4150
          %4152 = vadd.xlane.f32.xlu0 %v4140
          %v4153 = vpop.xlane.xlu0 %4152
          %4154 = vadd.xlane.f32.xlu0 %v4141
          %v4155 = vpop.xlane.xlu0 %4154
          %4156 = vadd.xlane.f32.xlu0 %v4142
          %v4157 = vpop.xlane.xlu0 %4156
          %4158 = vadd.xlane.f32.xlu0 %v4143
          %v4159 = vpop.xlane.xlu0 %4158
          %v4160 = vld [vmem:[%s24] sm:$0xff]
          %v4161 = vld [vmem:[%s24 + $0x8] sm:$0xff]
          %v4162 = vld [vmem:[%s24 + $0x10] sm:$0xff]
          %v4163 = vld [vmem:[%s24 + $0x18] sm:$0xff]
          %v4164 = vld [vmem:[%s24 + $0x20] sm:$0xff]
          %v4165 = vld [vmem:[%s24 + $0x28] sm:$0xff]
          %v4166 = vld [vmem:[%s24 + $0x30] sm:$0xff]
          %v4167 = vld [vmem:[%s24 + $0x38] sm:$0xff]
          %v4168 = vsub.f32 %v4145, %v4160
          %v4169 = vsub.f32 %v4147, %v4161
          %v4170 = vsub.f32 %v4149, %v4162
          %v4171 = vsub.f32 %v4151, %v4163
          %v4172 = vsub.f32 %v4153, %v4164
          %v4173 = vsub.f32 %v4155, %v4165
          %v4174 = vsub.f32 %v4157, %v4166
          %v4175 = vsub.f32 %v4159, %v4167
          %v4176 = vld [vmem:[%s25] sm:$0xff]
          %v4177 = vld [vmem:[%s25 + $0x8] sm:$0xff]
          %v4178 = vld [vmem:[%s25 + $0x10] sm:$0xff]
          %v4179 = vld [vmem:[%s25 + $0x18] sm:$0xff]
          %v4180 = vld [vmem:[%s25 + $0x20] sm:$0xff]
          %v4181 = vld [vmem:[%s25 + $0x28] sm:$0xff]
          %v4182 = vld [vmem:[%s25 + $0x30] sm:$0xff]
          %v4183 = vld [vmem:[%s25 + $0x38] sm:$0xff]
          %v4184 = vmul.f32 %v4168, %v4176
          %v4185 = vmul.f32 %v4169, %v4177
          %v4186 = vmul.f32 %v4170, %v4178
          %v4187 = vmul.f32 %v4171, %v4179
          %v4188 = vmul.f32 %v4172, %v4180
          %v4189 = vmul.f32 %v4173, %v4181
          %v4190 = vmul.f32 %v4174, %v4182
          %v4191 = vmul.f32 %v4175, %v4183
          %v4192 = vand.u32 2147483647, %v4184
          %v4193 = vand.u32 2147483647, %v4185
          %v4194 = vand.u32 2147483647, %v4186
          %v4195 = vand.u32 2147483647, %v4187
          %v4196 = vand.u32 2147483647, %v4188
          %v4197 = vand.u32 2147483647, %v4189
          %v4198 = vand.u32 2147483647, %v4190
          %v4199 = vand.u32 2147483647, %v4191
          %v4200 = vld [vmem:[%s26] sm:$0xff]
          %v4201 = vld [vmem:[%s26 + $0x8] sm:$0xff]
          %v4202 = vld [vmem:[%s26 + $0x10] sm:$0xff]
          %v4203 = vld [vmem:[%s26 + $0x18] sm:$0xff]
          %v4204 = vld [vmem:[%s26 + $0x20] sm:$0xff]
          %v4205 = vld [vmem:[%s26 + $0x28] sm:$0xff]
          %v4206 = vld [vmem:[%s26 + $0x30] sm:$0xff]
          %v4207 = vld [vmem:[%s26 + $0x38] sm:$0xff]
          %v4208 = vmul.f32 %v4192, %v4200
          %v4209 = vmul.f32 %v4193, %v4201
          %v4210 = vmul.f32 %v4194, %v4202
          %v4211 = vmul.f32 %v4195, %v4203
          %v4212 = vmul.f32 %v4196, %v4204
          %v4213 = vmul.f32 %v4197, %v4205
          %v4214 = vmul.f32 %v4198, %v4206
          %v4215 = vmul.f32 %v4199, %v4207
          %vm4216 = vcmask 7168
          %v4217 = vsel %vm4216, %v4208, 0.0
          %v4218 = vsel %vm4216, %v4209, 0.0
          %v4219 = vadd.f32 %v4217, %v4218
          %v4220 = vsel %vm4216, %v4210, 0.0
          %v4221 = vadd.f32 %v4219, %v4220
          %v4222 = vsel %vm4216, %v4211, 0.0
          %v4223 = vadd.f32 %v4221, %v4222
          %v4224 = vsel %vm4216, %v4212, 0.0
          %v4225 = vadd.f32 %v4223, %v4224
          %v4226 = vsel %vm4216, %v4213, 0.0
          %v4227 = vadd.f32 %v4225, %v4226
          %v4228 = vsel %vm4216, %v4214, 0.0
          %v4229 = vadd.f32 %v4227, %v4228
          %v4230 = vsel %vm4216, %v4215, 0.0
          %v4231 = vadd.f32 %v4229, %v4230
          %4232 = vadd.xlane.f32.xlu0 %v4231
          %v4233 = vpop.xlane.xlu0 %4232
          %v4234 = vrot.slane %v4233, 4
          %v4235 = vadd.f32 %v4233, %v4234
          %v4236 = vrot.slane %v4235, 2
          %v4237 = vadd.f32 %v4235, %v4236
          %v4238 = vrot.slane %v4237, 1
          %v4239 = vadd.f32 %v4237, %v4238
          %s4240 = vtos %v4239
          %v4241 = vsel %vm4216, %v4200, 0.0
          %v4242 = vsel %vm4216, %v4201, 0.0
          %v4243 = vadd.f32 %v4241, %v4242
          %v4244 = vsel %vm4216, %v4202, 0.0
          %v4245 = vadd.f32 %v4243, %v4244
          %v4246 = vsel %vm4216, %v4203, 0.0
          %v4247 = vadd.f32 %v4245, %v4246
          %v4248 = vsel %vm4216, %v4204, 0.0
          %v4249 = vadd.f32 %v4247, %v4248
          %v4250 = vsel %vm4216, %v4205, 0.0
          %v4251 = vadd.f32 %v4249, %v4250
          %v4252 = vsel %vm4216, %v4206, 0.0
          %v4253 = vadd.f32 %v4251, %v4252
          %v4254 = vsel %vm4216, %v4207, 0.0
          %v4255 = vadd.f32 %v4253, %v4254
          %4256 = vadd.xlane.f32.xlu0 %v4255
          %v4257 = vpop.xlane.xlu0 %4256
          %v4258 = vrot.slane %v4257, 4
          %v4259 = vadd.f32 %v4257, %v4258
          %v4260 = vrot.slane %v4259, 2
          %v4261 = vadd.f32 %v4259, %v4260
          %v4262 = vrot.slane %v4261, 1
          %v4263 = vadd.f32 %v4261, %v4262
          %s4264 = vtos %v4263
          %v4265 = vstv %s4264
          %v4266 = vrcp.pop %v4265
          %s4267 = vtos %v4266
          %s4268 = smul.f32 %s4240, %s4267
          %v4269 = vstv %s4268
          %vm4270 = vcmask 0
          %4271 = vst.msk [vmem:[#allocation3] sm:$0x1] %vm4270, %v4269
        $region136: #{our_model_forward.1} parent=127 // pred_fallthru
          _
        // Predicated region
        $region137: #{our_model_forward.1} parent=127 // pred_check
          %p4272 = pneg %p679
        $region138: #{our_model_forward.1} parent=127 // pred_check_branch
          %4274 = sbr.rel (%p4272) target = $region140
        $region139: #{our_model_forward.1} parent=127 // pred_region
          %s4276 = ssub.s32 16, 16
          %4277 = vsyncadd [#allocation4], %s4276
          %s4279 = sshll.u32 [#allocation3], 4
          %s4280 = int_to_ptr.vmem [resolvable:$true] %s4279
          %4282 = dma.vmem_to_hbm [thread:$0]  %s4280, 16, %s27, [#allocation4]
        $region140: #{our_model_forward.1} parent=127 // pred_fallthru
          _
        // Predicated region
        $region141: #{our_model_forward.1} parent=127 // pred_check
          %p4283 = pneg %p679
        $region142: #{our_model_forward.1} parent=127 // pred_check_branch
          %4285 = sbr.rel (%p4283) target = $region144
        $region143: #{our_model_forward.1} parent=127 // pred_region
          %4286 = dma.done [#allocation4], 16
        $region144: #{our_model_forward.1} parent=127 // pred_fallthru
          _
      $region128: #{our_model_forward.1} parent=5 // pred_fallthru
        _
      %p4287 = scmp.le.s32.totalorder 2, %s34
      // Predicated region
      $region145: #{our_model_forward.1} parent=5 // pred_check
        %p4288 = pneg %p4287
      $region146: #{our_model_forward.1} parent=5 // pred_check_branch
        %4290 = sbr.rel (%p4288) target = $region148
      $region147: #{our_model_forward.1} parent=5 // pred_region
        %s4291 = ssub.s32 %s34, 2
      $region148: #{our_model_forward.1} parent=5 // pred_fallthru
        _
    $region6: #{our_model_forward.1} parent=1 // loop_footer
      %s38 = sadd.s32 1, %s34
    $region7: #{our_model_forward.1} parent=1 // loop_footer_branch
      %33 = sbr.rel target = $region3
    $region8: #{our_model_forward.1} parent=1 // loop_exit
      _
    %4292 = vsyncpa [#allocation4], 1
    %s4293 = scalar_lea.sflag [#allocation4], 1
    %4294 = vsyncpa %s4293, 1

</llo_original>
